<compile_context>
chip_gen: v7x
topology: tpu7x:2x2x1
jax: 0.10.0
libtpu: 0.0.40
codegen_flags: <defaults>
</compile_context>

<pallas_src>
import math
import functools

import jax
import jax.numpy as jnp
import numpy as np
from jax import lax
from jax.experimental import pallas as pl
from jax.experimental.pallas import tpu as pltpu

CFG = dict(
    dim=256, inter_dim=512, n_heads=4,
    qk_nope=32, qk_rope=16, kv_lora=64, v_head=32,
    max_seq_len=32, original_seq_len=32,
    rope_theta=10000.0, rope_factor=40, mscale=1.0,
)

BF16 = jnp.bfloat16
F32 = jnp.float32


# ------------------------- fused Block Pallas kernel ------------------------

def _block_kernel(x_ref, attn_nw_ref, wq_ref, wkva_ref, kv_nw_ref,
                  wb_nope_ref, wb_v_ref, wo_ref, ffn_nw_ref,
                  w1_ref, w3_ref, w2_ref,
                  cos_q_ref, sin_q_ref, cos_k_ref, sin_k_ref,
                  swap_q_ref, swap_k_ref, mask_ref,
                  o_ref, *, scale, eps, n_heads, d_nope, d_rope, c_kv, d_v):
    """One batch element of Block: attn_norm -> MLA -> +res -> ffn_norm -> MLP -> +res."""
    x = x_ref[0]                                   # (S, D) bf16
    act_dt = x.dtype
    S = x.shape[0]

    def rms(v, w):                                 # RMSNorm in f32, back to bf16
        v32 = v.astype(F32)
        ms = jnp.mean(v32 * v32, axis=-1, keepdims=True)
        return (v32 * lax.rsqrt(ms + eps) * w).astype(act_dt)

    def rope(v, cos, sin, swap):
        # interleaved-pair rotation: y[2i] = x[2i]*c - x[2i+1]*s ; y[2i+1] = x[2i+1]*c + x[2i]*s
        # (sign is baked into `sin`; the pair swap is a tiny 0/1 matmul on the MXU)
        sw = jnp.dot(v, swap, preferred_element_type=F32)
        return (v.astype(F32) * cos + sw * sin).astype(act_dt)

    # ---- attention branch ---------------------------------------------------
    xn = rms(x, attn_nw_ref[...])                                      # (S, D)

    q_all = jnp.dot(xn, wq_ref[...], preferred_element_type=F32).astype(act_dt)
    q_nope = q_all[:, :n_heads * d_nope]                               # (S, H*dn)
    q_pe = rope(q_all[:, n_heads * d_nope:],                           # (S, H*dr)
                cos_q_ref[...], sin_q_ref[...], swap_q_ref[...])

    kvpe = jnp.dot(xn, wkva_ref[...], preferred_element_type=F32).astype(act_dt)
    kv_c = rms(kvpe[:, :c_kv], kv_nw_ref[...])                         # (S, C)  == kv_cache[:end_pos]
    k_pe = rope(kvpe[:, c_kv:],                                        # (S, dr) == pe_cache[:end_pos]
                cos_k_ref[...], sin_k_ref[...], swap_k_ref[...])

    # absorbed q_nope: einsum 'shd,hdc->shc' as ONE lane-dense block-diag matmul
    qn_c = jnp.dot(q_nope, wb_nope_ref[...],
                   preferred_element_type=F32).astype(act_dt)          # (S, H*C)

    mask = mask_ref[...]                                               # (S, T) additive
    ov = jnp.zeros((S, n_heads * d_v), F32)                            # value-proj accumulator
    for h in range(n_heads):                                           # static unroll, H=4
        qn_h = qn_c[:, h * c_kv:(h + 1) * c_kv]                        # (S, C)
        qp_h = q_pe[:, h * d_rope:(h + 1) * d_rope]                    # (S, dr)
        s_h = lax.dot_general(qn_h, kv_c, (((1,), (1,)), ((), ())),
                              preferred_element_type=F32)
        s_h = s_h + lax.dot_general(qp_h, k_pe, (((1,), (1,)), ((), ())),
                                    preferred_element_type=F32)
        s_h = s_h * scale + mask                                       # (S, T)
        s_h = s_h - jnp.max(s_h, axis=-1, keepdims=True)
        p_h = jnp.exp(s_h)
        p_h = p_h * pl.reciprocal(jnp.sum(p_h, axis=-1, keepdims=True), approx=True)
        p_h = p_h.astype(act_dt)
        o_h = jnp.dot(p_h, kv_c, preferred_element_type=F32).astype(act_dt)     # (S, C)
        # value up-projection 'shc,hdc->shd': block-diag rows of wb_v place head h
        ov = ov + jnp.dot(o_h, wb_v_ref[h * c_kv:(h + 1) * c_kv, :],
                          preferred_element_type=F32)
    ov = ov.astype(act_dt)                                             # (S, H*dv)

    attn = jnp.dot(ov, wo_ref[...], preferred_element_type=F32).astype(act_dt)
    h1 = x + attn                                                      # residual 1

    # ---- dense MLP branch (layer_id = 0) ------------------------------------
    hn = rms(h1, ffn_nw_ref[...])
    a = jnp.dot(hn, w1_ref[...], preferred_element_type=F32).astype(act_dt)
    b = jnp.dot(hn, w3_ref[...], preferred_element_type=F32).astype(act_dt)
    a32, b32 = a.astype(F32), b.astype(F32)
    g = (a32 * jax.nn.sigmoid(a32) * b32).astype(act_dt)               # silu(w1 x) * w3 x
    ffn = jnp.dot(g, w2_ref[...], preferred_element_type=F32).astype(act_dt)

    o_ref[0] = h1 + ffn                                                # residual 2


def block_forward(prep, x, mask, cfg):
    B, S, D = x.shape
    H, dn, dr = cfg["n_heads"], cfg["qk_nope"], cfg["qk_rope"]
    C, dv = cfg["kv_lora"], cfg["v_head"]

    consts = [prep[k] for k in (
        "attn_norm_w", "wq_t", "wkv_a_t", "kv_norm_w",
        "wb_nope", "wb_v", "wo_t", "ffn_norm_w",
        "w1_t", "w3_t", "w2_t",
        "cos_q", "sin_q", "cos_k", "sin_k", "swap_q", "swap_k",
    )] + [mask]

    kernel = functools.partial(
        _block_kernel, scale=prep["softmax_scale"], eps=1e-6,
        n_heads=H, d_nope=dn, d_rope=dr, c_kv=C, d_v=dv)

    in_specs = ([pl.BlockSpec((1, S, D), lambda b: (b, 0, 0))] +
                [pl.BlockSpec(c.shape, lambda b: (0, 0)) for c in consts])

    return pl.pallas_call(
        kernel,
        grid=(B,),
        in_specs=in_specs,
        out_specs=pl.BlockSpec((1, S, D), lambda b: (b, 0, 0)),
        out_shape=jax.ShapeDtypeStruct((B, S, D), BF16),
        compiler_params=pltpu.CompilerParams(
            dimension_semantics=("parallel",)),    # batch shards over v7x's 2 TCs
    )(x, *consts)


# ------------------ one-time parameter / table preparation -------------------

def prepare_params(p, cfg, seqlen):
    """One-time preprocessing: weight transposes, head permutation, block-diagonal
    absorbed wkv_b factors and RoPE tables.  Nothing here runs per forward pass."""
    H, dn, dr = cfg["n_heads"], cfg["qk_nope"], cfg["qk_rope"]
    C, dv = cfg["kv_lora"], cfg["v_head"]
    D = cfg["dim"]
    dq = dn + dr

    # wq with output columns permuted to [all nope dims | all rope dims] (head-major)
    wq3 = np.asarray(p["wq"].astype(F32)).reshape(H, dq, D)
    wq_perm = np.concatenate([wq3[:, :dn, :].reshape(H * dn, D),
                              wq3[:, dn:, :].reshape(H * dr, D)], axis=0)

    # block-diagonal absorbed wkv_b factors (fold per-head einsums into single matmuls)
    wkv_b = np.asarray(p["wkv_b"].astype(F32)).reshape(H, dn + dv, C)
    wb_nope = np.zeros((H * dn, H * C), np.float32)
    wb_v = np.zeros((H * C, H * dv), np.float32)
    for h in range(H):
        wb_nope[h * dn:(h + 1) * dn, h * C:(h + 1) * C] = wkv_b[h, :dn, :]
        wb_v[h * C:(h + 1) * C, h * dv:(h + 1) * dv] = wkv_b[h, dn:, :].T

    # RoPE tables: duplicated cos, sign-baked sin, and 0/1 pair-swap matrices
    half = dr // 2
    freqs = 1.0 / (cfg["rope_theta"] ** (np.arange(0, dr, 2, dtype=np.float32) / dr))
    t = np.arange(seqlen, dtype=np.float32)
    ang = np.outer(t, freqs)                               # (S, dr/2)
    cos_h, sin_h = np.cos(ang), np.sin(ang)
    cos_i = np.repeat(cos_h, 2, axis=1)                    # (S, dr)
    sign = np.tile(np.array([-1.0, 1.0], np.float32), half)
    sin_i = np.repeat(sin_h, 2, axis=1) * sign[None, :]
    swap_k = np.kron(np.eye(half, dtype=np.float32),
                     np.array([[0.0, 1.0], [1.0, 0.0]], np.float32))   # (dr, dr)
    swap_q = np.kron(np.eye(H, dtype=np.float32), swap_k)              # (H*dr, H*dr)

    softmax_scale = dq ** (-0.5)
    if cfg["max_seq_len"] > cfg["original_seq_len"]:
        m = 0.1 * cfg["mscale"] * math.log(cfg["rope_factor"]) + 1.0
        softmax_scale *= m * m

    return dict(
        attn_norm_w=jnp.asarray(p["attn_norm_w"], F32).reshape(1, D),
        ffn_norm_w=jnp.asarray(p["ffn_norm_w"], F32).reshape(1, D),
        kv_norm_w=jnp.asarray(p["kv_norm_w"], F32).reshape(1, C),
        wq_t=jnp.asarray(wq_perm.T, BF16),
        wkv_a_t=jnp.transpose(p["wkv_a"]),
        wb_nope=jnp.asarray(wb_nope, BF16),
        wb_v=jnp.asarray(wb_v, BF16),
        wo_t=jnp.transpose(p["wo"]),
        w1_t=jnp.transpose(p["w1"]),
        w3_t=jnp.transpose(p["w3"]),
        w2_t=jnp.transpose(p["w2"]),
        cos_q=jnp.asarray(np.tile(cos_i, (1, H)), F32),
        sin_q=jnp.asarray(np.tile(sin_i, (1, H)), F32),
        cos_k=jnp.asarray(cos_i, F32),
        sin_k=jnp.asarray(sin_i, F32),
        swap_q=jnp.asarray(swap_q, BF16),
        swap_k=jnp.asarray(swap_k, BF16),
        cos_half=jnp.asarray(cos_h, F32),
        sin_half=jnp.asarray(sin_h, F32),
        softmax_scale=float(softmax_scale),
    )


def init_params(key, cfg):
    D, I = cfg["dim"], cfg["inter_dim"]
    H, dn, dr = cfg["n_heads"], cfg["qk_nope"], cfg["qk_rope"]
    C, dv = cfg["kv_lora"], cfg["v_head"]
    dq = dn + dr

    def w(k, out_f, in_f):
        return (jax.random.normal(k, (out_f, in_f), F32) * (in_f ** -0.5)).astype(BF16)

    ks = jax.random.split(key, 7)
    return dict(
        wq=w(ks[0], H * dq, D),
        wkv_a=w(ks[1], C + dr, D),
        wkv_b=w(ks[2], H * (dn + dv), C),
        wo=w(ks[3], D, H * dv),
        w1=w(ks[4], I, D),
        w2=w(ks[5], D, I),
        w3=w(ks[6], I, D),
        attn_norm_w=jnp.ones((D,), F32),
        ffn_norm_w=jnp.ones((D,), F32),
        kv_norm_w=jnp.ones((C,), F32),
    )


# ------------------------- pure-JAX reference check -------------------------

def apply_rotary(x, cos, sin):
    # x: (B, S, H, R), complex-pair rotation exactly as apply_rotary_emb.
    dtype = x.dtype
    b, s, h, r = x.shape
    xf = x.astype(F32).reshape(b, s, h, r // 2, 2)
    xr, xi = xf[..., 0], xf[..., 1]
    c = cos[None, :, None, :]
    sn = sin[None, :, None, :]
    yr = xr * c - xi * sn
    yi = xr * sn + xi * c
    return jnp.stack([yr, yi], axis=-1).reshape(b, s, h, r).astype(dtype)


def reference_block(p, x, cos, sin, mask, scale, cfg):
    B, S, D = x.shape
    M = B * S
    H, dn, dr = cfg["n_heads"], cfg["qk_nope"], cfg["qk_rope"]
    C, dv = cfg["kv_lora"], cfg["v_head"]

    def lin(a, w):
        return jnp.dot(a.astype(F32), w.astype(F32).T).astype(BF16)

    def rms(a, w):
        a32 = a.astype(F32)
        ms = jnp.mean(a32 * a32, -1, keepdims=True)
        return (a32 * lax.rsqrt(ms + 1e-6) * w).astype(BF16)

    xn = rms(x.reshape(M, D), p["attn_norm_w"]).reshape(B, S, D)
    q = lin(xn.reshape(M, D), p["wq"]).reshape(B, S, H, dn + dr)
    q_nope, q_pe = q[..., :dn], q[..., dn:]
    q_pe = apply_rotary(q_pe, cos, sin)
    kvpe = lin(xn.reshape(M, D), p["wkv_a"])
    kv, k_pe = kvpe[:, :C], kvpe[:, C:]
    k_pe = apply_rotary(k_pe.reshape(B, S, 1, dr), cos, sin).reshape(B, S, dr)
    wkv_b = p["wkv_b"].reshape(H, dn + dv, C)
    qn = jnp.einsum("bshd,hdc->bshc", q_nope.astype(F32),
                    wkv_b[:, :dn].astype(F32)).astype(BF16)
    kv_c = rms(kv, p["kv_norm_w"]).reshape(B, S, C)
    scores = (jnp.einsum("bshc,btc->bsht", qn.astype(F32), kv_c.astype(F32))
              + jnp.einsum("bshr,btr->bsht", q_pe.astype(F32), k_pe.astype(F32))) * scale
    scores = scores + mask[None, :, None, :]
    probs = jax.nn.softmax(scores, axis=-1).astype(BF16)
    o = jnp.einsum("bsht,btc->bshc", probs.astype(F32), kv_c.astype(F32)).astype(BF16)
    o = jnp.einsum("bshc,hdc->bshd", o.astype(F32),
                   wkv_b[:, dn:].astype(F32)).astype(BF16)
    attn = lin(o.reshape(M, H * dv), p["wo"]).reshape(B, S, D)
    h = x + attn
    hn = rms(h.reshape(M, D), p["ffn_norm_w"])
    a = lin(hn, p["w1"])
    b = lin(hn, p["w3"])
    g = (a.astype(F32) * jax.nn.sigmoid(a.astype(F32)) * b.astype(F32)).astype(BF16)
    ffn = lin(g, p["w2"]).reshape(B, S, D)
    return h + ffn


# ----------------------------------- main -----------------------------------

if __name__ == "__main__":
    key = jax.random.PRNGKey(0)
    pkey, xkey = jax.random.split(key)

    B, S = 2, 8
    params = init_params(pkey, CFG)
    prep = prepare_params(params, CFG, S)
    x = jax.random.normal(xkey, (B, S, CFG["dim"]), F32).astype(BF16)

    # causal additive mask, as the reference Transformer builds it for seqlen > 1
    mask = jnp.triu(jnp.full((S, S), -1e30, dtype=F32), k=1)

    out = block_forward(prep, x, mask, CFG)
    out = jax.block_until_ready(out)

    ref = reference_block(params, x, prep["cos_half"], prep["sin_half"], mask,
                          prep["softmax_scale"], CFG)
    out_f = np.asarray(out, dtype=np.float32)
    ref_f = np.asarray(ref, dtype=np.float32)
    assert np.all(np.isfinite(out_f))
    np.testing.assert_allclose(out_f, ref_f, rtol=3e-2, atol=3e-2)

    print("KERNEL_OK")
</pallas_src>

<mosaic_0001>
module attributes {stable_mosaic.version = 11 : i64} {
  func.func @_block_kernel(%arg0: i32, %arg1: memref<1x8x256xbf16, #tpu.memory_space<vmem>>, %arg2: memref<1x256xf32, #tpu.memory_space<vmem>>, %arg3: memref<256x192xbf16, #tpu.memory_space<vmem>>, %arg4: memref<256x80xbf16, #tpu.memory_space<vmem>>, %arg5: memref<1x64xf32, #tpu.memory_space<vmem>>, %arg6: memref<128x256xbf16, #tpu.memory_space<vmem>>, %arg7: memref<256x128xbf16, #tpu.memory_space<vmem>>, %arg8: memref<128x256xbf16, #tpu.memory_space<vmem>>, %arg9: memref<1x256xf32, #tpu.memory_space<vmem>>, %arg10: memref<256x512xbf16, #tpu.memory_space<vmem>>, %arg11: memref<256x512xbf16, #tpu.memory_space<vmem>>, %arg12: memref<512x256xbf16, #tpu.memory_space<vmem>>, %arg13: memref<8x64xf32, #tpu.memory_space<vmem>>, %arg14: memref<8x64xf32, #tpu.memory_space<vmem>>, %arg15: memref<8x16xf32, #tpu.memory_space<vmem>>, %arg16: memref<8x16xf32, #tpu.memory_space<vmem>>, %arg17: memref<64x64xbf16, #tpu.memory_space<vmem>>, %arg18: memref<16x16xbf16, #tpu.memory_space<vmem>>, %arg19: memref<8x8xf32, #tpu.memory_space<vmem>>, %arg20: memref<1x8x256xbf16, #tpu.memory_space<vmem>>) attributes {dimension_semantics = [#tpu.dimension_semantics<parallel>], iteration_bounds = array<i64: 2>, scalar_prefetch = 0 : i64, scratch_operands = 0 : i64, tpu.core_type = #tpu.core_type<tc>, window_params = [{transform_indices = @transform_0, window_bounds = array<i64: 1, 8, 256>}, {pipeline_mode = #tpu.pipeline_mode<synchronous>, transform_indices = @transform_1, window_bounds = array<i64: 1, 256>}, {pipeline_mode = #tpu.pipeline_mode<synchronous>, transform_indices = @transform_2, window_bounds = array<i64: 256, 192>}, {pipeline_mode = #tpu.pipeline_mode<synchronous>, transform_indices = @transform_3, window_bounds = array<i64: 256, 80>}, {pipeline_mode = #tpu.pipeline_mode<synchronous>, transform_indices = @transform_4, window_bounds = array<i64: 1, 64>}, {pipeline_mode = #tpu.pipeline_mode<synchronous>, transform_indices = @transform_5, window_bounds = array<i64: 128, 256>}, {pipeline_mode = #tpu.pipeline_mode<synchronous>, transform_indices = @transform_6, window_bounds = array<i64: 256, 128>}, {pipeline_mode = #tpu.pipeline_mode<synchronous>, transform_indices = @transform_7, window_bounds = array<i64: 128, 256>}, {pipeline_mode = #tpu.pipeline_mode<synchronous>, transform_indices = @transform_8, window_bounds = array<i64: 1, 256>}, {pipeline_mode = #tpu.pipeline_mode<synchronous>, transform_indices = @transform_9, window_bounds = array<i64: 256, 512>}, {pipeline_mode = #tpu.pipeline_mode<synchronous>, transform_indices = @transform_10, window_bounds = array<i64: 256, 512>}, {pipeline_mode = #tpu.pipeline_mode<synchronous>, transform_indices = @transform_11, window_bounds = array<i64: 512, 256>}, {pipeline_mode = #tpu.pipeline_mode<synchronous>, transform_indices = @transform_12, window_bounds = array<i64: 8, 64>}, {pipeline_mode = #tpu.pipeline_mode<synchronous>, transform_indices = @transform_13, window_bounds = array<i64: 8, 64>}, {pipeline_mode = #tpu.pipeline_mode<synchronous>, transform_indices = @transform_14, window_bounds = array<i64: 8, 16>}, {pipeline_mode = #tpu.pipeline_mode<synchronous>, transform_indices = @transform_15, window_bounds = array<i64: 8, 16>}, {pipeline_mode = #tpu.pipeline_mode<synchronous>, transform_indices = @transform_16, window_bounds = array<i64: 64, 64>}, {pipeline_mode = #tpu.pipeline_mode<synchronous>, transform_indices = @transform_17, window_bounds = array<i64: 16, 16>}, {pipeline_mode = #tpu.pipeline_mode<synchronous>, transform_indices = @transform_18, window_bounds = array<i64: 8, 8>}, {transform_indices = @transform_19, window_bounds = array<i64: 1, 8, 256>}]} {
    %c0 = arith.constant 0 : index
    %c0_0 = arith.constant 0 : index
    %c0_1 = arith.constant 0 : index
    %0 = vector.load %arg1[%c0, %c0_0, %c0_1] : memref<1x8x256xbf16, #tpu.memory_space<vmem>>, vector<1x8x256xbf16>
    %1 = vector.shape_cast %0 : vector<1x8x256xbf16> to vector<8x256xbf16>
    %c0_2 = arith.constant 0 : index
    %c0_3 = arith.constant 0 : index
    %2 = vector.load %arg2[%c0_2, %c0_3] : memref<1x256xf32, #tpu.memory_space<vmem>>, vector<1x256xf32>
    %3 = arith.extf %1 : vector<8x256xbf16> to vector<8x256xf32>
    %4 = arith.mulf %3, %3 : vector<8x256xf32>
    %cst = arith.constant dense<0.000000e+00> : vector<8xf32>
    %5 = vector.multi_reduction <add>, %4, %cst [1] : vector<8x256xf32> to vector<8xf32>
    %6 = vector.shape_cast %5 : vector<8xf32> to vector<8x1xf32>
    %cst_4 = arith.constant 2.560000e+02 : f32
    %7 = vector.broadcast %cst_4 : f32 to vector<8x1xf32>
    %8 = arith.divf %6, %7 : vector<8x1xf32>
    %cst_5 = arith.constant 9.99999997E-7 : f32
    %9 = vector.broadcast %cst_5 : f32 to vector<8x1xf32>
    %10 = arith.addf %8, %9 : vector<8x1xf32>
    %11 = math.rsqrt %10 : vector<8x1xf32>
    %12 = vector.broadcast %11 : vector<8x1xf32> to vector<8x256xf32>
    %13 = arith.mulf %3, %12 : vector<8x256xf32>
    %14 = vector.broadcast %2 : vector<1x256xf32> to vector<8x256xf32>
    %15 = arith.mulf %13, %14 : vector<8x256xf32>
    %16 = arith.truncf %15 : vector<8x256xf32> to vector<8x256xbf16>
    %c0_6 = arith.constant 0 : index
    %c0_7 = arith.constant 0 : index
    %17 = vector.load %arg3[%c0_6, %c0_7] : memref<256x192xbf16, #tpu.memory_space<vmem>>, vector<256x192xbf16>
    %cst_8 = arith.constant dense<0.000000e+00> : vector<8x192xf32>
    %18 = tpu.matmul %16, %17, %cst_8 {dimension_numbers = #tpu.dot_dimension_numbers<[1], [0], [0], [1], [0, 0, 1, 1], [], []>} : vector<8x256xbf16>, vector<256x192xbf16>, vector<8x192xf32> -> vector<8x192xf32>
    %19 = arith.truncf %18 : vector<8x192xf32> to vector<8x192xbf16>
    %20 = vector.extract_strided_slice %19 {offsets = [0, 0], sizes = [8, 128], strides = [1, 1]} : vector<8x192xbf16> to vector<8x128xbf16>
    %21 = vector.extract_strided_slice %19 {offsets = [0, 128], sizes = [8, 64], strides = [1, 1]} : vector<8x192xbf16> to vector<8x64xbf16>
    %c0_9 = arith.constant 0 : index
    %c0_10 = arith.constant 0 : index
    %22 = vector.load %arg13[%c0_9, %c0_10] : memref<8x64xf32, #tpu.memory_space<vmem>>, vector<8x64xf32>
    %c0_11 = arith.constant 0 : index
    %c0_12 = arith.constant 0 : index
    %23 = vector.load %arg14[%c0_11, %c0_12] : memref<8x64xf32, #tpu.memory_space<vmem>>, vector<8x64xf32>
    %c0_13 = arith.constant 0 : index
    %c0_14 = arith.constant 0 : index
    %24 = vector.load %arg17[%c0_13, %c0_14] : memref<64x64xbf16, #tpu.memory_space<vmem>>, vector<64x64xbf16>
    %cst_15 = arith.constant dense<0.000000e+00> : vector<8x64xf32>
    %25 = tpu.matmul %21, %24, %cst_15 {dimension_numbers = #tpu.dot_dimension_numbers<[1], [0], [0], [1], [0, 0, 1, 1], [], []>} : vector<8x64xbf16>, vector<64x64xbf16>, vector<8x64xf32> -> vector<8x64xf32>
    %26 = arith.extf %21 : vector<8x64xbf16> to vector<8x64xf32>
    %27 = arith.mulf %26, %22 : vector<8x64xf32>
    %28 = arith.mulf %25, %23 : vector<8x64xf32>
    %29 = arith.addf %27, %28 : vector<8x64xf32>
    %30 = arith.truncf %29 : vector<8x64xf32> to vector<8x64xbf16>
    %c0_16 = arith.constant 0 : index
    %c0_17 = arith.constant 0 : index
    %31 = vector.load %arg4[%c0_16, %c0_17] : memref<256x80xbf16, #tpu.memory_space<vmem>>, vector<256x80xbf16>
    %cst_18 = arith.constant dense<0.000000e+00> : vector<8x80xf32>
    %32 = tpu.matmul %16, %31, %cst_18 {dimension_numbers = #tpu.dot_dimension_numbers<[1], [0], [0], [1], [0, 0, 1, 1], [], []>} : vector<8x256xbf16>, vector<256x80xbf16>, vector<8x80xf32> -> vector<8x80xf32>
    %33 = arith.truncf %32 : vector<8x80xf32> to vector<8x80xbf16>
    %34 = vector.extract_strided_slice %33 {offsets = [0, 0], sizes = [8, 64], strides = [1, 1]} : vector<8x80xbf16> to vector<8x64xbf16>
    %c0_19 = arith.constant 0 : index
    %c0_20 = arith.constant 0 : index
    %35 = vector.load %arg5[%c0_19, %c0_20] : memref<1x64xf32, #tpu.memory_space<vmem>>, vector<1x64xf32>
    %36 = arith.extf %34 : vector<8x64xbf16> to vector<8x64xf32>
    %37 = arith.mulf %36, %36 : vector<8x64xf32>
    %cst_21 = arith.constant dense<0.000000e+00> : vector<8xf32>
    %38 = vector.multi_reduction <add>, %37, %cst_21 [1] : vector<8x64xf32> to vector<8xf32>
    %39 = vector.shape_cast %38 : vector<8xf32> to vector<8x1xf32>
    %cst_22 = arith.constant 6.400000e+01 : f32
    %40 = vector.broadcast %cst_22 : f32 to vector<8x1xf32>
    %41 = arith.divf %39, %40 : vector<8x1xf32>
    %cst_23 = arith.constant 9.99999997E-7 : f32
    %42 = vector.broadcast %cst_23 : f32 to vector<8x1xf32>
    %43 = arith.addf %41, %42 : vector<8x1xf32>
    %44 = math.rsqrt %43 : vector<8x1xf32>
    %45 = vector.broadcast %44 : vector<8x1xf32> to vector<8x64xf32>
    %46 = arith.mulf %36, %45 : vector<8x64xf32>
    %47 = vector.broadcast %35 : vector<1x64xf32> to vector<8x64xf32>
    %48 = arith.mulf %46, %47 : vector<8x64xf32>
    %49 = arith.truncf %48 : vector<8x64xf32> to vector<8x64xbf16>
    %50 = vector.extract_strided_slice %33 {offsets = [0, 64], sizes = [8, 16], strides = [1, 1]} : vector<8x80xbf16> to vector<8x16xbf16>
    %c0_24 = arith.constant 0 : index
    %c0_25 = arith.constant 0 : index
    %51 = vector.load %arg15[%c0_24, %c0_25] : memref<8x16xf32, #tpu.memory_space<vmem>>, vector<8x16xf32>
    %c0_26 = arith.constant 0 : index
    %c0_27 = arith.constant 0 : index
    %52 = vector.load %arg16[%c0_26, %c0_27] : memref<8x16xf32, #tpu.memory_space<vmem>>, vector<8x16xf32>
    %c0_28 = arith.constant 0 : index
    %c0_29 = arith.constant 0 : index
    %53 = vector.load %arg18[%c0_28, %c0_29] : memref<16x16xbf16, #tpu.memory_space<vmem>>, vector<16x16xbf16>
    %cst_30 = arith.constant dense<0.000000e+00> : vector<8x16xf32>
    %54 = tpu.matmul %50, %53, %cst_30 {dimension_numbers = #tpu.dot_dimension_numbers<[1], [0], [0], [1], [0, 0, 1, 1], [], []>} : vector<8x16xbf16>, vector<16x16xbf16>, vector<8x16xf32> -> vector<8x16xf32>
    %55 = arith.extf %50 : vector<8x16xbf16> to vector<8x16xf32>
    %56 = arith.mulf %55, %51 : vector<8x16xf32>
    %57 = arith.mulf %54, %52 : vector<8x16xf32>
    %58 = arith.addf %56, %57 : vector<8x16xf32>
    %59 = arith.truncf %58 : vector<8x16xf32> to vector<8x16xbf16>
    %c0_31 = arith.constant 0 : index
    %c0_32 = arith.constant 0 : index
    %60 = vector.load %arg6[%c0_31, %c0_32] : memref<128x256xbf16, #tpu.memory_space<vmem>>, vector<128x256xbf16>
    %cst_33 = arith.constant dense<0.000000e+00> : vector<8x256xf32>
    %61 = tpu.matmul %20, %60, %cst_33 {dimension_numbers = #tpu.dot_dimension_numbers<[1], [0], [0], [1], [0, 0, 1, 1], [], []>} : vector<8x128xbf16>, vector<128x256xbf16>, vector<8x256xf32> -> vector<8x256xf32>
    %62 = arith.truncf %61 : vector<8x256xf32> to vector<8x256xbf16>
    %c0_34 = arith.constant 0 : index
    %c0_35 = arith.constant 0 : index
    %63 = vector.load %arg19[%c0_34, %c0_35] : memref<8x8xf32, #tpu.memory_space<vmem>>, vector<8x8xf32>
    %cst_36 = arith.constant 0.000000e+00 : f32
    %64 = vector.broadcast %cst_36 : f32 to vector<8x128xf32>
    %65 = vector.extract_strided_slice %62 {offsets = [0, 0], sizes = [8, 64], strides = [1, 1]} : vector<8x256xbf16> to vector<8x64xbf16>
    %66 = vector.extract_strided_slice %30 {offsets = [0, 0], sizes = [8, 16], strides = [1, 1]} : vector<8x64xbf16> to vector<8x16xbf16>
    %cst_37 = arith.constant dense<0.000000e+00> : vector<8x8xf32>
    %67 = tpu.matmul %65, %49, %cst_37 {dimension_numbers = #tpu.dot_dimension_numbers<[1], [1], [0], [0], [0, 0, 1, 0], [], []>} : vector<8x64xbf16>, vector<8x64xbf16>, vector<8x8xf32> -> vector<8x8xf32>
    %cst_38 = arith.constant dense<0.000000e+00> : vector<8x8xf32>
    %68 = tpu.matmul %66, %59, %cst_38 {dimension_numbers = #tpu.dot_dimension_numbers<[1], [1], [0], [0], [0, 0, 1, 0], [], []>} : vector<8x16xbf16>, vector<8x16xbf16>, vector<8x8xf32> -> vector<8x8xf32>
    %69 = arith.addf %67, %68 : vector<8x8xf32>
    %cst_39 = arith.constant 0.144337565 : f32
    %70 = vector.broadcast %cst_39 : f32 to vector<8x8xf32>
    %71 = arith.mulf %69, %70 : vector<8x8xf32>
    %72 = arith.addf %71, %63 : vector<8x8xf32>
    %cst_40 = arith.constant dense<0xFF800000> : vector<8xf32>
    %73 = vector.multi_reduction <maximumf>, %72, %cst_40 [1] : vector<8x8xf32> to vector<8xf32>
    %74 = vector.shape_cast %73 : vector<8xf32> to vector<8x1xf32>
    %75 = vector.broadcast %74 : vector<8x1xf32> to vector<8x8xf32>
    %76 = arith.subf %72, %75 : vector<8x8xf32>
    %77 = math.exp %76 : vector<8x8xf32>
    %cst_41 = arith.constant dense<0.000000e+00> : vector<8xf32>
    %78 = vector.multi_reduction <add>, %77, %cst_41 [1] : vector<8x8xf32> to vector<8xf32>
    %79 = vector.shape_cast %78 : vector<8xf32> to vector<8x1xf32>
    %80 = tpu.reciprocal %79 {approx = true} : vector<8x1xf32> -> vector<8x1xf32>
    %81 = vector.broadcast %80 : vector<8x1xf32> to vector<8x8xf32>
    %82 = arith.mulf %77, %81 : vector<8x8xf32>
    %83 = arith.truncf %82 : vector<8x8xf32> to vector<8x8xbf16>
    %cst_42 = arith.constant dense<0.000000e+00> : vector<8x64xf32>
    %84 = tpu.matmul %83, %49, %cst_42 {dimension_numbers = #tpu.dot_dimension_numbers<[1], [0], [0], [1], [0, 0, 1, 1], [], []>} : vector<8x8xbf16>, vector<8x64xbf16>, vector<8x64xf32> -> vector<8x64xf32>
    %85 = arith.truncf %84 : vector<8x64xf32> to vector<8x64xbf16>
    %c0_43 = arith.constant 0 : index
    %c0_44 = arith.constant 0 : index
    %86 = vector.load %arg7[%c0_43, %c0_44] : memref<256x128xbf16, #tpu.memory_space<vmem>>, vector<64x128xbf16>
    %cst_45 = arith.constant dense<0.000000e+00> : vector<8x128xf32>
    %87 = tpu.matmul %85, %86, %cst_45 {dimension_numbers = #tpu.dot_dimension_numbers<[1], [0], [0], [1], [0, 0, 1, 1], [], []>} : vector<8x64xbf16>, vector<64x128xbf16>, vector<8x128xf32> -> vector<8x128xf32>
    %88 = arith.addf %64, %87 : vector<8x128xf32>
    %89 = vector.extract_strided_slice %62 {offsets = [0, 64], sizes = [8, 64], strides = [1, 1]} : vector<8x256xbf16> to vector<8x64xbf16>
    %90 = vector.extract_strided_slice %30 {offsets = [0, 16], sizes = [8, 16], strides = [1, 1]} : vector<8x64xbf16> to vector<8x16xbf16>
    %cst_46 = arith.constant dense<0.000000e+00> : vector<8x8xf32>
    %91 = tpu.matmul %89, %49, %cst_46 {dimension_numbers = #tpu.dot_dimension_numbers<[1], [1], [0], [0], [0, 0, 1, 0], [], []>} : vector<8x64xbf16>, vector<8x64xbf16>, vector<8x8xf32> -> vector<8x8xf32>
    %cst_47 = arith.constant dense<0.000000e+00> : vector<8x8xf32>
    %92 = tpu.matmul %90, %59, %cst_47 {dimension_numbers = #tpu.dot_dimension_numbers<[1], [1], [0], [0], [0, 0, 1, 0], [], []>} : vector<8x16xbf16>, vector<8x16xbf16>, vector<8x8xf32> -> vector<8x8xf32>
    %93 = arith.addf %91, %92 : vector<8x8xf32>
    %cst_48 = arith.constant 0.144337565 : f32
    %94 = vector.broadcast %cst_48 : f32 to vector<8x8xf32>
    %95 = arith.mulf %93, %94 : vector<8x8xf32>
    %96 = arith.addf %95, %63 : vector<8x8xf32>
    %cst_49 = arith.constant dense<0xFF800000> : vector<8xf32>
    %97 = vector.multi_reduction <maximumf>, %96, %cst_49 [1] : vector<8x8xf32> to vector<8xf32>
    %98 = vector.shape_cast %97 : vector<8xf32> to vector<8x1xf32>
    %99 = vector.broadcast %98 : vector<8x1xf32> to vector<8x8xf32>
    %100 = arith.subf %96, %99 : vector<8x8xf32>
    %101 = math.exp %100 : vector<8x8xf32>
    %cst_50 = arith.constant dense<0.000000e+00> : vector<8xf32>
    %102 = vector.multi_reduction <add>, %101, %cst_50 [1] : vector<8x8xf32> to vector<8xf32>
    %103 = vector.shape_cast %102 : vector<8xf32> to vector<8x1xf32>
    %104 = tpu.reciprocal %103 {approx = true} : vector<8x1xf32> -> vector<8x1xf32>
    %105 = vector.broadcast %104 : vector<8x1xf32> to vector<8x8xf32>
    %106 = arith.mulf %101, %105 : vector<8x8xf32>
    %107 = arith.truncf %106 : vector<8x8xf32> to vector<8x8xbf16>
    %cst_51 = arith.constant dense<0.000000e+00> : vector<8x64xf32>
    %108 = tpu.matmul %107, %49, %cst_51 {dimension_numbers = #tpu.dot_dimension_numbers<[1], [0], [0], [1], [0, 0, 1, 1], [], []>} : vector<8x8xbf16>, vector<8x64xbf16>, vector<8x64xf32> -> vector<8x64xf32>
    %109 = arith.truncf %108 : vector<8x64xf32> to vector<8x64xbf16>
    %c64 = arith.constant 64 : index
    %c0_52 = arith.constant 0 : index
    %110 = vector.load %arg7[%c64, %c0_52] : memref<256x128xbf16, #tpu.memory_space<vmem>>, vector<64x128xbf16>
    %cst_53 = arith.constant dense<0.000000e+00> : vector<8x128xf32>
    %111 = tpu.matmul %109, %110, %cst_53 {dimension_numbers = #tpu.dot_dimension_numbers<[1], [0], [0], [1], [0, 0, 1, 1], [], []>} : vector<8x64xbf16>, vector<64x128xbf16>, vector<8x128xf32> -> vector<8x128xf32>
    %112 = arith.addf %88, %111 : vector<8x128xf32>
    %113 = vector.extract_strided_slice %62 {offsets = [0, 128], sizes = [8, 64], strides = [1, 1]} : vector<8x256xbf16> to vector<8x64xbf16>
    %114 = vector.extract_strided_slice %30 {offsets = [0, 32], sizes = [8, 16], strides = [1, 1]} : vector<8x64xbf16> to vector<8x16xbf16>
    %cst_54 = arith.constant dense<0.000000e+00> : vector<8x8xf32>
    %115 = tpu.matmul %113, %49, %cst_54 {dimension_numbers = #tpu.dot_dimension_numbers<[1], [1], [0], [0], [0, 0, 1, 0], [], []>} : vector<8x64xbf16>, vector<8x64xbf16>, vector<8x8xf32> -> vector<8x8xf32>
    %cst_55 = arith.constant dense<0.000000e+00> : vector<8x8xf32>
    %116 = tpu.matmul %114, %59, %cst_55 {dimension_numbers = #tpu.dot_dimension_numbers<[1], [1], [0], [0], [0, 0, 1, 0], [], []>} : vector<8x16xbf16>, vector<8x16xbf16>, vector<8x8xf32> -> vector<8x8xf32>
    %117 = arith.addf %115, %116 : vector<8x8xf32>
    %cst_56 = arith.constant 0.144337565 : f32
    %118 = vector.broadcast %cst_56 : f32 to vector<8x8xf32>
    %119 = arith.mulf %117, %118 : vector<8x8xf32>
    %120 = arith.addf %119, %63 : vector<8x8xf32>
    %cst_57 = arith.constant dense<0xFF800000> : vector<8xf32>
    %121 = vector.multi_reduction <maximumf>, %120, %cst_57 [1] : vector<8x8xf32> to vector<8xf32>
    %122 = vector.shape_cast %121 : vector<8xf32> to vector<8x1xf32>
    %123 = vector.broadcast %122 : vector<8x1xf32> to vector<8x8xf32>
    %124 = arith.subf %120, %123 : vector<8x8xf32>
    %125 = math.exp %124 : vector<8x8xf32>
    %cst_58 = arith.constant dense<0.000000e+00> : vector<8xf32>
    %126 = vector.multi_reduction <add>, %125, %cst_58 [1] : vector<8x8xf32> to vector<8xf32>
    %127 = vector.shape_cast %126 : vector<8xf32> to vector<8x1xf32>
    %128 = tpu.reciprocal %127 {approx = true} : vector<8x1xf32> -> vector<8x1xf32>
    %129 = vector.broadcast %128 : vector<8x1xf32> to vector<8x8xf32>
    %130 = arith.mulf %125, %129 : vector<8x8xf32>
    %131 = arith.truncf %130 : vector<8x8xf32> to vector<8x8xbf16>
    %cst_59 = arith.constant dense<0.000000e+00> : vector<8x64xf32>
    %132 = tpu.matmul %131, %49, %cst_59 {dimension_numbers = #tpu.dot_dimension_numbers<[1], [0], [0], [1], [0, 0, 1, 1], [], []>} : vector<8x8xbf16>, vector<8x64xbf16>, vector<8x64xf32> -> vector<8x64xf32>
    %133 = arith.truncf %132 : vector<8x64xf32> to vector<8x64xbf16>
    %c128 = arith.constant 128 : index
    %c0_60 = arith.constant 0 : index
    %134 = vector.load %arg7[%c128, %c0_60] : memref<256x128xbf16, #tpu.memory_space<vmem>>, vector<64x128xbf16>
    %cst_61 = arith.constant dense<0.000000e+00> : vector<8x128xf32>
    %135 = tpu.matmul %133, %134, %cst_61 {dimension_numbers = #tpu.dot_dimension_numbers<[1], [0], [0], [1], [0, 0, 1, 1], [], []>} : vector<8x64xbf16>, vector<64x128xbf16>, vector<8x128xf32> -> vector<8x128xf32>
    %136 = arith.addf %112, %135 : vector<8x128xf32>
    %137 = vector.extract_strided_slice %62 {offsets = [0, 192], sizes = [8, 64], strides = [1, 1]} : vector<8x256xbf16> to vector<8x64xbf16>
    %138 = vector.extract_strided_slice %30 {offsets = [0, 48], sizes = [8, 16], strides = [1, 1]} : vector<8x64xbf16> to vector<8x16xbf16>
    %cst_62 = arith.constant dense<0.000000e+00> : vector<8x8xf32>
    %139 = tpu.matmul %137, %49, %cst_62 {dimension_numbers = #tpu.dot_dimension_numbers<[1], [1], [0], [0], [0, 0, 1, 0], [], []>} : vector<8x64xbf16>, vector<8x64xbf16>, vector<8x8xf32> -> vector<8x8xf32>
    %cst_63 = arith.constant dense<0.000000e+00> : vector<8x8xf32>
    %140 = tpu.matmul %138, %59, %cst_63 {dimension_numbers = #tpu.dot_dimension_numbers<[1], [1], [0], [0], [0, 0, 1, 0], [], []>} : vector<8x16xbf16>, vector<8x16xbf16>, vector<8x8xf32> -> vector<8x8xf32>
    %141 = arith.addf %139, %140 : vector<8x8xf32>
    %cst_64 = arith.constant 0.144337565 : f32
    %142 = vector.broadcast %cst_64 : f32 to vector<8x8xf32>
    %143 = arith.mulf %141, %142 : vector<8x8xf32>
    %144 = arith.addf %143, %63 : vector<8x8xf32>
    %cst_65 = arith.constant dense<0xFF800000> : vector<8xf32>
    %145 = vector.multi_reduction <maximumf>, %144, %cst_65 [1] : vector<8x8xf32> to vector<8xf32>
    %146 = vector.shape_cast %145 : vector<8xf32> to vector<8x1xf32>
    %147 = vector.broadcast %146 : vector<8x1xf32> to vector<8x8xf32>
    %148 = arith.subf %144, %147 : vector<8x8xf32>
    %149 = math.exp %148 : vector<8x8xf32>
    %cst_66 = arith.constant dense<0.000000e+00> : vector<8xf32>
    %150 = vector.multi_reduction <add>, %149, %cst_66 [1] : vector<8x8xf32> to vector<8xf32>
    %151 = vector.shape_cast %150 : vector<8xf32> to vector<8x1xf32>
    %152 = tpu.reciprocal %151 {approx = true} : vector<8x1xf32> -> vector<8x1xf32>
    %153 = vector.broadcast %152 : vector<8x1xf32> to vector<8x8xf32>
    %154 = arith.mulf %149, %153 : vector<8x8xf32>
    %155 = arith.truncf %154 : vector<8x8xf32> to vector<8x8xbf16>
    %cst_67 = arith.constant dense<0.000000e+00> : vector<8x64xf32>
    %156 = tpu.matmul %155, %49, %cst_67 {dimension_numbers = #tpu.dot_dimension_numbers<[1], [0], [0], [1], [0, 0, 1, 1], [], []>} : vector<8x8xbf16>, vector<8x64xbf16>, vector<8x64xf32> -> vector<8x64xf32>
    %157 = arith.truncf %156 : vector<8x64xf32> to vector<8x64xbf16>
    %c192 = arith.constant 192 : index
    %c0_68 = arith.constant 0 : index
    %158 = vector.load %arg7[%c192, %c0_68] : memref<256x128xbf16, #tpu.memory_space<vmem>>, vector<64x128xbf16>
    %cst_69 = arith.constant dense<0.000000e+00> : vector<8x128xf32>
    %159 = tpu.matmul %157, %158, %cst_69 {dimension_numbers = #tpu.dot_dimension_numbers<[1], [0], [0], [1], [0, 0, 1, 1], [], []>} : vector<8x64xbf16>, vector<64x128xbf16>, vector<8x128xf32> -> vector<8x128xf32>
    %160 = arith.addf %136, %159 : vector<8x128xf32>
    %161 = arith.truncf %160 : vector<8x128xf32> to vector<8x128xbf16>
    %c0_70 = arith.constant 0 : index
    %c0_71 = arith.constant 0 : index
    %162 = vector.load %arg8[%c0_70, %c0_71] : memref<128x256xbf16, #tpu.memory_space<vmem>>, vector<128x256xbf16>
    %cst_72 = arith.constant dense<0.000000e+00> : vector<8x256xf32>
    %163 = tpu.matmul %161, %162, %cst_72 {dimension_numbers = #tpu.dot_dimension_numbers<[1], [0], [0], [1], [0, 0, 1, 1], [], []>} : vector<8x128xbf16>, vector<128x256xbf16>, vector<8x256xf32> -> vector<8x256xf32>
    %164 = arith.truncf %163 : vector<8x256xf32> to vector<8x256xbf16>
    %165 = arith.addf %1, %164 : vector<8x256xbf16>
    %c0_73 = arith.constant 0 : index
    %c0_74 = arith.constant 0 : index
    %166 = vector.load %arg9[%c0_73, %c0_74] : memref<1x256xf32, #tpu.memory_space<vmem>>, vector<1x256xf32>
    %167 = arith.extf %165 : vector<8x256xbf16> to vector<8x256xf32>
    %168 = arith.mulf %167, %167 : vector<8x256xf32>
    %cst_75 = arith.constant dense<0.000000e+00> : vector<8xf32>
    %169 = vector.multi_reduction <add>, %168, %cst_75 [1] : vector<8x256xf32> to vector<8xf32>
    %170 = vector.shape_cast %169 : vector<8xf32> to vector<8x1xf32>
    %cst_76 = arith.constant 2.560000e+02 : f32
    %171 = vector.broadcast %cst_76 : f32 to vector<8x1xf32>
    %172 = arith.divf %170, %171 : vector<8x1xf32>
    %cst_77 = arith.constant 9.99999997E-7 : f32
    %173 = vector.broadcast %cst_77 : f32 to vector<8x1xf32>
    %174 = arith.addf %172, %173 : vector<8x1xf32>
    %175 = math.rsqrt %174 : vector<8x1xf32>
    %176 = vector.broadcast %175 : vector<8x1xf32> to vector<8x256xf32>
    %177 = arith.mulf %167, %176 : vector<8x256xf32>
    %178 = vector.broadcast %166 : vector<1x256xf32> to vector<8x256xf32>
    %179 = arith.mulf %177, %178 : vector<8x256xf32>
    %180 = arith.truncf %179 : vector<8x256xf32> to vector<8x256xbf16>
    %c0_78 = arith.constant 0 : index
    %c0_79 = arith.constant 0 : index
    %181 = vector.load %arg10[%c0_78, %c0_79] : memref<256x512xbf16, #tpu.memory_space<vmem>>, vector<256x512xbf16>
    %cst_80 = arith.constant dense<0.000000e+00> : vector<8x512xf32>
    %182 = tpu.matmul %180, %181, %cst_80 {dimension_numbers = #tpu.dot_dimension_numbers<[1], [0], [0], [1], [0, 0, 1, 1], [], []>} : vector<8x256xbf16>, vector<256x512xbf16>, vector<8x512xf32> -> vector<8x512xf32>
    %183 = arith.truncf %182 : vector<8x512xf32> to vector<8x512xbf16>
    %c0_81 = arith.constant 0 : index
    %c0_82 = arith.constant 0 : index
    %184 = vector.load %arg11[%c0_81, %c0_82] : memref<256x512xbf16, #tpu.memory_space<vmem>>, vector<256x512xbf16>
    %cst_83 = arith.constant dense<0.000000e+00> : vector<8x512xf32>
    %185 = tpu.matmul %180, %184, %cst_83 {dimension_numbers = #tpu.dot_dimension_numbers<[1], [0], [0], [1], [0, 0, 1, 1], [], []>} : vector<8x256xbf16>, vector<256x512xbf16>, vector<8x512xf32> -> vector<8x512xf32>
    %186 = arith.truncf %185 : vector<8x512xf32> to vector<8x512xbf16>
    %187 = arith.extf %183 : vector<8x512xbf16> to vector<8x512xf32>
    %188 = arith.extf %186 : vector<8x512xbf16> to vector<8x512xf32>
    %189 = arith.negf %187 : vector<8x512xf32>
    %190 = math.exp %189 : vector<8x512xf32>
    %cst_84 = arith.constant 1.000000e+00 : f32
    %191 = vector.broadcast %cst_84 : f32 to vector<8x512xf32>
    %192 = arith.addf %191, %190 : vector<8x512xf32>
    %193 = arith.divf %191, %192 : vector<8x512xf32>
    %194 = arith.mulf %187, %193 : vector<8x512xf32>
    %195 = arith.mulf %194, %188 : vector<8x512xf32>
    %196 = arith.truncf %195 : vector<8x512xf32> to vector<8x512xbf16>
    %c0_85 = arith.constant 0 : index
    %c0_86 = arith.constant 0 : index
    %197 = vector.load %arg12[%c0_85, %c0_86] : memref<512x256xbf16, #tpu.memory_space<vmem>>, vector<512x256xbf16>
    %cst_87 = arith.constant dense<0.000000e+00> : vector<8x256xf32>
    %198 = tpu.matmul %196, %197, %cst_87 {dimension_numbers = #tpu.dot_dimension_numbers<[1], [0], [0], [1], [0, 0, 1, 1], [], []>} : vector<8x512xbf16>, vector<512x256xbf16>, vector<8x256xf32> -> vector<8x256xf32>
    %199 = arith.truncf %198 : vector<8x256xf32> to vector<8x256xbf16>
    %200 = arith.addf %165, %199 : vector<8x256xbf16>
    %c0_88 = arith.constant 0 : index
    %c0_89 = arith.constant 0 : index
    %c0_90 = arith.constant 0 : index
    %201 = vector.load %arg20[%c0_88, %c0_89, %c0_90] : memref<1x8x256xbf16, #tpu.memory_space<vmem>>, vector<1x8x256xbf16>
    %202 = vector.shape_cast %201 : vector<1x8x256xbf16> to vector<8x256xbf16>
    %203 = vector.shape_cast %200 : vector<8x256xbf16> to vector<1x8x256xbf16>
    tpu.vector_store %arg20[%c0_88, %c0_89, %c0_90], %203 {strides = array<i32>} : memref<1x8x256xbf16, #tpu.memory_space<vmem>>, vector<1x8x256xbf16>,
    return
  }
  func.func @transform_0(%arg0: i32) -> (i32, i32, i32) {
    %c0_i32 = arith.constant 0 : i32
    %c0_i32_0 = arith.constant 0 : i32
    %c0_i32_1 = arith.constant 0 : i32
    return %arg0, %c0_i32, %c0_i32_0 : i32, i32, i32
  }
  func.func @transform_1(%arg0: i32) -> (i32, i32) {
    %c0_i32 = arith.constant 0 : i32
    %c0_i32_0 = arith.constant 0 : i32
    %c0_i32_1 = arith.constant 0 : i32
    return %c0_i32, %c0_i32_0 : i32, i32
  }
  func.func @transform_2(%arg0: i32) -> (i32, i32) {
    %c0_i32 = arith.constant 0 : i32
    %c0_i32_0 = arith.constant 0 : i32
    %c0_i32_1 = arith.constant 0 : i32
    return %c0_i32, %c0_i32_0 : i32, i32
  }
  func.func @transform_3(%arg0: i32) -> (i32, i32) {
    %c0_i32 = arith.constant 0 : i32
    %c0_i32_0 = arith.constant 0 : i32
    %c0_i32_1 = arith.constant 0 : i32
    return %c0_i32, %c0_i32_0 : i32, i32
  }
  func.func @transform_4(%arg0: i32) -> (i32, i32) {
    %c0_i32 = arith.constant 0 : i32
    %c0_i32_0 = arith.constant 0 : i32
    %c0_i32_1 = arith.constant 0 : i32
    return %c0_i32, %c0_i32_0 : i32, i32
  }
  func.func @transform_5(%arg0: i32) -> (i32, i32) {
    %c0_i32 = arith.constant 0 : i32
    %c0_i32_0 = arith.constant 0 : i32
    %c0_i32_1 = arith.constant 0 : i32
    return %c0_i32, %c0_i32_0 : i32, i32
  }
  func.func @transform_6(%arg0: i32) -> (i32, i32) {
    %c0_i32 = arith.constant 0 : i32
    %c0_i32_0 = arith.constant 0 : i32
    %c0_i32_1 = arith.constant 0 : i32
    return %c0_i32, %c0_i32_0 : i32, i32
  }
  func.func @transform_7(%arg0: i32) -> (i32, i32) {
    %c0_i32 = arith.constant 0 : i32
    %c0_i32_0 = arith.constant 0 : i32
    %c0_i32_1 = arith.constant 0 : i32
    return %c0_i32, %c0_i32_0 : i32, i32
  }
  func.func @transform_8(%arg0: i32) -> (i32, i32) {
    %c0_i32 = arith.constant 0 : i32
    %c0_i32_0 = arith.constant 0 : i32
    %c0_i32_1 = arith.constant 0 : i32
    return %c0_i32, %c0_i32_0 : i32, i32
  }
  func.func @transform_9(%arg0: i32) -> (i32, i32) {
    %c0_i32 = arith.constant 0 : i32
    %c0_i32_0 = arith.constant 0 : i32
    %c0_i32_1 = arith.constant 0 : i32
    return %c0_i32, %c0_i32_0 : i32, i32
  }
  func.func @transform_10(%arg0: i32) -> (i32, i32) {
    %c0_i32 = arith.constant 0 : i32
    %c0_i32_0 = arith.constant 0 : i32
    %c0_i32_1 = arith.constant 0 : i32
    return %c0_i32, %c0_i32_0 : i32, i32
  }
  func.func @transform_11(%arg0: i32) -> (i32, i32) {
    %c0_i32 = arith.constant 0 : i32
    %c0_i32_0 = arith.constant 0 : i32
    %c0_i32_1 = arith.constant 0 : i32
    return %c0_i32, %c0_i32_0 : i32, i32
  }
  func.func @transform_12(%arg0: i32) -> (i32, i32) {
    %c0_i32 = arith.constant 0 : i32
    %c0_i32_0 = arith.constant 0 : i32
    %c0_i32_1 = arith.constant 0 : i32
    return %c0_i32, %c0_i32_0 : i32, i32
  }
  func.func @transform_13(%arg0: i32) -> (i32, i32) {
    %c0_i32 = arith.constant 0 : i32
    %c0_i32_0 = arith.constant 0 : i32
    %c0_i32_1 = arith.constant 0 : i32
    return %c0_i32, %c0_i32_0 : i32, i32
  }
  func.func @transform_14(%arg0: i32) -> (i32, i32) {
    %c0_i32 = arith.constant 0 : i32
    %c0_i32_0 = arith.constant 0 : i32
    %c0_i32_1 = arith.constant 0 : i32
    return %c0_i32, %c0_i32_0 : i32, i32
  }
  func.func @transform_15(%arg0: i32) -> (i32, i32) {
    %c0_i32 = arith.constant 0 : i32
    %c0_i32_0 = arith.constant 0 : i32
    %c0_i32_1 = arith.constant 0 : i32
    return %c0_i32, %c0_i32_0 : i32, i32
  }
  func.func @transform_16(%arg0: i32) -> (i32, i32) {
    %c0_i32 = arith.constant 0 : i32
    %c0_i32_0 = arith.constant 0 : i32
    %c0_i32_1 = arith.constant 0 : i32
    return %c0_i32, %c0_i32_0 : i32, i32
  }
  func.func @transform_17(%arg0: i32) -> (i32, i32) {
    %c0_i32 = arith.constant 0 : i32
    %c0_i32_0 = arith.constant 0 : i32
    %c0_i32_1 = arith.constant 0 : i32
    return %c0_i32, %c0_i32_0 : i32, i32
  }
  func.func @transform_18(%arg0: i32) -> (i32, i32) {
    %c0_i32 = arith.constant 0 : i32
    %c0_i32_0 = arith.constant 0 : i32
    %c0_i32_1 = arith.constant 0 : i32
    return %c0_i32, %c0_i32_0 : i32, i32
  }
  func.func @transform_19(%arg0: i32) -> (i32, i32, i32) {
    %c0_i32 = arith.constant 0 : i32
    %c0_i32_0 = arith.constant 0 : i32
    %c0_i32_1 = arith.constant 0 : i32
    return %arg0, %c0_i32, %c0_i32_0 : i32, i32, i32
  }
}

</mosaic_0001>

<llo_original>
// kernel: tpu_custom_call.1
$region0: #{tpu_custom_call.1}
  #allocation0 [shape = 'u32[]', space=smem, size = 0x4, offset = 0x4, fixed_abs, tag = 'smem constant byte address 0x4 - core index']
  #allocation1 [shape = 'u32[144,128]{1,0:T(1,128)}', space=vmem, size = 0x12000, scoped, tag = 'internal scratch']
  %s0 = inlined_call_operand.vmem [shape: bf16[2,8,256], index: 0, kind: input, shape index: {}]
  %s1 = inlined_call_operand.vmem [shape: f32[1,256], index: 1, kind: input, shape index: {}]
  %s2 = inlined_call_operand.vmem [shape: bf16[256,192], index: 2, kind: input, shape index: {}]
  %s3 = inlined_call_operand.vmem [shape: bf16[256,80], index: 3, kind: input, shape index: {}]
  %s4 = inlined_call_operand.hbm [shape: f32[1,64], index: 4, kind: input, shape index: {}]
  %s5 = inlined_call_operand.vmem [shape: bf16[128,256], index: 5, kind: input, shape index: {}]
  %s6 = inlined_call_operand.hbm [shape: bf16[256,128], index: 6, kind: input, shape index: {}]
  %s7 = inlined_call_operand.hbm [shape: bf16[128,256], index: 7, kind: input, shape index: {}]
  %s8 = inlined_call_operand.hbm [shape: f32[1,256], index: 8, kind: input, shape index: {}]
  %s9 = inlined_call_operand.vmem [shape: bf16[256,512], index: 9, kind: input, shape index: {}]
  %s10 = inlined_call_operand.hbm [shape: bf16[256,512], index: 10, kind: input, shape index: {}]
  %s11 = inlined_call_operand.hbm [shape: bf16[512,256], index: 11, kind: input, shape index: {}]
  %s12 = inlined_call_operand.vmem [shape: f32[8,64], index: 12, kind: input, shape index: {}]
  %s13 = inlined_call_operand.hbm [shape: f32[8,64], index: 13, kind: input, shape index: {}]
  %s14 = inlined_call_operand.vmem [shape: f32[8,16], index: 14, kind: input, shape index: {}]
  %s15 = inlined_call_operand.hbm [shape: f32[8,16], index: 15, kind: input, shape index: {}]
  %s16 = inlined_call_operand.vmem [shape: bf16[64,64], index: 16, kind: input, shape index: {}]
  %s17 = inlined_call_operand.vmem [shape: bf16[16,16], index: 17, kind: input, shape index: {}]
  %s18 = inlined_call_operand.vmem [shape: f32[8,8], index: 18, kind: input, shape index: {}]
  %s19 = inlined_call_operand.hbm [shape: bf16[2,8,256], index: 19, kind: output, shape index: {}]
  %s20 = sld [smem:[#allocation0]]
  $region141: #{tpu_custom_call.1} parent=0
    _
  %s22 = ssub.s32 1, %s20
  %s23 = scalar_select 0, %s22, %s20
  $region1: #{tpu_custom_call.1} parent=0
    #allocation2 [shape = 'u8[512]{0}', space=vmem, size = 0x400, scoped, tag = 'input window, operand 4, single buffered']
    #allocation3 [shape = 's32[2]{0}', space=sflag, size = 0x8, scoped, tag = 'scoped memory for tpu_custom_call.1']
    #allocation4 [shape = 's32[2]{0}', space=sflag, size = 0x8, scoped, tag = 'scoped memory for tpu_custom_call.1']
    #allocation5 [shape = 'u8[65536]{0}', space=vmem, size = 0x10000, scoped, tag = 'input window, operand 6, single buffered']
    #allocation6 [shape = 's32[1]{0}', space=sflag, size = 0x4, scoped, tag = 'scoped memory for tpu_custom_call.1']
    #allocation7 [shape = 'u8[65536]{0}', space=vmem, size = 0x10000, scoped, tag = 'input window, operand 7, single buffered']
    #allocation8 [shape = 'u8[1024]{0}', space=vmem, size = 0x400, scoped, tag = 'input window, operand 8, single buffered']
    #allocation9 [shape = 's32[1]{0}', space=sflag, size = 0x4, scoped, tag = 'scoped memory for tpu_custom_call.1']
    #allocation10 [shape = 'u8[262144]{0}', space=vmem, size = 0x40000, scoped, tag = 'input window, operand 10, single buffered']
    #allocation11 [shape = 'u8[262144]{0}', space=vmem, size = 0x40000, scoped, tag = 'input window, operand 11, single buffered']
    #allocation12 [shape = 's32[1]{0}', space=sflag, size = 0x4, scoped, tag = 'scoped memory for tpu_custom_call.1']
    #allocation13 [shape = 'u8[4096]{0}', space=vmem, size = 0x1000, scoped, tag = 'input window, operand 13, single buffered']
    #allocation14 [shape = 'u8[4096]{0}', space=vmem, size = 0x1000, scoped, tag = 'input window, operand 15, single buffered']
    #allocation15 [shape = 's32[1]{0}', space=sflag, size = 0x4, scoped, tag = 'scoped memory for tpu_custom_call.1']
    #allocation16 [shape = 'u8[8192]{0}', space=vmem, size = 0x2000, scoped, tag = 'output window, operand 0']
    %24 = vsyncpa [#allocation3], 0
    %25 = vsyncpa [#allocation6], 0
    %26 = vsyncpa [#allocation9], 0
    %27 = vsyncpa [#allocation12], 0
    %28 = vsyncpa [#allocation15], 0
    %29 = vsyncpa [#allocation4], 0
    %s30 = scalar_lea.sflag [#allocation4], 1
    %31 = vsyncpa %s30, 0
    loop: start=0, step=1, limit=4
    $region2: #{tpu_custom_call.1} parent=1 // loop_pre_header
      _
    $region3: #{tpu_custom_call.1} parent=1 // loop_header
      %s33 = sphi 0, %s37
      %p34 = scmp.ge.s32.totalorder %s33, 4
      %s43 = sphi 0, %s45
      %s46 = sphi 0, %s43
      %s47 = sphi 0, %s46
      %s63 = sphi 0, %s47
      %s67 = sphi 0, %s67
      %s69 = sphi 0, %s67
      %s70 = sphi 0, %s69
      %s84 = sphi 0, %s70
      %s88 = sphi 0, %s88
      %s90 = sphi 0, %s88
      %s91 = sphi 0, %s90
      %s105 = sphi 0, %s91
      %s109 = sphi 0, %s109
      %s111 = sphi 0, %s109
      %s112 = sphi 0, %s111
      %s126 = sphi 0, %s112
      %s130 = sphi 0, %s130
      %s132 = sphi 0, %s130
      %s133 = sphi 0, %s132
      %s147 = sphi 0, %s133
      %s151 = sphi 0, %s151
      %s153 = sphi 0, %s151
      %s154 = sphi 0, %s153
      %s168 = sphi 0, %s154
      %s172 = sphi 0, %s172
      %s174 = sphi 0, %s172
      %s175 = sphi 0, %s174
      %s189 = sphi 0, %s175
      %s193 = sphi 0, %s193
      %s195 = sphi 0, %s193
      %s196 = sphi 0, %s195
      %s210 = sphi 0, %s196
      %s214 = sphi 0, %s214
      %s216 = sphi 0, %s214
      %s217 = sphi 0, %s216
      %s231 = sphi 0, %s217
      %s235 = sphi 0, %s235
      %s237 = sphi 0, %s235
      %s238 = sphi 0, %s237
      %s252 = sphi 0, %s238
      %s256 = sphi 0, %s256
      %s258 = sphi 0, %s256
      %s259 = sphi 0, %s258
      %s273 = sphi 0, %s259
      %s277 = sphi 0, %s277
      %s279 = sphi 0, %s277
      %s280 = sphi 0, %s279
      %s294 = sphi 0, %s280
      %s298 = sphi 0, %s298
      %s300 = sphi 0, %s298
      %s301 = sphi 0, %s300
      %s315 = sphi 0, %s301
      %s319 = sphi 0, %s319
      %s321 = sphi 0, %s319
      %s322 = sphi 0, %s321
      %s336 = sphi 0, %s322
      %s340 = sphi 0, %s340
      %s342 = sphi 0, %s340
      %s343 = sphi 0, %s342
      %s357 = sphi 0, %s343
      %s361 = sphi 0, %s361
      %s363 = sphi 0, %s361
      %s364 = sphi 0, %s363
      %s378 = sphi 0, %s364
      %s382 = sphi 0, %s382
      %s384 = sphi 0, %s382
      %s385 = sphi 0, %s384
      %s399 = sphi 0, %s385
      %s403 = sphi 0, %s403
      %s405 = sphi 0, %s403
      %s406 = sphi 0, %s405
      %s420 = sphi 0, %s406
      %s424 = sphi 0, %s424
      %s426 = sphi 0, %s424
      %s427 = sphi 0, %s426
      %s441 = sphi 0, %s427
      %s447 = sphi 0, %s449
      %s450 = sphi 0, %s447
      %s451 = sphi 0, %s450
      %s467 = sphi 0, %s451
    $region4: #{tpu_custom_call.1} parent=1 // loop_header_branch
      %36 = sbr.rel (%p34) target = $region8
    $region5: #{tpu_custom_call.1} parent=1 // loop_body
      %s38 = ssub.s32 %s33, 1
      %s39 = ssub.s32 %s33, 2
      %s40 = sadd.s32 %s33, 1
      %s41 = ssub.s32 %s33, %s40
      %p42 = scmp.eq.s32.totalorder %s41, 0
      %s44 = sadd.s32 %s43, 1
      %s45 = scalar_select %p42, %s43, %s44
      %p48 = pneg %p42
      %p49 = scmp.eq.s32.totalorder %s33, 1
      %p50 = por %p48, %p49
      %p51 = scmp.ne.s32.totalorder %s43, %s46
      %p52 = scmp.eq.s32.totalorder %s33, 0
      %p53 = por %p51, %p52
      %p54 = scmp.ne.s32.totalorder %s43, %s46
      %p55 = scmp.eq.s32.totalorder %s38, 1
      %p56 = por %p54, %p55
      %p57 = scmp.ne.s32.totalorder %s46, %s47
      %p58 = scmp.eq.s32.totalorder %s38, 0
      %p59 = por %p57, %p58
      %p60 = scmp.ne.s32.totalorder %s46, %s47
      %p61 = scmp.eq.s32.totalorder %s39, 1
      %p62 = por %p60, %p61
      %p64 = scmp.ne.s32.totalorder %s47, %s63
      %p65 = scmp.eq.s32.totalorder %s39, 0
      %p66 = por %p64, %p65
      %s68 = sadd.s32 %s67, 1
      %p71 = scmp.eq.s32.totalorder %s33, 1
      %p72 = scmp.ne.s32.totalorder %s67, %s69
      %p73 = scmp.eq.s32.totalorder %s33, 0
      %p74 = por %p72, %p73
      %p75 = scmp.ne.s32.totalorder %s67, %s69
      %p76 = scmp.eq.s32.totalorder %s38, 1
      %p77 = por %p75, %p76
      %p78 = scmp.ne.s32.totalorder %s69, %s70
      %p79 = scmp.eq.s32.totalorder %s38, 0
      %p80 = por %p78, %p79
      %p81 = scmp.ne.s32.totalorder %s69, %s70
      %p82 = scmp.eq.s32.totalorder %s39, 1
      %p83 = por %p81, %p82
      %p85 = scmp.ne.s32.totalorder %s70, %s84
      %p86 = scmp.eq.s32.totalorder %s39, 0
      %p87 = por %p85, %p86
      %s89 = sadd.s32 %s88, 1
      %p92 = scmp.eq.s32.totalorder %s33, 1
      %p93 = scmp.ne.s32.totalorder %s88, %s90
      %p94 = scmp.eq.s32.totalorder %s33, 0
      %p95 = por %p93, %p94
      %p96 = scmp.ne.s32.totalorder %s88, %s90
      %p97 = scmp.eq.s32.totalorder %s38, 1
      %p98 = por %p96, %p97
      %p99 = scmp.ne.s32.totalorder %s90, %s91
      %p100 = scmp.eq.s32.totalorder %s38, 0
      %p101 = por %p99, %p100
      %p102 = scmp.ne.s32.totalorder %s90, %s91
      %p103 = scmp.eq.s32.totalorder %s39, 1
      %p104 = por %p102, %p103
      %p106 = scmp.ne.s32.totalorder %s91, %s105
      %p107 = scmp.eq.s32.totalorder %s39, 0
      %p108 = por %p106, %p107
      %s110 = sadd.s32 %s109, 1
      %p113 = scmp.eq.s32.totalorder %s33, 1
      %p114 = scmp.ne.s32.totalorder %s109, %s111
      %p115 = scmp.eq.s32.totalorder %s33, 0
      %p116 = por %p114, %p115
      %p117 = scmp.ne.s32.totalorder %s109, %s111
      %p118 = scmp.eq.s32.totalorder %s38, 1
      %p119 = por %p117, %p118
      %p120 = scmp.ne.s32.totalorder %s111, %s112
      %p121 = scmp.eq.s32.totalorder %s38, 0
      %p122 = por %p120, %p121
      %p123 = scmp.ne.s32.totalorder %s111, %s112
      %p124 = scmp.eq.s32.totalorder %s39, 1
      %p125 = por %p123, %p124
      %p127 = scmp.ne.s32.totalorder %s112, %s126
      %p128 = scmp.eq.s32.totalorder %s39, 0
      %p129 = por %p127, %p128
      %s131 = sadd.s32 %s130, 1
      %p134 = scmp.eq.s32.totalorder %s33, 1
      %p135 = scmp.ne.s32.totalorder %s130, %s132
      %p136 = scmp.eq.s32.totalorder %s33, 0
      %p137 = por %p135, %p136
      %p138 = scmp.ne.s32.totalorder %s130, %s132
      %p139 = scmp.eq.s32.totalorder %s38, 1
      %p140 = por %p138, %p139
      %p141 = scmp.ne.s32.totalorder %s132, %s133
      %p142 = scmp.eq.s32.totalorder %s38, 0
      %p143 = por %p141, %p142
      %p144 = scmp.ne.s32.totalorder %s132, %s133
      %p145 = scmp.eq.s32.totalorder %s39, 1
      %p146 = por %p144, %p145
      %p148 = scmp.ne.s32.totalorder %s133, %s147
      %p149 = scmp.eq.s32.totalorder %s39, 0
      %p150 = por %p148, %p149
      %s152 = sadd.s32 %s151, 1
      %p155 = scmp.eq.s32.totalorder %s33, 1
      %p156 = scmp.ne.s32.totalorder %s151, %s153
      %p157 = scmp.eq.s32.totalorder %s33, 0
      %p158 = por %p156, %p157
      %p159 = scmp.ne.s32.totalorder %s151, %s153
      %p160 = scmp.eq.s32.totalorder %s38, 1
      %p161 = por %p159, %p160
      %p162 = scmp.ne.s32.totalorder %s153, %s154
      %p163 = scmp.eq.s32.totalorder %s38, 0
      %p164 = por %p162, %p163
      %p165 = scmp.ne.s32.totalorder %s153, %s154
      %p166 = scmp.eq.s32.totalorder %s39, 1
      %p167 = por %p165, %p166
      %p169 = scmp.ne.s32.totalorder %s154, %s168
      %p170 = scmp.eq.s32.totalorder %s39, 0
      %p171 = por %p169, %p170
      %s173 = sadd.s32 %s172, 1
      %p176 = scmp.eq.s32.totalorder %s33, 1
      %p177 = scmp.ne.s32.totalorder %s172, %s174
      %p178 = scmp.eq.s32.totalorder %s33, 0
      %p179 = por %p177, %p178
      %p180 = scmp.ne.s32.totalorder %s172, %s174
      %p181 = scmp.eq.s32.totalorder %s38, 1
      %p182 = por %p180, %p181
      %p183 = scmp.ne.s32.totalorder %s174, %s175
      %p184 = scmp.eq.s32.totalorder %s38, 0
      %p185 = por %p183, %p184
      %p186 = scmp.ne.s32.totalorder %s174, %s175
      %p187 = scmp.eq.s32.totalorder %s39, 1
      %p188 = por %p186, %p187
      %p190 = scmp.ne.s32.totalorder %s175, %s189
      %p191 = scmp.eq.s32.totalorder %s39, 0
      %p192 = por %p190, %p191
      %s194 = sadd.s32 %s193, 1
      %p197 = scmp.eq.s32.totalorder %s33, 1
      %p198 = scmp.ne.s32.totalorder %s193, %s195
      %p199 = scmp.eq.s32.totalorder %s33, 0
      %p200 = por %p198, %p199
      %p201 = scmp.ne.s32.totalorder %s193, %s195
      %p202 = scmp.eq.s32.totalorder %s38, 1
      %p203 = por %p201, %p202
      %p204 = scmp.ne.s32.totalorder %s195, %s196
      %p205 = scmp.eq.s32.totalorder %s38, 0
      %p206 = por %p204, %p205
      %p207 = scmp.ne.s32.totalorder %s195, %s196
      %p208 = scmp.eq.s32.totalorder %s39, 1
      %p209 = por %p207, %p208
      %p211 = scmp.ne.s32.totalorder %s196, %s210
      %p212 = scmp.eq.s32.totalorder %s39, 0
      %p213 = por %p211, %p212
      %s215 = sadd.s32 %s214, 1
      %p218 = scmp.eq.s32.totalorder %s33, 1
      %p219 = scmp.ne.s32.totalorder %s214, %s216
      %p220 = scmp.eq.s32.totalorder %s33, 0
      %p221 = por %p219, %p220
      %p222 = scmp.ne.s32.totalorder %s214, %s216
      %p223 = scmp.eq.s32.totalorder %s38, 1
      %p224 = por %p222, %p223
      %p225 = scmp.ne.s32.totalorder %s216, %s217
      %p226 = scmp.eq.s32.totalorder %s38, 0
      %p227 = por %p225, %p226
      %p228 = scmp.ne.s32.totalorder %s216, %s217
      %p229 = scmp.eq.s32.totalorder %s39, 1
      %p230 = por %p228, %p229
      %p232 = scmp.ne.s32.totalorder %s217, %s231
      %p233 = scmp.eq.s32.totalorder %s39, 0
      %p234 = por %p232, %p233
      %s236 = sadd.s32 %s235, 1
      %p239 = scmp.eq.s32.totalorder %s33, 1
      %p240 = scmp.ne.s32.totalorder %s235, %s237
      %p241 = scmp.eq.s32.totalorder %s33, 0
      %p242 = por %p240, %p241
      %p243 = scmp.ne.s32.totalorder %s235, %s237
      %p244 = scmp.eq.s32.totalorder %s38, 1
      %p245 = por %p243, %p244
      %p246 = scmp.ne.s32.totalorder %s237, %s238
      %p247 = scmp.eq.s32.totalorder %s38, 0
      %p248 = por %p246, %p247
      %p249 = scmp.ne.s32.totalorder %s237, %s238
      %p250 = scmp.eq.s32.totalorder %s39, 1
      %p251 = por %p249, %p250
      %p253 = scmp.ne.s32.totalorder %s238, %s252
      %p254 = scmp.eq.s32.totalorder %s39, 0
      %p255 = por %p253, %p254
      %s257 = sadd.s32 %s256, 1
      %p260 = scmp.eq.s32.totalorder %s33, 1
      %p261 = scmp.ne.s32.totalorder %s256, %s258
      %p262 = scmp.eq.s32.totalorder %s33, 0
      %p263 = por %p261, %p262
      %p264 = scmp.ne.s32.totalorder %s256, %s258
      %p265 = scmp.eq.s32.totalorder %s38, 1
      %p266 = por %p264, %p265
      %p267 = scmp.ne.s32.totalorder %s258, %s259
      %p268 = scmp.eq.s32.totalorder %s38, 0
      %p269 = por %p267, %p268
      %p270 = scmp.ne.s32.totalorder %s258, %s259
      %p271 = scmp.eq.s32.totalorder %s39, 1
      %p272 = por %p270, %p271
      %p274 = scmp.ne.s32.totalorder %s259, %s273
      %p275 = scmp.eq.s32.totalorder %s39, 0
      %p276 = por %p274, %p275
      %s278 = sadd.s32 %s277, 1
      %p281 = scmp.eq.s32.totalorder %s33, 1
      %p282 = scmp.ne.s32.totalorder %s277, %s279
      %p283 = scmp.eq.s32.totalorder %s33, 0
      %p284 = por %p282, %p283
      %p285 = scmp.ne.s32.totalorder %s277, %s279
      %p286 = scmp.eq.s32.totalorder %s38, 1
      %p287 = por %p285, %p286
      %p288 = scmp.ne.s32.totalorder %s279, %s280
      %p289 = scmp.eq.s32.totalorder %s38, 0
      %p290 = por %p288, %p289
      %p291 = scmp.ne.s32.totalorder %s279, %s280
      %p292 = scmp.eq.s32.totalorder %s39, 1
      %p293 = por %p291, %p292
      %p295 = scmp.ne.s32.totalorder %s280, %s294
      %p296 = scmp.eq.s32.totalorder %s39, 0
      %p297 = por %p295, %p296
      %s299 = sadd.s32 %s298, 1
      %p302 = scmp.eq.s32.totalorder %s33, 1
      %p303 = scmp.ne.s32.totalorder %s298, %s300
      %p304 = scmp.eq.s32.totalorder %s33, 0
      %p305 = por %p303, %p304
      %p306 = scmp.ne.s32.totalorder %s298, %s300
      %p307 = scmp.eq.s32.totalorder %s38, 1
      %p308 = por %p306, %p307
      %p309 = scmp.ne.s32.totalorder %s300, %s301
      %p310 = scmp.eq.s32.totalorder %s38, 0
      %p311 = por %p309, %p310
      %p312 = scmp.ne.s32.totalorder %s300, %s301
      %p313 = scmp.eq.s32.totalorder %s39, 1
      %p314 = por %p312, %p313
      %p316 = scmp.ne.s32.totalorder %s301, %s315
      %p317 = scmp.eq.s32.totalorder %s39, 0
      %p318 = por %p316, %p317
      %s320 = sadd.s32 %s319, 1
      %p323 = scmp.eq.s32.totalorder %s33, 1
      %p324 = scmp.ne.s32.totalorder %s319, %s321
      %p325 = scmp.eq.s32.totalorder %s33, 0
      %p326 = por %p324, %p325
      %p327 = scmp.ne.s32.totalorder %s319, %s321
      %p328 = scmp.eq.s32.totalorder %s38, 1
      %p329 = por %p327, %p328
      %p330 = scmp.ne.s32.totalorder %s321, %s322
      %p331 = scmp.eq.s32.totalorder %s38, 0
      %p332 = por %p330, %p331
      %p333 = scmp.ne.s32.totalorder %s321, %s322
      %p334 = scmp.eq.s32.totalorder %s39, 1
      %p335 = por %p333, %p334
      %p337 = scmp.ne.s32.totalorder %s322, %s336
      %p338 = scmp.eq.s32.totalorder %s39, 0
      %p339 = por %p337, %p338
      %s341 = sadd.s32 %s340, 1
      %p344 = scmp.eq.s32.totalorder %s33, 1
      %p345 = scmp.ne.s32.totalorder %s340, %s342
      %p346 = scmp.eq.s32.totalorder %s33, 0
      %p347 = por %p345, %p346
      %p348 = scmp.ne.s32.totalorder %s340, %s342
      %p349 = scmp.eq.s32.totalorder %s38, 1
      %p350 = por %p348, %p349
      %p351 = scmp.ne.s32.totalorder %s342, %s343
      %p352 = scmp.eq.s32.totalorder %s38, 0
      %p353 = por %p351, %p352
      %p354 = scmp.ne.s32.totalorder %s342, %s343
      %p355 = scmp.eq.s32.totalorder %s39, 1
      %p356 = por %p354, %p355
      %p358 = scmp.ne.s32.totalorder %s343, %s357
      %p359 = scmp.eq.s32.totalorder %s39, 0
      %p360 = por %p358, %p359
      %s362 = sadd.s32 %s361, 1
      %p365 = scmp.eq.s32.totalorder %s33, 1
      %p366 = scmp.ne.s32.totalorder %s361, %s363
      %p367 = scmp.eq.s32.totalorder %s33, 0
      %p368 = por %p366, %p367
      %p369 = scmp.ne.s32.totalorder %s361, %s363
      %p370 = scmp.eq.s32.totalorder %s38, 1
      %p371 = por %p369, %p370
      %p372 = scmp.ne.s32.totalorder %s363, %s364
      %p373 = scmp.eq.s32.totalorder %s38, 0
      %p374 = por %p372, %p373
      %p375 = scmp.ne.s32.totalorder %s363, %s364
      %p376 = scmp.eq.s32.totalorder %s39, 1
      %p377 = por %p375, %p376
      %p379 = scmp.ne.s32.totalorder %s364, %s378
      %p380 = scmp.eq.s32.totalorder %s39, 0
      %p381 = por %p379, %p380
      %s383 = sadd.s32 %s382, 1
      %p386 = scmp.eq.s32.totalorder %s33, 1
      %p387 = scmp.ne.s32.totalorder %s382, %s384
      %p388 = scmp.eq.s32.totalorder %s33, 0
      %p389 = por %p387, %p388
      %p390 = scmp.ne.s32.totalorder %s382, %s384
      %p391 = scmp.eq.s32.totalorder %s38, 1
      %p392 = por %p390, %p391
      %p393 = scmp.ne.s32.totalorder %s384, %s385
      %p394 = scmp.eq.s32.totalorder %s38, 0
      %p395 = por %p393, %p394
      %p396 = scmp.ne.s32.totalorder %s384, %s385
      %p397 = scmp.eq.s32.totalorder %s39, 1
      %p398 = por %p396, %p397
      %p400 = scmp.ne.s32.totalorder %s385, %s399
      %p401 = scmp.eq.s32.totalorder %s39, 0
      %p402 = por %p400, %p401
      %s404 = sadd.s32 %s403, 1
      %p407 = scmp.eq.s32.totalorder %s33, 1
      %p408 = scmp.ne.s32.totalorder %s403, %s405
      %p409 = scmp.eq.s32.totalorder %s33, 0
      %p410 = por %p408, %p409
      %p411 = scmp.ne.s32.totalorder %s403, %s405
      %p412 = scmp.eq.s32.totalorder %s38, 1
      %p413 = por %p411, %p412
      %p414 = scmp.ne.s32.totalorder %s405, %s406
      %p415 = scmp.eq.s32.totalorder %s38, 0
      %p416 = por %p414, %p415
      %p417 = scmp.ne.s32.totalorder %s405, %s406
      %p418 = scmp.eq.s32.totalorder %s39, 1
      %p419 = por %p417, %p418
      %p421 = scmp.ne.s32.totalorder %s406, %s420
      %p422 = scmp.eq.s32.totalorder %s39, 0
      %p423 = por %p421, %p422
      %s425 = sadd.s32 %s424, 1
      %p428 = scmp.eq.s32.totalorder %s33, 1
      %p429 = scmp.ne.s32.totalorder %s424, %s426
      %p430 = scmp.eq.s32.totalorder %s33, 0
      %p431 = por %p429, %p430
      %p432 = scmp.ne.s32.totalorder %s424, %s426
      %p433 = scmp.eq.s32.totalorder %s38, 1
      %p434 = por %p432, %p433
      %p435 = scmp.ne.s32.totalorder %s426, %s427
      %p436 = scmp.eq.s32.totalorder %s38, 0
      %p437 = por %p435, %p436
      %p438 = scmp.ne.s32.totalorder %s426, %s427
      %p439 = scmp.eq.s32.totalorder %s39, 1
      %p440 = por %p438, %p439
      %p442 = scmp.ne.s32.totalorder %s427, %s441
      %p443 = scmp.eq.s32.totalorder %s39, 0
      %p444 = por %p442, %p443
      %s445 = ssub.s32 %s33, %s40
      %p446 = scmp.eq.s32.totalorder %s445, 0
      %s448 = sadd.s32 %s447, 1
      %s449 = scalar_select %p446, %s447, %s448
      %p452 = pneg %p446
      %p453 = scmp.eq.s32.totalorder %s33, 1
      %p454 = por %p452, %p453
      %p455 = scmp.ne.s32.totalorder %s447, %s450
      %p456 = scmp.eq.s32.totalorder %s33, 0
      %p457 = por %p455, %p456
      %p458 = scmp.ne.s32.totalorder %s447, %s450
      %p459 = scmp.eq.s32.totalorder %s38, 1
      %p460 = por %p458, %p459
      %p461 = scmp.ne.s32.totalorder %s450, %s451
      %p462 = scmp.eq.s32.totalorder %s38, 0
      %p463 = por %p461, %p462
      %p464 = scmp.ne.s32.totalorder %s450, %s451
      %p465 = scmp.eq.s32.totalorder %s39, 1
      %p466 = por %p464, %p465
      %p468 = scmp.ne.s32.totalorder %s451, %s467
      %p469 = scmp.eq.s32.totalorder %s39, 0
      %p470 = por %p468, %p469
      %p471 = scmp.le.s32.totalorder 1, %s33
      %p472 = scmp.lt.s32.totalorder %s33, 3
      %p473 = pnand %p471, %p472
      %p474 = pneg %p473
      // Predicated region
      $region9: #{tpu_custom_call.1} parent=5 // pred_check
        _
      $region10: #{tpu_custom_call.1} parent=5 // pred_check_branch
        %476 = sbr.rel (%p473) target = $region12
      $region11: #{tpu_custom_call.1} parent=5 // pred_region
        %s477 = ssub.s32 %s33, 1
        // Predicated region
        $region13: #{tpu_custom_call.1} parent=11 // pred_check
          %p478 = pneg %p80
        $region14: #{tpu_custom_call.1} parent=11 // pred_check_branch
          %480 = sbr.rel (%p478) target = $region16
        $region15: #{tpu_custom_call.1} parent=11 // pred_region
          _
        $region16: #{tpu_custom_call.1} parent=11 // pred_fallthru
          _
        // Predicated region
        $region17: #{tpu_custom_call.1} parent=11 // pred_check
          %p481 = pneg %p101
        $region18: #{tpu_custom_call.1} parent=11 // pred_check_branch
          %483 = sbr.rel (%p481) target = $region20
        $region19: #{tpu_custom_call.1} parent=11 // pred_region
          _
        $region20: #{tpu_custom_call.1} parent=11 // pred_fallthru
          _
        // Predicated region
        $region21: #{tpu_custom_call.1} parent=11 // pred_check
          %p484 = pneg %p122
        $region22: #{tpu_custom_call.1} parent=11 // pred_check_branch
          %486 = sbr.rel (%p484) target = $region24
        $region23: #{tpu_custom_call.1} parent=11 // pred_region
          _
        $region24: #{tpu_custom_call.1} parent=11 // pred_fallthru
          _
        // Predicated region
        $region25: #{tpu_custom_call.1} parent=11 // pred_check
          %p487 = pneg %p143
        $region26: #{tpu_custom_call.1} parent=11 // pred_check_branch
          %489 = sbr.rel (%p487) target = $region28
        $region27: #{tpu_custom_call.1} parent=11 // pred_region
          %s491 = ssub.s32 16, 16
          %492 = vsyncadd [#allocation3], %s491
          %s494 = sshll.u32 [#allocation2], 4
          %s495 = int_to_ptr.vmem [resolvable:$true] %s494
          %497 = dma.hbm_to_vmem [thread:$0]  %s4, 16, %s495, [#allocation3]
        $region28: #{tpu_custom_call.1} parent=11 // pred_fallthru
          _
        // Predicated region
        $region29: #{tpu_custom_call.1} parent=11 // pred_check
          %p498 = pneg %p164
        $region30: #{tpu_custom_call.1} parent=11 // pred_check_branch
          %500 = sbr.rel (%p498) target = $region32
        $region31: #{tpu_custom_call.1} parent=11 // pred_region
          _
        $region32: #{tpu_custom_call.1} parent=11 // pred_fallthru
          _
        // Predicated region
        $region33: #{tpu_custom_call.1} parent=11 // pred_check
          %p501 = pneg %p185
        $region34: #{tpu_custom_call.1} parent=11 // pred_check_branch
          %503 = sbr.rel (%p501) target = $region36
        $region35: #{tpu_custom_call.1} parent=11 // pred_region
          %s505 = ssub.s32 2048, 2048
          %506 = vsyncadd [#allocation6], %s505
          %s507 = sshll.u32 [#allocation5], 4
          %s508 = int_to_ptr.vmem [resolvable:$true] %s507
          %513 = dma.hbm_to_vmem [thread:$0]  %s6, 2048, %s508, [#allocation6], 64, 64, 4
        $region36: #{tpu_custom_call.1} parent=11 // pred_fallthru
          _
        // Predicated region
        $region37: #{tpu_custom_call.1} parent=11 // pred_check
          %p514 = pneg %p206
        $region38: #{tpu_custom_call.1} parent=11 // pred_check_branch
          %516 = sbr.rel (%p514) target = $region40
        $region39: #{tpu_custom_call.1} parent=11 // pred_region
          %s518 = ssub.s32 2048, 2048
          %519 = vsyncadd [#allocation6], %s518
          %s520 = sshll.u32 [#allocation7], 4
          %s521 = int_to_ptr.vmem [resolvable:$true] %s520
          %526 = dma.hbm_to_vmem [thread:$0]  %s7, 2048, %s521, [#allocation6], 128, 128, 8
        $region40: #{tpu_custom_call.1} parent=11 // pred_fallthru
          _
        // Predicated region
        $region41: #{tpu_custom_call.1} parent=11 // pred_check
          %p527 = pneg %p227
        $region42: #{tpu_custom_call.1} parent=11 // pred_check_branch
          %529 = sbr.rel (%p527) target = $region44
        $region43: #{tpu_custom_call.1} parent=11 // pred_region
          %s531 = ssub.s32 32, 32
          %532 = vsyncadd [#allocation9], %s531
          %s534 = sshll.u32 [#allocation8], 4
          %s535 = int_to_ptr.vmem [resolvable:$true] %s534
          %537 = dma.hbm_to_vmem [thread:$0]  %s8, 32, %s535, [#allocation9]
        $region44: #{tpu_custom_call.1} parent=11 // pred_fallthru
          _
        // Predicated region
        $region45: #{tpu_custom_call.1} parent=11 // pred_check
          %p538 = pneg %p248
        $region46: #{tpu_custom_call.1} parent=11 // pred_check_branch
          %540 = sbr.rel (%p538) target = $region48
        $region47: #{tpu_custom_call.1} parent=11 // pred_region
          _
        $region48: #{tpu_custom_call.1} parent=11 // pred_fallthru
          _
        // Predicated region
        $region49: #{tpu_custom_call.1} parent=11 // pred_check
          %p541 = pneg %p269
        $region50: #{tpu_custom_call.1} parent=11 // pred_check_branch
          %543 = sbr.rel (%p541) target = $region52
        $region51: #{tpu_custom_call.1} parent=11 // pred_region
          %s545 = ssub.s32 8192, 8192
          %546 = vsyncadd [#allocation9], %s545
          %s547 = sshll.u32 [#allocation10], 4
          %s548 = int_to_ptr.vmem [resolvable:$true] %s547
          %553 = dma.hbm_to_vmem [thread:$0]  %s10, 8192, %s548, [#allocation9], 256, 256, 16
        $region52: #{tpu_custom_call.1} parent=11 // pred_fallthru
          _
        // Predicated region
        $region53: #{tpu_custom_call.1} parent=11 // pred_check
          %p554 = pneg %p290
        $region54: #{tpu_custom_call.1} parent=11 // pred_check_branch
          %556 = sbr.rel (%p554) target = $region56
        $region55: #{tpu_custom_call.1} parent=11 // pred_region
          %s558 = ssub.s32 8192, 8192
          %559 = vsyncadd [#allocation12], %s558
          %s560 = sshll.u32 [#allocation11], 4
          %s561 = int_to_ptr.vmem [resolvable:$true] %s560
          %566 = dma.hbm_to_vmem [thread:$0]  %s11, 8192, %s561, [#allocation12], 128, 128, 8
        $region56: #{tpu_custom_call.1} parent=11 // pred_fallthru
          _
        // Predicated region
        $region57: #{tpu_custom_call.1} parent=11 // pred_check
          %p567 = pneg %p311
        $region58: #{tpu_custom_call.1} parent=11 // pred_check_branch
          %569 = sbr.rel (%p567) target = $region60
        $region59: #{tpu_custom_call.1} parent=11 // pred_region
          _
        $region60: #{tpu_custom_call.1} parent=11 // pred_fallthru
          _
        // Predicated region
        $region61: #{tpu_custom_call.1} parent=11 // pred_check
          %p570 = pneg %p332
        $region62: #{tpu_custom_call.1} parent=11 // pred_check_branch
          %572 = sbr.rel (%p570) target = $region64
        $region63: #{tpu_custom_call.1} parent=11 // pred_region
          %s574 = ssub.s32 128, 128
          %575 = vsyncadd [#allocation12], %s574
          %s577 = sshll.u32 [#allocation13], 4
          %s578 = int_to_ptr.vmem [resolvable:$true] %s577
          %580 = dma.hbm_to_vmem [thread:$0]  %s13, 128, %s578, [#allocation12]
        $region64: #{tpu_custom_call.1} parent=11 // pred_fallthru
          _
        // Predicated region
        $region65: #{tpu_custom_call.1} parent=11 // pred_check
          %p581 = pneg %p353
        $region66: #{tpu_custom_call.1} parent=11 // pred_check_branch
          %583 = sbr.rel (%p581) target = $region68
        $region67: #{tpu_custom_call.1} parent=11 // pred_region
          _
        $region68: #{tpu_custom_call.1} parent=11 // pred_fallthru
          _
        // Predicated region
        $region69: #{tpu_custom_call.1} parent=11 // pred_check
          %p584 = pneg %p374
        $region70: #{tpu_custom_call.1} parent=11 // pred_check_branch
          %586 = sbr.rel (%p584) target = $region72
        $region71: #{tpu_custom_call.1} parent=11 // pred_region
          %s588 = ssub.s32 128, 128
          %589 = vsyncadd [#allocation15], %s588
          %s591 = sshll.u32 [#allocation14], 4
          %s592 = int_to_ptr.vmem [resolvable:$true] %s591
          %594 = dma.hbm_to_vmem [thread:$0]  %s15, 128, %s592, [#allocation15]
        $region72: #{tpu_custom_call.1} parent=11 // pred_fallthru
          _
        // Predicated region
        $region73: #{tpu_custom_call.1} parent=11 // pred_check
          %p595 = pneg %p395
        $region74: #{tpu_custom_call.1} parent=11 // pred_check_branch
          %597 = sbr.rel (%p595) target = $region76
        $region75: #{tpu_custom_call.1} parent=11 // pred_region
          _
        $region76: #{tpu_custom_call.1} parent=11 // pred_fallthru
          _
        // Predicated region
        $region77: #{tpu_custom_call.1} parent=11 // pred_check
          %p598 = pneg %p416
        $region78: #{tpu_custom_call.1} parent=11 // pred_check_branch
          %600 = sbr.rel (%p598) target = $region80
        $region79: #{tpu_custom_call.1} parent=11 // pred_region
          _
        $region80: #{tpu_custom_call.1} parent=11 // pred_fallthru
          _
        // Predicated region
        $region81: #{tpu_custom_call.1} parent=11 // pred_check
          %p601 = pneg %p437
        $region82: #{tpu_custom_call.1} parent=11 // pred_check_branch
          %603 = sbr.rel (%p601) target = $region84
        $region83: #{tpu_custom_call.1} parent=11 // pred_region
          _
        $region84: #{tpu_custom_call.1} parent=11 // pred_fallthru
          _
      $region12: #{tpu_custom_call.1} parent=5 // pred_fallthru
        _
      %p604 = scmp.lt.s32.totalorder %s33, 2
      // Predicated region
      $region85: #{tpu_custom_call.1} parent=5 // pred_check
        %p605 = pneg %p604
      $region86: #{tpu_custom_call.1} parent=5 // pred_check_branch
        %607 = sbr.rel (%p605) target = $region88
      $region87: #{tpu_custom_call.1} parent=5 // pred_region
        // Predicated region
        $region89: #{tpu_custom_call.1} parent=87 // pred_check
          %p608 = pneg %p53
        $region90: #{tpu_custom_call.1} parent=87 // pred_check_branch
          %610 = sbr.rel (%p608) target = $region92
        $region91: #{tpu_custom_call.1} parent=87 // pred_region
          %p611 = scmp.lt.s32.totalorder %s33, 1
          %s612 = scalar_select %p611, %s33, 1
          %s613 = smul.addr %s612, 2
          %s614 = smul.addr %s613, 4
          %s615 = scalar_lea.vmem %s0, %s614
        $region92: #{tpu_custom_call.1} parent=87 // pred_fallthru
          _
      $region88: #{tpu_custom_call.1} parent=5 // pred_fallthru
        _
      %p616 = scmp.le.s32.totalorder 1, %s33
      %p617 = scmp.lt.s32.totalorder %s33, 3
      %p618 = pnand %p616, %p617
      %p619 = pneg %p618
      // Predicated region
      $region93: #{tpu_custom_call.1} parent=5 // pred_check
        _
      $region94: #{tpu_custom_call.1} parent=5 // pred_check_branch
        %621 = sbr.rel (%p618) target = $region96
      $region95: #{tpu_custom_call.1} parent=5 // pred_region
        %s622 = ssub.s32 %s33, 1
        // Predicated region
        $region97: #{tpu_custom_call.1} parent=95 // pred_check
          %p623 = pneg %p143
        $region98: #{tpu_custom_call.1} parent=95 // pred_check_branch
          %625 = sbr.rel (%p623) target = $region100
        $region99: #{tpu_custom_call.1} parent=95 // pred_region
          %626 = dma.done [#allocation3], 16
        $region100: #{tpu_custom_call.1} parent=95 // pred_fallthru
          _
        // Predicated region
        $region101: #{tpu_custom_call.1} parent=95 // pred_check
          %p627 = pneg %p185
        $region102: #{tpu_custom_call.1} parent=95 // pred_check_branch
          %629 = sbr.rel (%p627) target = $region104
        $region103: #{tpu_custom_call.1} parent=95 // pred_region
          %630 = dma.done [#allocation6], 2048
        $region104: #{tpu_custom_call.1} parent=95 // pred_fallthru
          _
        // Predicated region
        $region105: #{tpu_custom_call.1} parent=95 // pred_check
          %p631 = pneg %p206
        $region106: #{tpu_custom_call.1} parent=95 // pred_check_branch
          %633 = sbr.rel (%p631) target = $region108
        $region107: #{tpu_custom_call.1} parent=95 // pred_region
          %634 = dma.done [#allocation6], 2048
        $region108: #{tpu_custom_call.1} parent=95 // pred_fallthru
          _
        // Predicated region
        $region109: #{tpu_custom_call.1} parent=95 // pred_check
          %p635 = pneg %p227
        $region110: #{tpu_custom_call.1} parent=95 // pred_check_branch
          %637 = sbr.rel (%p635) target = $region112
        $region111: #{tpu_custom_call.1} parent=95 // pred_region
          %638 = dma.done [#allocation9], 32
        $region112: #{tpu_custom_call.1} parent=95 // pred_fallthru
          _
        // Predicated region
        $region113: #{tpu_custom_call.1} parent=95 // pred_check
          %p639 = pneg %p269
        $region114: #{tpu_custom_call.1} parent=95 // pred_check_branch
          %641 = sbr.rel (%p639) target = $region116
        $region115: #{tpu_custom_call.1} parent=95 // pred_region
          %642 = dma.done [#allocation9], 8192
        $region116: #{tpu_custom_call.1} parent=95 // pred_fallthru
          _
        // Predicated region
        $region117: #{tpu_custom_call.1} parent=95 // pred_check
          %p643 = pneg %p290
        $region118: #{tpu_custom_call.1} parent=95 // pred_check_branch
          %645 = sbr.rel (%p643) target = $region120
        $region119: #{tpu_custom_call.1} parent=95 // pred_region
          %646 = dma.done [#allocation12], 8192
        $region120: #{tpu_custom_call.1} parent=95 // pred_fallthru
          _
        // Predicated region
        $region121: #{tpu_custom_call.1} parent=95 // pred_check
          %p647 = pneg %p332
        $region122: #{tpu_custom_call.1} parent=95 // pred_check_branch
          %649 = sbr.rel (%p647) target = $region124
        $region123: #{tpu_custom_call.1} parent=95 // pred_region
          %650 = dma.done [#allocation12], 128
        $region124: #{tpu_custom_call.1} parent=95 // pred_fallthru
          _
        // Predicated region
        $region125: #{tpu_custom_call.1} parent=95 // pred_check
          %p651 = pneg %p374
        $region126: #{tpu_custom_call.1} parent=95 // pred_check_branch
          %653 = sbr.rel (%p651) target = $region128
        $region127: #{tpu_custom_call.1} parent=95 // pred_region
          %654 = dma.done [#allocation15], 128
        $region128: #{tpu_custom_call.1} parent=95 // pred_fallthru
          _
        %p655 = scmp.lt.s32.totalorder %s38, 1
        %s656 = scalar_select %p655, %s38, 1
        %s657 = smul.addr %s656, 2
        %s658 = smul.addr %s657, 4
        %s659 = scalar_lea.vmem %s0, %s658
        %p660 = pneg %p59
        %p661 = pneg %p56
        %p662 = pneg %p80
        %p663 = pneg %p77
        %p664 = pneg %p101
        %p665 = pneg %p98
        %p666 = pneg %p122
        %p667 = pneg %p119
        %p668 = pneg %p143
        %p669 = pneg %p140
        %p670 = pneg %p164
        %p671 = pneg %p161
        %p672 = pneg %p185
        %p673 = pneg %p182
        %p674 = pneg %p206
        %p675 = pneg %p203
        %p676 = pneg %p227
        %p677 = pneg %p224
        %p678 = pneg %p248
        %p679 = pneg %p245
        %p680 = pneg %p269
        %p681 = pneg %p266
        %p682 = pneg %p290
        %p683 = pneg %p287
        %p684 = pneg %p311
        %p685 = pneg %p308
        %p686 = pneg %p332
        %p687 = pneg %p329
        %p688 = pneg %p353
        %p689 = pneg %p350
        %p690 = pneg %p374
        %p691 = pneg %p371
        %p692 = pneg %p395
        %p693 = pneg %p392
        %p694 = pneg %p416
        %p695 = pneg %p413
        %p696 = pneg %p437
        %p697 = pneg %p434
        %p698 = pneg %p463
        %p699 = pneg %p460
        %s700 = sand.u32 %s450, 1
        %s701 = scalar_lea.sflag [#allocation4], %s700
        %s702 = sand.u32 %s450, 1
        %s703 = smul.addr %s702, 8
        %s704 = scalar_lea.vmem [#allocation16], %s703
        %p705 = scmp.lt.s32.totalorder %s38, 1
        %s706 = scalar_select %p705, %s38, 1
        %s707 = smul.addr %s706, 2
        %s708 = smul.addr %s707, 4
        %s709 = scalar_lea.vmem %s0, %s708
        %v711 = vld [vmem:[%s709] sm:$0xff]
        %v712 = vld [vmem:[%s1] sm:$0x3]
        %v713 = vunpack.c.l.bf16 %v711
        %v714 = vunpack.c.h.bf16 %v711
        %v715 = vmul.f32 %v713, %v713
        %v716 = vmul.f32 %v714, %v714
        %v717 = vadd.f32 %v715, %v716
        %718 = vadd.xlane.f32.xlu0 %v717
        %v719 = vpop.xlane.xlu0 %718
        %v720 = vrcp.pop 256.0
        %v721 = vmul.f32 %v719, %v720
        %v722 = vadd.f32 %v721, 1e-06
        %v723 = vrsqrt.pop %v722
        %v724 = vmul.f32 %v713, %v723
        %v725 = vmul.f32 %v714, %v723
        %v727 = vlaneseq
        %v728 = vshrl.u32 %v727, 7
        %v729 = vsub.s32 0, %v728
        %v730 = vrot.slane %v712, %v729
        %v731 = vlaneseq
        %v732 = vshrl.u32 %v731, 7
        %v733 = vsub.s32 1, %v732
        %v734 = vrot.slane %v712, %v733
        %v737 = vmul.f32 %v724, %v730
        %v738 = vmul.f32 %v725, %v734
        %v739 = vpack.c.bf16 %v737, %v737
        %v740 = vpack.c.bf16 %v738, %v738
        %v741 = vld [vmem:[%s2] sm:$0xff]
        %v742 = vld [vmem:[%s2 + $0x8] sm:$0xff]
        %v743 = vld [vmem:[%s2 + $0x10] sm:$0xff]
        %v744 = vld [vmem:[%s2 + $0x18] sm:$0xff]
        %v745 = vld [vmem:[%s2 + $0x20] sm:$0xff]
        %v746 = vld [vmem:[%s2 + $0x28] sm:$0xff]
        %v747 = vld [vmem:[%s2 + $0x30] sm:$0xff]
        %v748 = vld [vmem:[%s2 + $0x38] sm:$0xff]
        %v749 = vld [vmem:[%s2 + $0x40] sm:$0xff]
        %v750 = vld [vmem:[%s2 + $0x48] sm:$0xff]
        %v751 = vld [vmem:[%s2 + $0x50] sm:$0xff]
        %v752 = vld [vmem:[%s2 + $0x58] sm:$0xff]
        %v753 = vld [vmem:[%s2 + $0x60] sm:$0xff]
        %v754 = vld [vmem:[%s2 + $0x68] sm:$0xff]
        %v755 = vld [vmem:[%s2 + $0x70] sm:$0xff]
        %v756 = vld [vmem:[%s2 + $0x78] sm:$0xff]
        %v757 = vld [vmem:[%s2 + $0x80] sm:$0xff]
        %v758 = vld [vmem:[%s2 + $0x88] sm:$0xff]
        %v759 = vld [vmem:[%s2 + $0x90] sm:$0xff]
        %v760 = vld [vmem:[%s2 + $0x98] sm:$0xff]
        %v761 = vld [vmem:[%s2 + $0xa0] sm:$0xff]
        %v762 = vld [vmem:[%s2 + $0xa8] sm:$0xff]
        %v763 = vld [vmem:[%s2 + $0xb0] sm:$0xff]
        %v764 = vld [vmem:[%s2 + $0xb8] sm:$0xff]
        %v765 = vld [vmem:[%s2 + $0xc0] sm:$0xff]
        %v766 = vld [vmem:[%s2 + $0xc8] sm:$0xff]
        %v767 = vld [vmem:[%s2 + $0xd0] sm:$0xff]
        %v768 = vld [vmem:[%s2 + $0xd8] sm:$0xff]
        %v769 = vld [vmem:[%s2 + $0xe0] sm:$0xff]
        %v770 = vld [vmem:[%s2 + $0xe8] sm:$0xff]
        %v771 = vld [vmem:[%s2 + $0xf0] sm:$0xff]
        %v772 = vld [vmem:[%s2 + $0xf8] sm:$0xff]
        %v805 = vunpack.c.l.b16 %v741
        %v806 = vunpack.c.h.b16 %v741
        %v807 = vunpack.c.l.b16 %v742
        %v808 = vunpack.c.h.b16 %v742
        %v809 = vunpack.c.l.b16 %v743
        %v810 = vunpack.c.h.b16 %v743
        %v811 = vunpack.c.l.b16 %v744
        %v812 = vunpack.c.h.b16 %v744
        %v813 = vunpack.c.l.b16 %v745
        %v814 = vunpack.c.h.b16 %v745
        %v815 = vunpack.c.l.b16 %v746
        %v816 = vunpack.c.h.b16 %v746
        %v817 = vunpack.c.l.b16 %v747
        %v818 = vunpack.c.h.b16 %v747
        %v819 = vunpack.c.l.b16 %v748
        %v820 = vunpack.c.h.b16 %v748
        %v821 = vunpack.c.l.b16 %v749
        %v822 = vunpack.c.h.b16 %v749
        %v823 = vunpack.c.l.b16 %v750
        %v824 = vunpack.c.h.b16 %v750
        %v825 = vunpack.c.l.b16 %v751
        %v826 = vunpack.c.h.b16 %v751
        %v827 = vunpack.c.l.b16 %v752
        %v828 = vunpack.c.h.b16 %v752
        %v829 = vunpack.c.l.b16 %v753
        %v830 = vunpack.c.h.b16 %v753
        %v831 = vunpack.c.l.b16 %v754
        %v832 = vunpack.c.h.b16 %v754
        %v833 = vunpack.c.l.b16 %v755
        %v834 = vunpack.c.h.b16 %v755
        %v835 = vunpack.c.l.b16 %v756
        %v836 = vunpack.c.h.b16 %v756
        %v837 = vunpack.c.l.b16 %v757
        %v838 = vunpack.c.h.b16 %v757
        %v839 = vunpack.c.l.b16 %v758
        %v840 = vunpack.c.h.b16 %v758
        %v841 = vunpack.c.l.b16 %v759
        %v842 = vunpack.c.h.b16 %v759
        %v843 = vunpack.c.l.b16 %v760
        %v844 = vunpack.c.h.b16 %v760
        %v845 = vunpack.c.l.b16 %v761
        %v846 = vunpack.c.h.b16 %v761
        %v847 = vunpack.c.l.b16 %v762
        %v848 = vunpack.c.h.b16 %v762
        %v849 = vunpack.c.l.b16 %v763
        %v850 = vunpack.c.h.b16 %v763
        %v851 = vunpack.c.l.b16 %v764
        %v852 = vunpack.c.h.b16 %v764
        %v853 = vunpack.c.l.b16 %v765
        %v854 = vunpack.c.h.b16 %v765
        %v855 = vunpack.c.l.b16 %v766
        %v856 = vunpack.c.h.b16 %v766
        %v857 = vunpack.c.l.b16 %v767
        %v858 = vunpack.c.h.b16 %v767
        %v859 = vunpack.c.l.b16 %v768
        %v860 = vunpack.c.h.b16 %v768
        %v861 = vunpack.c.l.b16 %v769
        %v862 = vunpack.c.h.b16 %v769
        %v863 = vunpack.c.l.b16 %v770
        %v864 = vunpack.c.h.b16 %v770
        %v865 = vunpack.c.l.b16 %v771
        %v866 = vunpack.c.h.b16 %v771
        %v867 = vunpack.c.l.b16 %v772
        %v868 = vunpack.c.h.b16 %v772
        %v869 = vpack.c.b16 %v807, %v805
        %v870 = vpack.c.b16 %v808, %v806
        %v871 = vpack.c.b16 %v811, %v809
        %v872 = vpack.c.b16 %v812, %v810
        %v873 = vpack.c.b16 %v815, %v813
        %v874 = vpack.c.b16 %v816, %v814
        %v875 = vpack.c.b16 %v819, %v817
        %v876 = vpack.c.b16 %v820, %v818
        %v877 = vpack.c.b16 %v823, %v821
        %v878 = vpack.c.b16 %v824, %v822
        %v879 = vpack.c.b16 %v827, %v825
        %v880 = vpack.c.b16 %v828, %v826
        %v881 = vpack.c.b16 %v831, %v829
        %v882 = vpack.c.b16 %v832, %v830
        %v883 = vpack.c.b16 %v835, %v833
        %v884 = vpack.c.b16 %v836, %v834
        %v885 = vpack.c.b16 %v839, %v837
        %v886 = vpack.c.b16 %v840, %v838
        %v887 = vpack.c.b16 %v843, %v841
        %v888 = vpack.c.b16 %v844, %v842
        %v889 = vpack.c.b16 %v847, %v845
        %v890 = vpack.c.b16 %v848, %v846
        %v891 = vpack.c.b16 %v851, %v849
        %v892 = vpack.c.b16 %v852, %v850
        %v893 = vpack.c.b16 %v855, %v853
        %v894 = vpack.c.b16 %v856, %v854
        %v895 = vpack.c.b16 %v859, %v857
        %v896 = vpack.c.b16 %v860, %v858
        %v897 = vpack.c.b16 %v863, %v861
        %v898 = vpack.c.b16 %v864, %v862
        %v899 = vpack.c.b16 %v867, %v865
        %v900 = vpack.c.b16 %v868, %v866
        %933 = vmatprep.subr.bf16.mxu0 %v870
        %934 = vmatpush1.bf16.msra.mxu0 %v869
        %935 = vmatprep.subr.bf16.mxu0 %v872
        %936 = vmatpush1.bf16.msra.mxu0 %v871
        %937 = vmatprep.subr.bf16.mxu0 %v874
        %938 = vmatpush1.bf16.msra.mxu0 %v873
        %939 = vmatprep.subr.bf16.mxu0 %v876
        %940 = vmatpush1.bf16.msra.mxu0 %v875
        %941 = vmatprep.subr.bf16.mxu0 %v878
        %942 = vmatpush1.bf16.msra.mxu0 %v877
        %943 = vmatprep.subr.bf16.mxu0 %v880
        %944 = vmatpush1.bf16.msra.mxu0 %v879
        %945 = vmatprep.subr.bf16.mxu0 %v882
        %946 = vmatpush1.bf16.msra.mxu0 %v881
        %947 = vmatprep.subr.bf16.mxu0 %v884
        %948 = vmatpush1.bf16.msra.mxu0 %v883
        %949 = vmatprep.subr.bf16.mxu0 %v886
        %950 = vmatpush1.bf16.msra.mxu0 %v885
        %951 = vmatprep.subr.bf16.mxu0 %v888
        %952 = vmatpush1.bf16.msra.mxu0 %v887
        %953 = vmatprep.subr.bf16.mxu0 %v890
        %954 = vmatpush1.bf16.msra.mxu0 %v889
        %955 = vmatprep.subr.bf16.mxu0 %v892
        %956 = vmatpush1.bf16.msra.mxu0 %v891
        %957 = vmatprep.subr.bf16.mxu0 %v894
        %958 = vmatpush1.bf16.msra.mxu0 %v893
        %959 = vmatprep.subr.bf16.mxu0 %v896
        %960 = vmatpush1.bf16.msra.mxu0 %v895
        %961 = vmatprep.subr.bf16.mxu0 %v898
        %962 = vmatpush1.bf16.msra.mxu0 %v897
        %963 = vmatprep.subr.bf16.mxu0 %v900
        %964 = vmatpush1.bf16.msra.mxu0 %v899
        %965 = vmatprep.mubr.bf16.mxu0 %v740
        %966 = vmatmul.mubr.bf16.gmra.mrb[0].mxu0 %v739
        %v967 = vpop.f32.mrb[0].mxu0
        %v968 = vadd.f32 0.0, %v967
        %v969 = vpop.f32.mrb[0].mxu0
        %v970 = vadd.f32 0.0, %v969
        %v971 = vpop.f32.mrb[0].mxu0
        %v972 = vpop.f32.mrb[0].mxu0
        %973 = vdwg.mxu0
        %v974 = vpack.c.bf16 %v968, %v968
        %v975 = vpack.c.bf16 %v970, %v970
        %v976 = vld [vmem:[%s12] sm:$0xff]
        %v977 = vld [vmem:[#allocation13] sm:$0xff]
        %v978 = vld [vmem:[%s16] sm:$0xf]
        %v979 = vld [vmem:[%s16 + $0x4] sm:$0xf]
        %v980 = vld [vmem:[%s16 + $0x8] sm:$0xf]
        %v981 = vld [vmem:[%s16 + $0xc] sm:$0xf]
        %v982 = vld [vmem:[%s16 + $0x10] sm:$0xf]
        %v983 = vld [vmem:[%s16 + $0x14] sm:$0xf]
        %v984 = vld [vmem:[%s16 + $0x18] sm:$0xf]
        %v985 = vld [vmem:[%s16 + $0x1c] sm:$0xf]
        %v994 = vunpack.c.l.b16 %v978
        %v995 = vunpack.c.l.b16 %v979
        %v996 = vunpack.c.l.b16 %v980
        %v997 = vunpack.c.l.b16 %v981
        %v998 = vunpack.c.l.b16 %v982
        %v999 = vunpack.c.l.b16 %v983
        %v1000 = vunpack.c.l.b16 %v984
        %v1001 = vunpack.c.l.b16 %v985
        %v1002 = vpack.c.b16 %v995, %v994
        %v1003 = vpack.c.b16 %v997, %v996
        %v1004 = vpack.c.b16 %v999, %v998
        %v1005 = vpack.c.b16 %v1001, %v1000
        %vm1010 = vcmask 523264
        %v1012 = vsel %vm1010, %v975, 0
        %1014 = vmatprep.subr.bf16.mxu0 0
        %1015 = vmatpush1.bf16.msra.mxu0 %v1002
        %1016 = vmatprep.subr.bf16.mxu0 0
        %1017 = vmatpush1.bf16.msra.mxu0 %v1003
        %1018 = vmatprep.subr.bf16.mxu0 0
        %1019 = vmatpush1.bf16.msra.mxu0 %v1004
        %1020 = vmatprep.subr.bf16.mxu0 0
        %1021 = vmatpush1.bf16.msra.mxu0 %v1005
        %1022 = vmatprep.subr.bf16.mxu0 0
        %1023 = vmatpush1.bf16.msra.mxu0 0
        %1024 = vmatprep.subr.bf16.mxu0 0
        %1025 = vmatpush1.bf16.msra.mxu0 0
        %1026 = vmatprep.subr.bf16.mxu0 0
        %1027 = vmatpush1.bf16.msra.mxu0 0
        %1028 = vmatprep.subr.bf16.mxu0 0
        %1029 = vmatpush1.bf16.msra.mxu0 0
        %1030 = vmatprep.subr.bf16.mxu0 0
        %1031 = vmatpush1.bf16.msra.mxu0 0
        %1032 = vmatprep.subr.bf16.mxu0 0
        %1033 = vmatpush1.bf16.msra.mxu0 0
        %1034 = vmatprep.subr.bf16.mxu0 0
        %1035 = vmatpush1.bf16.msra.mxu0 0
        %1036 = vmatprep.subr.bf16.mxu0 0
        %1037 = vmatpush1.bf16.msra.mxu0 0
        %1038 = vmatprep.subr.bf16.mxu0 0
        %1039 = vmatpush1.bf16.msra.mxu0 0
        %1040 = vmatprep.subr.bf16.mxu0 0
        %1041 = vmatpush1.bf16.msra.mxu0 0
        %1042 = vmatprep.subr.bf16.mxu0 0
        %1043 = vmatpush1.bf16.msra.mxu0 0
        %1044 = vmatprep.subr.bf16.mxu0 0
        %1045 = vmatpush1.bf16.msra.mxu0 0
        %1046 = vmatprep.mubr.bf16.mxu0 0
        %1047 = vmatmul.mubr.bf16.gmra.mrb[0].mxu0 %v1012
        %v1048 = vpop.f32.mrb[0].mxu0
        %v1049 = vadd.f32 0.0, %v1048
        %v1050 = vpop.f32.mrb[0].mxu0
        %v1051 = vpop.f32.mrb[0].mxu0
        %v1052 = vpop.f32.mrb[0].mxu0
        %1053 = vdwg.mxu0
        %v1054 = vunpack.c.l.bf16 %v975
        %v1055 = vmul.f32 %v1054, %v976
        %v1056 = vmul.f32 %v1049, %v977
        %v1057 = vadd.f32 %v1055, %v1056
        %v1058 = vpack.c.bf16 %v1057, %v1057
        %v1059 = vld [vmem:[%s3] sm:$0xf]
        %v1060 = vld [vmem:[%s3 + $0x4] sm:$0xf]
        %v1061 = vld [vmem:[%s3 + $0x8] sm:$0xf]
        %v1062 = vld [vmem:[%s3 + $0xc] sm:$0xf]
        %v1063 = vld [vmem:[%s3 + $0x10] sm:$0xf]
        %v1064 = vld [vmem:[%s3 + $0x14] sm:$0xf]
        %v1065 = vld [vmem:[%s3 + $0x18] sm:$0xf]
        %v1066 = vld [vmem:[%s3 + $0x1c] sm:$0xf]
        %v1067 = vld [vmem:[%s3 + $0x20] sm:$0xf]
        %v1068 = vld [vmem:[%s3 + $0x24] sm:$0xf]
        %v1069 = vld [vmem:[%s3 + $0x28] sm:$0xf]
        %v1070 = vld [vmem:[%s3 + $0x2c] sm:$0xf]
        %v1071 = vld [vmem:[%s3 + $0x30] sm:$0xf]
        %v1072 = vld [vmem:[%s3 + $0x34] sm:$0xf]
        %v1073 = vld [vmem:[%s3 + $0x38] sm:$0xf]
        %v1074 = vld [vmem:[%s3 + $0x3c] sm:$0xf]
        %v1075 = vld [vmem:[%s3 + $0x40] sm:$0xf]
        %v1076 = vld [vmem:[%s3 + $0x44] sm:$0xf]
        %v1077 = vld [vmem:[%s3 + $0x48] sm:$0xf]
        %v1078 = vld [vmem:[%s3 + $0x4c] sm:$0xf]
        %v1079 = vld [vmem:[%s3 + $0x50] sm:$0xf]
        %v1080 = vld [vmem:[%s3 + $0x54] sm:$0xf]
        %v1081 = vld [vmem:[%s3 + $0x58] sm:$0xf]
        %v1082 = vld [vmem:[%s3 + $0x5c] sm:$0xf]
        %v1083 = vld [vmem:[%s3 + $0x60] sm:$0xf]
        %v1084 = vld [vmem:[%s3 + $0x64] sm:$0xf]
        %v1085 = vld [vmem:[%s3 + $0x68] sm:$0xf]
        %v1086 = vld [vmem:[%s3 + $0x6c] sm:$0xf]
        %v1087 = vld [vmem:[%s3 + $0x70] sm:$0xf]
        %v1088 = vld [vmem:[%s3 + $0x74] sm:$0xf]
        %v1089 = vld [vmem:[%s3 + $0x78] sm:$0xf]
        %v1090 = vld [vmem:[%s3 + $0x7c] sm:$0xf]
        %v1123 = vunpack.c.l.b16 %v1059
        %v1124 = vunpack.c.l.b16 %v1060
        %v1125 = vunpack.c.l.b16 %v1061
        %v1126 = vunpack.c.l.b16 %v1062
        %v1127 = vunpack.c.l.b16 %v1063
        %v1128 = vunpack.c.l.b16 %v1064
        %v1129 = vunpack.c.l.b16 %v1065
        %v1130 = vunpack.c.l.b16 %v1066
        %v1131 = vunpack.c.l.b16 %v1067
        %v1132 = vunpack.c.l.b16 %v1068
        %v1133 = vunpack.c.l.b16 %v1069
        %v1134 = vunpack.c.l.b16 %v1070
        %v1135 = vunpack.c.l.b16 %v1071
        %v1136 = vunpack.c.l.b16 %v1072
        %v1137 = vunpack.c.l.b16 %v1073
        %v1138 = vunpack.c.l.b16 %v1074
        %v1139 = vunpack.c.l.b16 %v1075
        %v1140 = vunpack.c.l.b16 %v1076
        %v1141 = vunpack.c.l.b16 %v1077
        %v1142 = vunpack.c.l.b16 %v1078
        %v1143 = vunpack.c.l.b16 %v1079
        %v1144 = vunpack.c.l.b16 %v1080
        %v1145 = vunpack.c.l.b16 %v1081
        %v1146 = vunpack.c.l.b16 %v1082
        %v1147 = vunpack.c.l.b16 %v1083
        %v1148 = vunpack.c.l.b16 %v1084
        %v1149 = vunpack.c.l.b16 %v1085
        %v1150 = vunpack.c.l.b16 %v1086
        %v1151 = vunpack.c.l.b16 %v1087
        %v1152 = vunpack.c.l.b16 %v1088
        %v1153 = vunpack.c.l.b16 %v1089
        %v1154 = vunpack.c.l.b16 %v1090
        %v1155 = vpack.c.b16 %v1124, %v1123
        %v1156 = vpack.c.b16 %v1126, %v1125
        %v1157 = vpack.c.b16 %v1128, %v1127
        %v1158 = vpack.c.b16 %v1130, %v1129
        %v1159 = vpack.c.b16 %v1132, %v1131
        %v1160 = vpack.c.b16 %v1134, %v1133
        %v1161 = vpack.c.b16 %v1136, %v1135
        %v1162 = vpack.c.b16 %v1138, %v1137
        %v1163 = vpack.c.b16 %v1140, %v1139
        %v1164 = vpack.c.b16 %v1142, %v1141
        %v1165 = vpack.c.b16 %v1144, %v1143
        %v1166 = vpack.c.b16 %v1146, %v1145
        %v1167 = vpack.c.b16 %v1148, %v1147
        %v1168 = vpack.c.b16 %v1150, %v1149
        %v1169 = vpack.c.b16 %v1152, %v1151
        %v1170 = vpack.c.b16 %v1154, %v1153
        %1187 = vmatprep.subr.bf16.mxu0 0
        %1188 = vmatpush1.bf16.msra.mxu0 %v1155
        %1189 = vmatprep.subr.bf16.mxu0 0
        %1190 = vmatpush1.bf16.msra.mxu0 %v1156
        %1191 = vmatprep.subr.bf16.mxu0 0
        %1192 = vmatpush1.bf16.msra.mxu0 %v1157
        %1193 = vmatprep.subr.bf16.mxu0 0
        %1194 = vmatpush1.bf16.msra.mxu0 %v1158
        %1195 = vmatprep.subr.bf16.mxu0 0
        %1196 = vmatpush1.bf16.msra.mxu0 %v1159
        %1197 = vmatprep.subr.bf16.mxu0 0
        %1198 = vmatpush1.bf16.msra.mxu0 %v1160
        %1199 = vmatprep.subr.bf16.mxu0 0
        %1200 = vmatpush1.bf16.msra.mxu0 %v1161
        %1201 = vmatprep.subr.bf16.mxu0 0
        %1202 = vmatpush1.bf16.msra.mxu0 %v1162
        %1203 = vmatprep.subr.bf16.mxu0 0
        %1204 = vmatpush1.bf16.msra.mxu0 %v1163
        %1205 = vmatprep.subr.bf16.mxu0 0
        %1206 = vmatpush1.bf16.msra.mxu0 %v1164
        %1207 = vmatprep.subr.bf16.mxu0 0
        %1208 = vmatpush1.bf16.msra.mxu0 %v1165
        %1209 = vmatprep.subr.bf16.mxu0 0
        %1210 = vmatpush1.bf16.msra.mxu0 %v1166
        %1211 = vmatprep.subr.bf16.mxu0 0
        %1212 = vmatpush1.bf16.msra.mxu0 %v1167
        %1213 = vmatprep.subr.bf16.mxu0 0
        %1214 = vmatpush1.bf16.msra.mxu0 %v1168
        %1215 = vmatprep.subr.bf16.mxu0 0
        %1216 = vmatpush1.bf16.msra.mxu0 %v1169
        %1217 = vmatprep.subr.bf16.mxu0 0
        %1218 = vmatpush1.bf16.msra.mxu0 %v1170
        %1219 = vmatprep.mubr.bf16.mxu0 %v740
        %1220 = vmatmul.mubr.bf16.gmra.mrb[0].mxu0 %v739
        %v1221 = vpop.f32.mrb[0].mxu0
        %v1222 = vadd.f32 0.0, %v1221
        %v1223 = vpop.f32.mrb[0].mxu0
        %v1224 = vpop.f32.mrb[0].mxu0
        %v1225 = vpop.f32.mrb[0].mxu0
        %1226 = vdwg.mxu0
        %v1227 = vpack.c.bf16 %v1222, %v1222
        %v1228 = vld [vmem:[#allocation2] sm:$0x1]
        %v1229 = vunpack.c.l.bf16 %v1227
        %v1230 = vmul.f32 %v1229, %v1229
        %v1231 = vsel %vm1010, %v1230, 0.0
        %1232 = vadd.xlane.f32.xlu0 %v1231
        %v1233 = vpop.xlane.xlu0 %1232
        %v1234 = vrcp.pop 64.0
        %v1235 = vmul.f32 %v1233, %v1234
        %v1236 = vadd.f32 %v1235, 1e-06
        %v1237 = vrsqrt.pop %v1236
        %v1238 = vmul.f32 %v1229, %v1237
        %v1240 = vlaneseq
        %v1241 = vshrl.u32 %v1240, 7
        %v1242 = vsub.s32 0, %v1241
        %v1243 = vrot.slane %v1228, %v1242
        %v1245 = vmul.f32 %v1238, %v1243
        %v1246 = vpack.c.bf16 %v1245, %v1245
        %v1247 = vld [vmem:[%s14] sm:$0xff]
        %v1248 = vld [vmem:[#allocation14] sm:$0xff]
        %v1249 = vld [vmem:[%s17] sm:$0xf]
        %v1250 = vld [vmem:[%s17 + $0x4] sm:$0xf]
        %1252 = vrot.lane.b32.xlu0 %v1227, 64
        %v1253 = vpop.permute.xlu0 %1252
        %v1256 = vunpack.c.l.b16 %v1249
        %v1257 = vunpack.c.l.b16 %v1250
        %v1258 = vpack.c.b16 %v1257, %v1256
        %vm1260 = vcmask 130048
        %v1262 = vsel %vm1260, %v1253, 0
        %1264 = vmatprep.subr.bf16.mxu0 0
        %1265 = vmatpush1.bf16.msra.mxu0 %v1258
        %1266 = vmatprep.subr.bf16.mxu0 0
        %1267 = vmatpush1.bf16.msra.mxu0 0
        %1268 = vmatprep.subr.bf16.mxu0 0
        %1269 = vmatpush1.bf16.msra.mxu0 0
        %1270 = vmatprep.subr.bf16.mxu0 0
        %1271 = vmatpush1.bf16.msra.mxu0 0
        %1272 = vmatprep.subr.bf16.mxu0 0
        %1273 = vmatpush1.bf16.msra.mxu0 0
        %1274 = vmatprep.subr.bf16.mxu0 0
        %1275 = vmatpush1.bf16.msra.mxu0 0
        %1276 = vmatprep.subr.bf16.mxu0 0
        %1277 = vmatpush1.bf16.msra.mxu0 0
        %1278 = vmatprep.subr.bf16.mxu0 0
        %1279 = vmatpush1.bf16.msra.mxu0 0
        %1280 = vmatprep.subr.bf16.mxu0 0
        %1281 = vmatpush1.bf16.msra.mxu0 0
        %1282 = vmatprep.subr.bf16.mxu0 0
        %1283 = vmatpush1.bf16.msra.mxu0 0
        %1284 = vmatprep.subr.bf16.mxu0 0
        %1285 = vmatpush1.bf16.msra.mxu0 0
        %1286 = vmatprep.subr.bf16.mxu0 0
        %1287 = vmatpush1.bf16.msra.mxu0 0
        %1288 = vmatprep.subr.bf16.mxu0 0
        %1289 = vmatpush1.bf16.msra.mxu0 0
        %1290 = vmatprep.subr.bf16.mxu0 0
        %1291 = vmatpush1.bf16.msra.mxu0 0
        %1292 = vmatprep.subr.bf16.mxu0 0
        %1293 = vmatpush1.bf16.msra.mxu0 0
        %1294 = vmatprep.subr.bf16.mxu0 0
        %1295 = vmatpush1.bf16.msra.mxu0 0
        %1296 = vmatprep.mubr.bf16.mxu0 0
        %1297 = vmatmul.mubr.bf16.gmra.mrb[0].mxu0 %v1262
        %v1298 = vpop.f32.mrb[0].mxu0
        %v1299 = vadd.f32 0.0, %v1298
        %v1300 = vpop.f32.mrb[0].mxu0
        %v1301 = vpop.f32.mrb[0].mxu0
        %v1302 = vpop.f32.mrb[0].mxu0
        %1303 = vdwg.mxu0
        %1305 = vrot.lane.b32.xlu0 %v1247, 64
        %v1306 = vpop.permute.xlu0 %1305
        %v1308 = vmul.f32 %v1229, %v1306
        %v1309 = vmul.f32 %v1299, %v1248
        %1311 = vrot.lane.b32.xlu0 %v1309, 64
        %v1312 = vpop.permute.xlu0 %1311
        %v1314 = vadd.f32 %v1308, %v1312
        %v1315 = vpack.c.bf16 %v1314, %v1314
        %v1316 = vld [vmem:[%s5] sm:$0xff]
        %v1317 = vld [vmem:[%s5 + $0x8] sm:$0xff]
        %v1318 = vld [vmem:[%s5 + $0x10] sm:$0xff]
        %v1319 = vld [vmem:[%s5 + $0x18] sm:$0xff]
        %v1320 = vld [vmem:[%s5 + $0x20] sm:$0xff]
        %v1321 = vld [vmem:[%s5 + $0x28] sm:$0xff]
        %v1322 = vld [vmem:[%s5 + $0x30] sm:$0xff]
        %v1323 = vld [vmem:[%s5 + $0x38] sm:$0xff]
        %v1324 = vld [vmem:[%s5 + $0x40] sm:$0xff]
        %v1325 = vld [vmem:[%s5 + $0x48] sm:$0xff]
        %v1326 = vld [vmem:[%s5 + $0x50] sm:$0xff]
        %v1327 = vld [vmem:[%s5 + $0x58] sm:$0xff]
        %v1328 = vld [vmem:[%s5 + $0x60] sm:$0xff]
        %v1329 = vld [vmem:[%s5 + $0x68] sm:$0xff]
        %v1330 = vld [vmem:[%s5 + $0x70] sm:$0xff]
        %v1331 = vld [vmem:[%s5 + $0x78] sm:$0xff]
        %v1348 = vunpack.c.l.b16 %v1316
        %v1349 = vunpack.c.h.b16 %v1316
        %v1350 = vunpack.c.l.b16 %v1317
        %v1351 = vunpack.c.h.b16 %v1317
        %v1352 = vunpack.c.l.b16 %v1318
        %v1353 = vunpack.c.h.b16 %v1318
        %v1354 = vunpack.c.l.b16 %v1319
        %v1355 = vunpack.c.h.b16 %v1319
        %v1356 = vunpack.c.l.b16 %v1320
        %v1357 = vunpack.c.h.b16 %v1320
        %v1358 = vunpack.c.l.b16 %v1321
        %v1359 = vunpack.c.h.b16 %v1321
        %v1360 = vunpack.c.l.b16 %v1322
        %v1361 = vunpack.c.h.b16 %v1322
        %v1362 = vunpack.c.l.b16 %v1323
        %v1363 = vunpack.c.h.b16 %v1323
        %v1364 = vunpack.c.l.b16 %v1324
        %v1365 = vunpack.c.h.b16 %v1324
        %v1366 = vunpack.c.l.b16 %v1325
        %v1367 = vunpack.c.h.b16 %v1325
        %v1368 = vunpack.c.l.b16 %v1326
        %v1369 = vunpack.c.h.b16 %v1326
        %v1370 = vunpack.c.l.b16 %v1327
        %v1371 = vunpack.c.h.b16 %v1327
        %v1372 = vunpack.c.l.b16 %v1328
        %v1373 = vunpack.c.h.b16 %v1328
        %v1374 = vunpack.c.l.b16 %v1329
        %v1375 = vunpack.c.h.b16 %v1329
        %v1376 = vunpack.c.l.b16 %v1330
        %v1377 = vunpack.c.h.b16 %v1330
        %v1378 = vunpack.c.l.b16 %v1331
        %v1379 = vunpack.c.h.b16 %v1331
        %v1380 = vpack.c.b16 %v1350, %v1348
        %v1381 = vpack.c.b16 %v1351, %v1349
        %v1382 = vpack.c.b16 %v1354, %v1352
        %v1383 = vpack.c.b16 %v1355, %v1353
        %v1384 = vpack.c.b16 %v1358, %v1356
        %v1385 = vpack.c.b16 %v1359, %v1357
        %v1386 = vpack.c.b16 %v1362, %v1360
        %v1387 = vpack.c.b16 %v1363, %v1361
        %v1388 = vpack.c.b16 %v1366, %v1364
        %v1389 = vpack.c.b16 %v1367, %v1365
        %v1390 = vpack.c.b16 %v1370, %v1368
        %v1391 = vpack.c.b16 %v1371, %v1369
        %v1392 = vpack.c.b16 %v1374, %v1372
        %v1393 = vpack.c.b16 %v1375, %v1373
        %v1394 = vpack.c.b16 %v1378, %v1376
        %v1395 = vpack.c.b16 %v1379, %v1377
        %1412 = vmatprep.subr.bf16.mxu0 %v1381
        %1413 = vmatpush1.bf16.msra.mxu0 %v1380
        %1414 = vmatprep.subr.bf16.mxu0 %v1383
        %1415 = vmatpush1.bf16.msra.mxu0 %v1382
        %1416 = vmatprep.subr.bf16.mxu0 %v1385
        %1417 = vmatpush1.bf16.msra.mxu0 %v1384
        %1418 = vmatprep.subr.bf16.mxu0 %v1387
        %1419 = vmatpush1.bf16.msra.mxu0 %v1386
        %1420 = vmatprep.subr.bf16.mxu0 %v1389
        %1421 = vmatpush1.bf16.msra.mxu0 %v1388
        %1422 = vmatprep.subr.bf16.mxu0 %v1391
        %1423 = vmatpush1.bf16.msra.mxu0 %v1390
        %1424 = vmatprep.subr.bf16.mxu0 %v1393
        %1425 = vmatpush1.bf16.msra.mxu0 %v1392
        %1426 = vmatprep.subr.bf16.mxu0 %v1395
        %1427 = vmatpush1.bf16.msra.mxu0 %v1394
        %1428 = vmatprep.subr.bf16.mxu0 0
        %1429 = vmatpush1.bf16.msra.mxu0 0
        %1430 = vmatprep.subr.bf16.mxu0 0
        %1431 = vmatpush1.bf16.msra.mxu0 0
        %1432 = vmatprep.subr.bf16.mxu0 0
        %1433 = vmatpush1.bf16.msra.mxu0 0
        %1434 = vmatprep.subr.bf16.mxu0 0
        %1435 = vmatpush1.bf16.msra.mxu0 0
        %1436 = vmatprep.subr.bf16.mxu0 0
        %1437 = vmatpush1.bf16.msra.mxu0 0
        %1438 = vmatprep.subr.bf16.mxu0 0
        %1439 = vmatpush1.bf16.msra.mxu0 0
        %1440 = vmatprep.subr.bf16.mxu0 0
        %1441 = vmatpush1.bf16.msra.mxu0 0
        %1442 = vmatprep.subr.bf16.mxu0 0
        %1443 = vmatpush1.bf16.msra.mxu0 0
        %1444 = vmatprep.mubr.bf16.mxu0 0
        %1445 = vmatmul.mubr.bf16.gmra.mrb[0].mxu0 %v974
        %v1446 = vpop.f32.mrb[0].mxu0
        %v1447 = vadd.f32 0.0, %v1446
        %v1448 = vpop.f32.mrb[0].mxu0
        %v1449 = vadd.f32 0.0, %v1448
        %v1450 = vpop.f32.mrb[0].mxu0
        %v1451 = vpop.f32.mrb[0].mxu0
        %1452 = vdwg.mxu0
        %v1453 = vpack.c.bf16 %v1447, %v1447
        %v1454 = vpack.c.bf16 %v1449, %v1449
        %v1455 = vld [vmem:[%s18] sm:$0xff]
        %1457 = vrot.lane.b32.xlu0 %v1315, 64
        %v1458 = vpop.permute.xlu0 %1457
        %v1460 = vsel %vm1260, %v1058, 0
        %v1463 = vsel %vm1260, %v1458, 0
        %1465 = vmatprep.subr.bf16.mxu0 0
        %1466 = vmatpush1.bf16.xpose.msra.mxu0 %v1463
        %1467 = vmatprep.subr.bf16.mxu0 0
        %1468 = vmatpush1.bf16.xpose.msra.mxu0 0
        %1469 = vmatprep.subr.bf16.mxu0 0
        %1470 = vmatpush1.bf16.xpose.msra.mxu0 0
        %1471 = vmatprep.subr.bf16.mxu0 0
        %1472 = vmatpush1.bf16.xpose.msra.mxu0 0
        %1473 = vmatprep.subr.bf16.mxu0 0
        %1474 = vmatpush1.bf16.xpose.msra.mxu0 0
        %1475 = vmatprep.subr.bf16.mxu0 0
        %1476 = vmatpush1.bf16.xpose.msra.mxu0 0
        %1477 = vmatprep.subr.bf16.mxu0 0
        %1478 = vmatpush1.bf16.xpose.msra.mxu0 0
        %1479 = vmatprep.subr.bf16.mxu0 0
        %1480 = vmatpush1.bf16.xpose.msra.mxu0 0
        %1481 = vmatprep.subr.bf16.mxu0 0
        %1482 = vmatpush1.bf16.xpose.msra.mxu0 0
        %1483 = vmatprep.subr.bf16.mxu0 0
        %1484 = vmatpush1.bf16.xpose.msra.mxu0 0
        %1485 = vmatprep.subr.bf16.mxu0 0
        %1486 = vmatpush1.bf16.xpose.msra.mxu0 0
        %1487 = vmatprep.subr.bf16.mxu0 0
        %1488 = vmatpush1.bf16.xpose.msra.mxu0 0
        %1489 = vmatprep.subr.bf16.mxu0 0
        %1490 = vmatpush1.bf16.xpose.msra.mxu0 0
        %1491 = vmatprep.subr.bf16.mxu0 0
        %1492 = vmatpush1.bf16.xpose.msra.mxu0 0
        %1493 = vmatprep.subr.bf16.mxu0 0
        %1494 = vmatpush1.bf16.xpose.msra.mxu0 0
        %1495 = vmatprep.subr.bf16.mxu0 0
        %1496 = vmatpush1.bf16.xpose.msra.mxu0 0
        %1497 = vmatprep.mubr.bf16.mxu0 0
        %1498 = vmatmul.mubr.bf16.gmra.mrb[0].mxu0 %v1460
        %v1499 = vpop.f32.mrb[0].mxu0
        %v1500 = vadd.f32 0.0, %v1499
        %v1501 = vpop.f32.mrb[0].mxu0
        %v1502 = vpop.f32.mrb[0].mxu0
        %v1503 = vpop.f32.mrb[0].mxu0
        %1504 = vdwg.mxu0
        %v1506 = vsel %vm1010, %v1453, 0
        %v1509 = vsel %vm1010, %v1246, 0
        %1511 = vmatprep.subr.bf16.mxu0 0
        %1512 = vmatpush1.bf16.xpose.msra.mxu0 %v1509
        %1513 = vmatprep.subr.bf16.mxu0 0
        %1514 = vmatpush1.bf16.xpose.msra.mxu0 0
        %1515 = vmatprep.subr.bf16.mxu0 0
        %1516 = vmatpush1.bf16.xpose.msra.mxu0 0
        %1517 = vmatprep.subr.bf16.mxu0 0
        %1518 = vmatpush1.bf16.xpose.msra.mxu0 0
        %1519 = vmatprep.subr.bf16.mxu0 0
        %1520 = vmatpush1.bf16.xpose.msra.mxu0 0
        %1521 = vmatprep.subr.bf16.mxu0 0
        %1522 = vmatpush1.bf16.xpose.msra.mxu0 0
        %1523 = vmatprep.subr.bf16.mxu0 0
        %1524 = vmatpush1.bf16.xpose.msra.mxu0 0
        %1525 = vmatprep.subr.bf16.mxu0 0
        %1526 = vmatpush1.bf16.xpose.msra.mxu0 0
        %1527 = vmatprep.subr.bf16.mxu0 0
        %1528 = vmatpush1.bf16.xpose.msra.mxu0 0
        %1529 = vmatprep.subr.bf16.mxu0 0
        %1530 = vmatpush1.bf16.xpose.msra.mxu0 0
        %1531 = vmatprep.subr.bf16.mxu0 0
        %1532 = vmatpush1.bf16.xpose.msra.mxu0 0
        %1533 = vmatprep.subr.bf16.mxu0 0
        %1534 = vmatpush1.bf16.xpose.msra.mxu0 0
        %1535 = vmatprep.subr.bf16.mxu0 0
        %1536 = vmatpush1.bf16.xpose.msra.mxu0 0
        %1537 = vmatprep.subr.bf16.mxu0 0
        %1538 = vmatpush1.bf16.xpose.msra.mxu0 0
        %1539 = vmatprep.subr.bf16.mxu0 0
        %1540 = vmatpush1.bf16.xpose.msra.mxu0 0
        %1541 = vmatprep.subr.bf16.mxu0 0
        %1542 = vmatpush1.bf16.xpose.msra.mxu0 0
        %1543 = vmatprep.mubr.bf16.mxu0 0
        %1544 = vmatmul.mubr.bf16.gmra.mrb[0].mxu0 %v1506
        %v1545 = vpop.f32.mrb[0].mxu0
        %v1546 = vadd.f32 %v1500, %v1545
        %v1547 = vpop.f32.mrb[0].mxu0
        %v1548 = vpop.f32.mrb[0].mxu0
        %v1549 = vpop.f32.mrb[0].mxu0
        %1550 = vdwg.mxu0
        %v1551 = vmul.f32 %v1546, 0.14433756
        %v1552 = vadd.f32 %v1551, %v1455
        %vm1553 = vcmask 64512
        %v1554 = vsel %vm1553, %v1552, -inf
        %1555 = vmax.xlane.f32.xlu0 %v1554
        %v1556 = vpop.xlane.xlu0 %1555
        %v1557 = vsub.f32 %v1552, %v1556
        %v1558 = vmul.f32 %v1557, 1.442695
        %v1559 = vpow.pop %v1558
        %v1560 = vsel %vm1553, %v1559, 0.0
        %1561 = vadd.xlane.f32.xlu0 %v1560
        %v1562 = vpop.xlane.xlu0 %1561
        %v1563 = vrcp.pop %v1562
        %v1564 = vmul.f32 %v1559, %v1563
        %v1565 = vpack.c.bf16 %v1564, %v1564
        %v1567 = vsel %vm1553, %v1565, 0
        %vm1569 = vcmask 1043456
        %v1570 = vsel %vm1569, %v1246, 0
        %1572 = vmatprep.subr.bf16.mxu0 0
        %1573 = vmatpush1.bf16.msra.mxu0 %v1570
        %1574 = vmatprep.subr.bf16.mxu0 0
        %1575 = vmatpush1.bf16.msra.mxu0 0
        %1576 = vmatprep.subr.bf16.mxu0 0
        %1577 = vmatpush1.bf16.msra.mxu0 0
        %1578 = vmatprep.subr.bf16.mxu0 0
        %1579 = vmatpush1.bf16.msra.mxu0 0
        %1580 = vmatprep.subr.bf16.mxu0 0
        %1581 = vmatpush1.bf16.msra.mxu0 0
        %1582 = vmatprep.subr.bf16.mxu0 0
        %1583 = vmatpush1.bf16.msra.mxu0 0
        %1584 = vmatprep.subr.bf16.mxu0 0
        %1585 = vmatpush1.bf16.msra.mxu0 0
        %1586 = vmatprep.subr.bf16.mxu0 0
        %1587 = vmatpush1.bf16.msra.mxu0 0
        %1588 = vmatprep.subr.bf16.mxu0 0
        %1589 = vmatpush1.bf16.msra.mxu0 0
        %1590 = vmatprep.subr.bf16.mxu0 0
        %1591 = vmatpush1.bf16.msra.mxu0 0
        %1592 = vmatprep.subr.bf16.mxu0 0
        %1593 = vmatpush1.bf16.msra.mxu0 0
        %1594 = vmatprep.subr.bf16.mxu0 0
        %1595 = vmatpush1.bf16.msra.mxu0 0
        %1596 = vmatprep.subr.bf16.mxu0 0
        %1597 = vmatpush1.bf16.msra.mxu0 0
        %1598 = vmatprep.subr.bf16.mxu0 0
        %1599 = vmatpush1.bf16.msra.mxu0 0
        %1600 = vmatprep.subr.bf16.mxu0 0
        %1601 = vmatpush1.bf16.msra.mxu0 0
        %1602 = vmatprep.subr.bf16.mxu0 0
        %1603 = vmatpush1.bf16.msra.mxu0 0
        %1604 = vmatprep.mubr.bf16.mxu0 0
        %1605 = vmatmul.mubr.bf16.gmra.mrb[0].mxu0 %v1567
        %v1606 = vpop.f32.mrb[0].mxu0
        %v1607 = vadd.f32 0.0, %v1606
        %v1608 = vpop.f32.mrb[0].mxu0
        %v1609 = vpop.f32.mrb[0].mxu0
        %v1610 = vpop.f32.mrb[0].mxu0
        %1611 = vdwg.mxu0
        %v1612 = vpack.c.bf16 %v1607, %v1607
        %v1613 = vld [vmem:[#allocation5] sm:$0xf]
        %v1614 = vld [vmem:[#allocation5 + $0x4] sm:$0xf]
        %v1615 = vld [vmem:[#allocation5 + $0x8] sm:$0xf]
        %v1616 = vld [vmem:[#allocation5 + $0xc] sm:$0xf]
        %v1617 = vld [vmem:[#allocation5 + $0x10] sm:$0xf]
        %v1618 = vld [vmem:[#allocation5 + $0x14] sm:$0xf]
        %v1619 = vld [vmem:[#allocation5 + $0x18] sm:$0xf]
        %v1620 = vld [vmem:[#allocation5 + $0x1c] sm:$0xf]
        %1622 = vrot.lane.b32.xlu0 %v1058, 112
        %v1623 = vpop.permute.xlu0 %1622
        %v1625 = vsel %vm1260, %v1623, 0
        %1627 = vmatprep.subr.bf16.mxu0 0
        %1628 = vmatpush1.bf16.xpose.msra.mxu0 %v1463
        %1629 = vmatprep.subr.bf16.mxu0 0
        %1630 = vmatpush1.bf16.xpose.msra.mxu0 0
        %1631 = vmatprep.subr.bf16.mxu0 0
        %1632 = vmatpush1.bf16.xpose.msra.mxu0 0
        %1633 = vmatprep.subr.bf16.mxu0 0
        %1634 = vmatpush1.bf16.xpose.msra.mxu0 0
        %1635 = vmatprep.subr.bf16.mxu0 0
        %1636 = vmatpush1.bf16.xpose.msra.mxu0 0
        %1637 = vmatprep.subr.bf16.mxu0 0
        %1638 = vmatpush1.bf16.xpose.msra.mxu0 0
        %1639 = vmatprep.subr.bf16.mxu0 0
        %1640 = vmatpush1.bf16.xpose.msra.mxu0 0
        %1641 = vmatprep.subr.bf16.mxu0 0
        %1642 = vmatpush1.bf16.xpose.msra.mxu0 0
        %1643 = vmatprep.subr.bf16.mxu0 0
        %1644 = vmatpush1.bf16.xpose.msra.mxu0 0
        %1645 = vmatprep.subr.bf16.mxu0 0
        %1646 = vmatpush1.bf16.xpose.msra.mxu0 0
        %1647 = vmatprep.subr.bf16.mxu0 0
        %1648 = vmatpush1.bf16.xpose.msra.mxu0 0
        %1649 = vmatprep.subr.bf16.mxu0 0
        %1650 = vmatpush1.bf16.xpose.msra.mxu0 0
        %1651 = vmatprep.subr.bf16.mxu0 0
        %1652 = vmatpush1.bf16.xpose.msra.mxu0 0
        %1653 = vmatprep.subr.bf16.mxu0 0
        %1654 = vmatpush1.bf16.xpose.msra.mxu0 0
        %1655 = vmatprep.subr.bf16.mxu0 0
        %1656 = vmatpush1.bf16.xpose.msra.mxu0 0
        %1657 = vmatprep.subr.bf16.mxu0 0
        %1658 = vmatpush1.bf16.xpose.msra.mxu0 0
        %1659 = vmatprep.mubr.bf16.mxu0 0
        %1660 = vmatmul.mubr.bf16.gmra.mrb[0].mxu0 %v1625
        %v1661 = vpop.f32.mrb[0].mxu0
        %v1662 = vadd.f32 0.0, %v1661
        %v1663 = vpop.f32.mrb[0].mxu0
        %v1664 = vpop.f32.mrb[0].mxu0
        %v1665 = vpop.f32.mrb[0].mxu0
        %1666 = vdwg.mxu0
        %1668 = vrot.lane.b32.xlu0 %v1453, 64
        %v1669 = vpop.permute.xlu0 %1668
        %v1671 = vsel %vm1010, %v1669, 0
        %1673 = vmatprep.subr.bf16.mxu0 0
        %1674 = vmatpush1.bf16.xpose.msra.mxu0 %v1509
        %1675 = vmatprep.subr.bf16.mxu0 0
        %1676 = vmatpush1.bf16.xpose.msra.mxu0 0
        %1677 = vmatprep.subr.bf16.mxu0 0
        %1678 = vmatpush1.bf16.xpose.msra.mxu0 0
        %1679 = vmatprep.subr.bf16.mxu0 0
        %1680 = vmatpush1.bf16.xpose.msra.mxu0 0
        %1681 = vmatprep.subr.bf16.mxu0 0
        %1682 = vmatpush1.bf16.xpose.msra.mxu0 0
        %1683 = vmatprep.subr.bf16.mxu0 0
        %1684 = vmatpush1.bf16.xpose.msra.mxu0 0
        %1685 = vmatprep.subr.bf16.mxu0 0
        %1686 = vmatpush1.bf16.xpose.msra.mxu0 0
        %1687 = vmatprep.subr.bf16.mxu0 0
        %1688 = vmatpush1.bf16.xpose.msra.mxu0 0
        %1689 = vmatprep.subr.bf16.mxu0 0
        %1690 = vmatpush1.bf16.xpose.msra.mxu0 0
        %1691 = vmatprep.subr.bf16.mxu0 0
        %1692 = vmatpush1.bf16.xpose.msra.mxu0 0
        %1693 = vmatprep.subr.bf16.mxu0 0
        %1694 = vmatpush1.bf16.xpose.msra.mxu0 0
        %1695 = vmatprep.subr.bf16.mxu0 0
        %1696 = vmatpush1.bf16.xpose.msra.mxu0 0
        %1697 = vmatprep.subr.bf16.mxu0 0
        %1698 = vmatpush1.bf16.xpose.msra.mxu0 0
        %1699 = vmatprep.subr.bf16.mxu0 0
        %1700 = vmatpush1.bf16.xpose.msra.mxu0 0
        %1701 = vmatprep.subr.bf16.mxu0 0
        %1702 = vmatpush1.bf16.xpose.msra.mxu0 0
        %1703 = vmatprep.subr.bf16.mxu0 0
        %1704 = vmatpush1.bf16.xpose.msra.mxu0 0
        %1705 = vmatprep.mubr.bf16.mxu0 0
        %1706 = vmatmul.mubr.bf16.gmra.mrb[0].mxu0 %v1671
        %v1707 = vpop.f32.mrb[0].mxu0
        %v1708 = vadd.f32 %v1662, %v1707
        %v1709 = vpop.f32.mrb[0].mxu0
        %v1710 = vpop.f32.mrb[0].mxu0
        %v1711 = vpop.f32.mrb[0].mxu0
        %1712 = vdwg.mxu0
        %v1713 = vmul.f32 %v1708, 0.14433756
        %v1714 = vadd.f32 %v1713, %v1455
        %v1715 = vsel %vm1553, %v1714, -inf
        %1716 = vmax.xlane.f32.xlu0 %v1715
        %v1717 = vpop.xlane.xlu0 %1716
        %v1718 = vsub.f32 %v1714, %v1717
        %v1719 = vmul.f32 %v1718, 1.442695
        %v1720 = vpow.pop %v1719
        %v1721 = vsel %vm1553, %v1720, 0.0
        %1722 = vadd.xlane.f32.xlu0 %v1721
        %v1723 = vpop.xlane.xlu0 %1722
        %v1724 = vrcp.pop %v1723
        %v1725 = vmul.f32 %v1720, %v1724
        %v1726 = vpack.c.bf16 %v1725, %v1725
        %v1728 = vsel %vm1553, %v1726, 0
        %1730 = vmatprep.subr.bf16.mxu0 0
        %1731 = vmatpush1.bf16.msra.mxu0 %v1570
        %1732 = vmatprep.subr.bf16.mxu0 0
        %1733 = vmatpush1.bf16.msra.mxu0 0
        %1734 = vmatprep.subr.bf16.mxu0 0
        %1735 = vmatpush1.bf16.msra.mxu0 0
        %1736 = vmatprep.subr.bf16.mxu0 0
        %1737 = vmatpush1.bf16.msra.mxu0 0
        %1738 = vmatprep.subr.bf16.mxu0 0
        %1739 = vmatpush1.bf16.msra.mxu0 0
        %1740 = vmatprep.subr.bf16.mxu0 0
        %1741 = vmatpush1.bf16.msra.mxu0 0
        %1742 = vmatprep.subr.bf16.mxu0 0
        %1743 = vmatpush1.bf16.msra.mxu0 0
        %1744 = vmatprep.subr.bf16.mxu0 0
        %1745 = vmatpush1.bf16.msra.mxu0 0
        %1746 = vmatprep.subr.bf16.mxu0 0
        %1747 = vmatpush1.bf16.msra.mxu0 0
        %1748 = vmatprep.subr.bf16.mxu0 0
        %1749 = vmatpush1.bf16.msra.mxu0 0
        %1750 = vmatprep.subr.bf16.mxu0 0
        %1751 = vmatpush1.bf16.msra.mxu0 0
        %1752 = vmatprep.subr.bf16.mxu0 0
        %1753 = vmatpush1.bf16.msra.mxu0 0
        %1754 = vmatprep.subr.bf16.mxu0 0
        %1755 = vmatpush1.bf16.msra.mxu0 0
        %1756 = vmatprep.subr.bf16.mxu0 0
        %1757 = vmatpush1.bf16.msra.mxu0 0
        %1758 = vmatprep.subr.bf16.mxu0 0
        %1759 = vmatpush1.bf16.msra.mxu0 0
        %1760 = vmatprep.subr.bf16.mxu0 0
        %1761 = vmatpush1.bf16.msra.mxu0 0
        %1762 = vmatprep.mubr.bf16.mxu0 0
        %1763 = vmatmul.mubr.bf16.gmra.mrb[0].mxu0 %v1728
        %v1764 = vpop.f32.mrb[0].mxu0
        %v1765 = vadd.f32 0.0, %v1764
        %v1766 = vpop.f32.mrb[0].mxu0
        %v1767 = vpop.f32.mrb[0].mxu0
        %v1768 = vpop.f32.mrb[0].mxu0
        %1769 = vdwg.mxu0
        %v1770 = vpack.c.bf16 %v1765, %v1765
        %v1771 = vld [vmem:[#allocation5 + $0x20] sm:$0xf]
        %v1772 = vld [vmem:[#allocation5 + $0x24] sm:$0xf]
        %v1773 = vld [vmem:[#allocation5 + $0x28] sm:$0xf]
        %v1774 = vld [vmem:[#allocation5 + $0x2c] sm:$0xf]
        %v1775 = vld [vmem:[#allocation5 + $0x30] sm:$0xf]
        %v1776 = vld [vmem:[#allocation5 + $0x34] sm:$0xf]
        %v1777 = vld [vmem:[#allocation5 + $0x38] sm:$0xf]
        %v1778 = vld [vmem:[#allocation5 + $0x3c] sm:$0xf]
        %v1787 = vunpack.c.l.b16 %v1771
        %v1788 = vunpack.c.l.b16 %v1772
        %v1789 = vunpack.c.l.b16 %v1773
        %v1790 = vunpack.c.l.b16 %v1774
        %v1791 = vunpack.c.l.b16 %v1775
        %v1792 = vunpack.c.l.b16 %v1776
        %v1793 = vunpack.c.l.b16 %v1777
        %v1794 = vunpack.c.l.b16 %v1778
        %v1795 = vpack.c.b16 %v1788, %v1787
        %v1796 = vpack.c.b16 %v1790, %v1789
        %v1797 = vpack.c.b16 %v1792, %v1791
        %v1798 = vpack.c.b16 %v1794, %v1793
        %v1804 = vsel %vm1010, %v1770, 0
        %1806 = vmatprep.subr.bf16.mxu0 0
        %1807 = vmatpush1.bf16.msra.mxu0 %v1795
        %1808 = vmatprep.subr.bf16.mxu0 0
        %1809 = vmatpush1.bf16.msra.mxu0 %v1796
        %1810 = vmatprep.subr.bf16.mxu0 0
        %1811 = vmatpush1.bf16.msra.mxu0 %v1797
        %1812 = vmatprep.subr.bf16.mxu0 0
        %1813 = vmatpush1.bf16.msra.mxu0 %v1798
        %1814 = vmatprep.subr.bf16.mxu0 0
        %1815 = vmatpush1.bf16.msra.mxu0 0
        %1816 = vmatprep.subr.bf16.mxu0 0
        %1817 = vmatpush1.bf16.msra.mxu0 0
        %1818 = vmatprep.subr.bf16.mxu0 0
        %1819 = vmatpush1.bf16.msra.mxu0 0
        %1820 = vmatprep.subr.bf16.mxu0 0
        %1821 = vmatpush1.bf16.msra.mxu0 0
        %1822 = vmatprep.subr.bf16.mxu0 0
        %1823 = vmatpush1.bf16.msra.mxu0 0
        %1824 = vmatprep.subr.bf16.mxu0 0
        %1825 = vmatpush1.bf16.msra.mxu0 0
        %1826 = vmatprep.subr.bf16.mxu0 0
        %1827 = vmatpush1.bf16.msra.mxu0 0
        %1828 = vmatprep.subr.bf16.mxu0 0
        %1829 = vmatpush1.bf16.msra.mxu0 0
        %1830 = vmatprep.subr.bf16.mxu0 0
        %1831 = vmatpush1.bf16.msra.mxu0 0
        %1832 = vmatprep.subr.bf16.mxu0 0
        %1833 = vmatpush1.bf16.msra.mxu0 0
        %1834 = vmatprep.subr.bf16.mxu0 0
        %1835 = vmatpush1.bf16.msra.mxu0 0
        %1836 = vmatprep.subr.bf16.mxu0 0
        %1837 = vmatpush1.bf16.msra.mxu0 0
        %1838 = vmatprep.mubr.bf16.mxu0 0
        %1839 = vmatmul.mubr.bf16.gmra.mrb[0].mxu0 %v1804
        %v1840 = vpop.f32.mrb[0].mxu0
        %v1841 = vadd.f32 0.0, %v1840
        %v1842 = vpop.f32.mrb[0].mxu0
        %v1843 = vpop.f32.mrb[0].mxu0
        %v1844 = vpop.f32.mrb[0].mxu0
        %1845 = vdwg.mxu0
        %v1854 = vunpack.c.l.b16 %v1613
        %v1855 = vunpack.c.l.b16 %v1614
        %v1856 = vunpack.c.l.b16 %v1615
        %v1857 = vunpack.c.l.b16 %v1616
        %v1858 = vunpack.c.l.b16 %v1617
        %v1859 = vunpack.c.l.b16 %v1618
        %v1860 = vunpack.c.l.b16 %v1619
        %v1861 = vunpack.c.l.b16 %v1620
        %v1862 = vpack.c.b16 %v1855, %v1854
        %v1863 = vpack.c.b16 %v1857, %v1856
        %v1864 = vpack.c.b16 %v1859, %v1858
        %v1865 = vpack.c.b16 %v1861, %v1860
        %v1871 = vsel %vm1010, %v1612, 0
        %1873 = vmatprep.subr.bf16.mxu0 0
        %1874 = vmatpush1.bf16.msra.mxu0 %v1862
        %1875 = vmatprep.subr.bf16.mxu0 0
        %1876 = vmatpush1.bf16.msra.mxu0 %v1863
        %1877 = vmatprep.subr.bf16.mxu0 0
        %1878 = vmatpush1.bf16.msra.mxu0 %v1864
        %1879 = vmatprep.subr.bf16.mxu0 0
        %1880 = vmatpush1.bf16.msra.mxu0 %v1865
        %1881 = vmatprep.subr.bf16.mxu0 0
        %1882 = vmatpush1.bf16.msra.mxu0 0
        %1883 = vmatprep.subr.bf16.mxu0 0
        %1884 = vmatpush1.bf16.msra.mxu0 0
        %1885 = vmatprep.subr.bf16.mxu0 0
        %1886 = vmatpush1.bf16.msra.mxu0 0
        %1887 = vmatprep.subr.bf16.mxu0 0
        %1888 = vmatpush1.bf16.msra.mxu0 0
        %1889 = vmatprep.subr.bf16.mxu0 0
        %1890 = vmatpush1.bf16.msra.mxu0 0
        %1891 = vmatprep.subr.bf16.mxu0 0
        %1892 = vmatpush1.bf16.msra.mxu0 0
        %1893 = vmatprep.subr.bf16.mxu0 0
        %1894 = vmatpush1.bf16.msra.mxu0 0
        %1895 = vmatprep.subr.bf16.mxu0 0
        %1896 = vmatpush1.bf16.msra.mxu0 0
        %1897 = vmatprep.subr.bf16.mxu0 0
        %1898 = vmatpush1.bf16.msra.mxu0 0
        %1899 = vmatprep.subr.bf16.mxu0 0
        %1900 = vmatpush1.bf16.msra.mxu0 0
        %1901 = vmatprep.subr.bf16.mxu0 0
        %1902 = vmatpush1.bf16.msra.mxu0 0
        %1903 = vmatprep.subr.bf16.mxu0 0
        %1904 = vmatpush1.bf16.msra.mxu0 0
        %1905 = vmatprep.mubr.bf16.mxu0 0
        %1906 = vmatmul.mubr.bf16.gmra.mrb[0].mxu0 %v1871
        %v1907 = vpop.f32.mrb[0].mxu0
        %v1908 = vadd.f32 %v1841, %v1907
        %v1909 = vpop.f32.mrb[0].mxu0
        %v1910 = vpop.f32.mrb[0].mxu0
        %v1911 = vpop.f32.mrb[0].mxu0
        %1912 = vdwg.mxu0
        %1913 = vrot.lane.b32.xlu0 %v1058, 96
        %v1914 = vpop.permute.xlu0 %1913
        %v1916 = vsel %vm1260, %v1914, 0
        %1918 = vmatprep.subr.bf16.mxu0 0
        %1919 = vmatpush1.bf16.xpose.msra.mxu0 %v1463
        %1920 = vmatprep.subr.bf16.mxu0 0
        %1921 = vmatpush1.bf16.xpose.msra.mxu0 0
        %1922 = vmatprep.subr.bf16.mxu0 0
        %1923 = vmatpush1.bf16.xpose.msra.mxu0 0
        %1924 = vmatprep.subr.bf16.mxu0 0
        %1925 = vmatpush1.bf16.xpose.msra.mxu0 0
        %1926 = vmatprep.subr.bf16.mxu0 0
        %1927 = vmatpush1.bf16.xpose.msra.mxu0 0
        %1928 = vmatprep.subr.bf16.mxu0 0
        %1929 = vmatpush1.bf16.xpose.msra.mxu0 0
        %1930 = vmatprep.subr.bf16.mxu0 0
        %1931 = vmatpush1.bf16.xpose.msra.mxu0 0
        %1932 = vmatprep.subr.bf16.mxu0 0
        %1933 = vmatpush1.bf16.xpose.msra.mxu0 0
        %1934 = vmatprep.subr.bf16.mxu0 0
        %1935 = vmatpush1.bf16.xpose.msra.mxu0 0
        %1936 = vmatprep.subr.bf16.mxu0 0
        %1937 = vmatpush1.bf16.xpose.msra.mxu0 0
        %1938 = vmatprep.subr.bf16.mxu0 0
        %1939 = vmatpush1.bf16.xpose.msra.mxu0 0
        %1940 = vmatprep.subr.bf16.mxu0 0
        %1941 = vmatpush1.bf16.xpose.msra.mxu0 0
        %1942 = vmatprep.subr.bf16.mxu0 0
        %1943 = vmatpush1.bf16.xpose.msra.mxu0 0
        %1944 = vmatprep.subr.bf16.mxu0 0
        %1945 = vmatpush1.bf16.xpose.msra.mxu0 0
        %1946 = vmatprep.subr.bf16.mxu0 0
        %1947 = vmatpush1.bf16.xpose.msra.mxu0 0
        %1948 = vmatprep.subr.bf16.mxu0 0
        %1949 = vmatpush1.bf16.xpose.msra.mxu0 0
        %1950 = vmatprep.mubr.bf16.mxu0 0
        %1951 = vmatmul.mubr.bf16.gmra.mrb[0].mxu0 %v1916
        %v1952 = vpop.f32.mrb[0].mxu0
        %v1953 = vadd.f32 0.0, %v1952
        %v1954 = vpop.f32.mrb[0].mxu0
        %v1955 = vpop.f32.mrb[0].mxu0
        %v1956 = vpop.f32.mrb[0].mxu0
        %1957 = vdwg.mxu0
        %v1959 = vsel %vm1010, %v1454, 0
        %1961 = vmatprep.subr.bf16.mxu0 0
        %1962 = vmatpush1.bf16.xpose.msra.mxu0 %v1509
        %1963 = vmatprep.subr.bf16.mxu0 0
        %1964 = vmatpush1.bf16.xpose.msra.mxu0 0
        %1965 = vmatprep.subr.bf16.mxu0 0
        %1966 = vmatpush1.bf16.xpose.msra.mxu0 0
        %1967 = vmatprep.subr.bf16.mxu0 0
        %1968 = vmatpush1.bf16.xpose.msra.mxu0 0
        %1969 = vmatprep.subr.bf16.mxu0 0
        %1970 = vmatpush1.bf16.xpose.msra.mxu0 0
        %1971 = vmatprep.subr.bf16.mxu0 0
        %1972 = vmatpush1.bf16.xpose.msra.mxu0 0
        %1973 = vmatprep.subr.bf16.mxu0 0
        %1974 = vmatpush1.bf16.xpose.msra.mxu0 0
        %1975 = vmatprep.subr.bf16.mxu0 0
        %1976 = vmatpush1.bf16.xpose.msra.mxu0 0
        %1977 = vmatprep.subr.bf16.mxu0 0
        %1978 = vmatpush1.bf16.xpose.msra.mxu0 0
        %1979 = vmatprep.subr.bf16.mxu0 0
        %1980 = vmatpush1.bf16.xpose.msra.mxu0 0
        %1981 = vmatprep.subr.bf16.mxu0 0
        %1982 = vmatpush1.bf16.xpose.msra.mxu0 0
        %1983 = vmatprep.subr.bf16.mxu0 0
        %1984 = vmatpush1.bf16.xpose.msra.mxu0 0
        %1985 = vmatprep.subr.bf16.mxu0 0
        %1986 = vmatpush1.bf16.xpose.msra.mxu0 0
        %1987 = vmatprep.subr.bf16.mxu0 0
        %1988 = vmatpush1.bf16.xpose.msra.mxu0 0
        %1989 = vmatprep.subr.bf16.mxu0 0
        %1990 = vmatpush1.bf16.xpose.msra.mxu0 0
        %1991 = vmatprep.subr.bf16.mxu0 0
        %1992 = vmatpush1.bf16.xpose.msra.mxu0 0
        %1993 = vmatprep.mubr.bf16.mxu0 0
        %1994 = vmatmul.mubr.bf16.gmra.mrb[0].mxu0 %v1959
        %v1995 = vpop.f32.mrb[0].mxu0
        %v1996 = vadd.f32 %v1953, %v1995
        %v1997 = vpop.f32.mrb[0].mxu0
        %v1998 = vpop.f32.mrb[0].mxu0
        %v1999 = vpop.f32.mrb[0].mxu0
        %2000 = vdwg.mxu0
        %v2001 = vmul.f32 %v1996, 0.14433756
        %v2002 = vadd.f32 %v2001, %v1455
        %v2003 = vsel %vm1553, %v2002, -inf
        %2004 = vmax.xlane.f32.xlu0 %v2003
        %v2005 = vpop.xlane.xlu0 %2004
        %v2006 = vsub.f32 %v2002, %v2005
        %v2007 = vmul.f32 %v2006, 1.442695
        %v2008 = vpow.pop %v2007
        %v2009 = vsel %vm1553, %v2008, 0.0
        %2010 = vadd.xlane.f32.xlu0 %v2009
        %v2011 = vpop.xlane.xlu0 %2010
        %v2012 = vrcp.pop %v2011
        %v2013 = vmul.f32 %v2008, %v2012
        %v2014 = vpack.c.bf16 %v2013, %v2013
        %v2016 = vsel %vm1553, %v2014, 0
        %2018 = vmatprep.subr.bf16.mxu0 0
        %2019 = vmatpush1.bf16.msra.mxu0 %v1570
        %2020 = vmatprep.subr.bf16.mxu0 0
        %2021 = vmatpush1.bf16.msra.mxu0 0
        %2022 = vmatprep.subr.bf16.mxu0 0
        %2023 = vmatpush1.bf16.msra.mxu0 0
        %2024 = vmatprep.subr.bf16.mxu0 0
        %2025 = vmatpush1.bf16.msra.mxu0 0
        %2026 = vmatprep.subr.bf16.mxu0 0
        %2027 = vmatpush1.bf16.msra.mxu0 0
        %2028 = vmatprep.subr.bf16.mxu0 0
        %2029 = vmatpush1.bf16.msra.mxu0 0
        %2030 = vmatprep.subr.bf16.mxu0 0
        %2031 = vmatpush1.bf16.msra.mxu0 0
        %2032 = vmatprep.subr.bf16.mxu0 0
        %2033 = vmatpush1.bf16.msra.mxu0 0
        %2034 = vmatprep.subr.bf16.mxu0 0
        %2035 = vmatpush1.bf16.msra.mxu0 0
        %2036 = vmatprep.subr.bf16.mxu0 0
        %2037 = vmatpush1.bf16.msra.mxu0 0
        %2038 = vmatprep.subr.bf16.mxu0 0
        %2039 = vmatpush1.bf16.msra.mxu0 0
        %2040 = vmatprep.subr.bf16.mxu0 0
        %2041 = vmatpush1.bf16.msra.mxu0 0
        %2042 = vmatprep.subr.bf16.mxu0 0
        %2043 = vmatpush1.bf16.msra.mxu0 0
        %2044 = vmatprep.subr.bf16.mxu0 0
        %2045 = vmatpush1.bf16.msra.mxu0 0
        %2046 = vmatprep.subr.bf16.mxu0 0
        %2047 = vmatpush1.bf16.msra.mxu0 0
        %2048 = vmatprep.subr.bf16.mxu0 0
        %2049 = vmatpush1.bf16.msra.mxu0 0
        %2050 = vmatprep.mubr.bf16.mxu0 0
        %2051 = vmatmul.mubr.bf16.gmra.mrb[0].mxu0 %v2016
        %v2052 = vpop.f32.mrb[0].mxu0
        %v2053 = vadd.f32 0.0, %v2052
        %v2054 = vpop.f32.mrb[0].mxu0
        %v2055 = vpop.f32.mrb[0].mxu0
        %v2056 = vpop.f32.mrb[0].mxu0
        %2057 = vdwg.mxu0
        %v2058 = vpack.c.bf16 %v2053, %v2053
        %v2059 = vld [vmem:[#allocation5 + $0x40] sm:$0xf]
        %v2060 = vld [vmem:[#allocation5 + $0x44] sm:$0xf]
        %v2061 = vld [vmem:[#allocation5 + $0x48] sm:$0xf]
        %v2062 = vld [vmem:[#allocation5 + $0x4c] sm:$0xf]
        %v2063 = vld [vmem:[#allocation5 + $0x50] sm:$0xf]
        %v2064 = vld [vmem:[#allocation5 + $0x54] sm:$0xf]
        %v2065 = vld [vmem:[#allocation5 + $0x58] sm:$0xf]
        %v2066 = vld [vmem:[#allocation5 + $0x5c] sm:$0xf]
        %v2075 = vunpack.c.l.b16 %v2059
        %v2076 = vunpack.c.l.b16 %v2060
        %v2077 = vunpack.c.l.b16 %v2061
        %v2078 = vunpack.c.l.b16 %v2062
        %v2079 = vunpack.c.l.b16 %v2063
        %v2080 = vunpack.c.l.b16 %v2064
        %v2081 = vunpack.c.l.b16 %v2065
        %v2082 = vunpack.c.l.b16 %v2066
        %v2083 = vpack.c.b16 %v2076, %v2075
        %v2084 = vpack.c.b16 %v2078, %v2077
        %v2085 = vpack.c.b16 %v2080, %v2079
        %v2086 = vpack.c.b16 %v2082, %v2081
        %v2092 = vsel %vm1010, %v2058, 0
        %2094 = vmatprep.subr.bf16.mxu0 0
        %2095 = vmatpush1.bf16.msra.mxu0 %v2083
        %2096 = vmatprep.subr.bf16.mxu0 0
        %2097 = vmatpush1.bf16.msra.mxu0 %v2084
        %2098 = vmatprep.subr.bf16.mxu0 0
        %2099 = vmatpush1.bf16.msra.mxu0 %v2085
        %2100 = vmatprep.subr.bf16.mxu0 0
        %2101 = vmatpush1.bf16.msra.mxu0 %v2086
        %2102 = vmatprep.subr.bf16.mxu0 0
        %2103 = vmatpush1.bf16.msra.mxu0 0
        %2104 = vmatprep.subr.bf16.mxu0 0
        %2105 = vmatpush1.bf16.msra.mxu0 0
        %2106 = vmatprep.subr.bf16.mxu0 0
        %2107 = vmatpush1.bf16.msra.mxu0 0
        %2108 = vmatprep.subr.bf16.mxu0 0
        %2109 = vmatpush1.bf16.msra.mxu0 0
        %2110 = vmatprep.subr.bf16.mxu0 0
        %2111 = vmatpush1.bf16.msra.mxu0 0
        %2112 = vmatprep.subr.bf16.mxu0 0
        %2113 = vmatpush1.bf16.msra.mxu0 0
        %2114 = vmatprep.subr.bf16.mxu0 0
        %2115 = vmatpush1.bf16.msra.mxu0 0
        %2116 = vmatprep.subr.bf16.mxu0 0
        %2117 = vmatpush1.bf16.msra.mxu0 0
        %2118 = vmatprep.subr.bf16.mxu0 0
        %2119 = vmatpush1.bf16.msra.mxu0 0
        %2120 = vmatprep.subr.bf16.mxu0 0
        %2121 = vmatpush1.bf16.msra.mxu0 0
        %2122 = vmatprep.subr.bf16.mxu0 0
        %2123 = vmatpush1.bf16.msra.mxu0 0
        %2124 = vmatprep.subr.bf16.mxu0 0
        %2125 = vmatpush1.bf16.msra.mxu0 0
        %2126 = vmatprep.mubr.bf16.mxu0 0
        %2127 = vmatmul.mubr.bf16.gmra.mrb[0].mxu0 %v2092
        %v2128 = vpop.f32.mrb[0].mxu0
        %v2129 = vadd.f32 0.0, %v2128
        %v2130 = vpop.f32.mrb[0].mxu0
        %v2131 = vpop.f32.mrb[0].mxu0
        %v2132 = vpop.f32.mrb[0].mxu0
        %2133 = vdwg.mxu0
        %v2134 = vadd.f32 %v1908, %v2129
        %2135 = vrot.lane.b32.xlu0 %v1058, 80
        %v2136 = vpop.permute.xlu0 %2135
        %v2138 = vsel %vm1260, %v2136, 0
        %2140 = vmatprep.subr.bf16.mxu0 0
        %2141 = vmatpush1.bf16.xpose.msra.mxu0 %v1463
        %2142 = vmatprep.subr.bf16.mxu0 0
        %2143 = vmatpush1.bf16.xpose.msra.mxu0 0
        %2144 = vmatprep.subr.bf16.mxu0 0
        %2145 = vmatpush1.bf16.xpose.msra.mxu0 0
        %2146 = vmatprep.subr.bf16.mxu0 0
        %2147 = vmatpush1.bf16.xpose.msra.mxu0 0
        %2148 = vmatprep.subr.bf16.mxu0 0
        %2149 = vmatpush1.bf16.xpose.msra.mxu0 0
        %2150 = vmatprep.subr.bf16.mxu0 0
        %2151 = vmatpush1.bf16.xpose.msra.mxu0 0
        %2152 = vmatprep.subr.bf16.mxu0 0
        %2153 = vmatpush1.bf16.xpose.msra.mxu0 0
        %2154 = vmatprep.subr.bf16.mxu0 0
        %2155 = vmatpush1.bf16.xpose.msra.mxu0 0
        %2156 = vmatprep.subr.bf16.mxu0 0
        %2157 = vmatpush1.bf16.xpose.msra.mxu0 0
        %2158 = vmatprep.subr.bf16.mxu0 0
        %2159 = vmatpush1.bf16.xpose.msra.mxu0 0
        %2160 = vmatprep.subr.bf16.mxu0 0
        %2161 = vmatpush1.bf16.xpose.msra.mxu0 0
        %2162 = vmatprep.subr.bf16.mxu0 0
        %2163 = vmatpush1.bf16.xpose.msra.mxu0 0
        %2164 = vmatprep.subr.bf16.mxu0 0
        %2165 = vmatpush1.bf16.xpose.msra.mxu0 0
        %2166 = vmatprep.subr.bf16.mxu0 0
        %2167 = vmatpush1.bf16.xpose.msra.mxu0 0
        %2168 = vmatprep.subr.bf16.mxu0 0
        %2169 = vmatpush1.bf16.xpose.msra.mxu0 0
        %2170 = vmatprep.subr.bf16.mxu0 0
        %2171 = vmatpush1.bf16.xpose.msra.mxu0 0
        %2172 = vmatprep.mubr.bf16.mxu0 0
        %2173 = vmatmul.mubr.bf16.gmra.mrb[0].mxu0 %v2138
        %v2174 = vpop.f32.mrb[0].mxu0
        %v2175 = vadd.f32 0.0, %v2174
        %v2176 = vpop.f32.mrb[0].mxu0
        %v2177 = vpop.f32.mrb[0].mxu0
        %v2178 = vpop.f32.mrb[0].mxu0
        %2179 = vdwg.mxu0
        %2181 = vrot.lane.b32.xlu0 %v1454, 64
        %v2182 = vpop.permute.xlu0 %2181
        %v2184 = vsel %vm1010, %v2182, 0
        %2186 = vmatprep.subr.bf16.mxu0 0
        %2187 = vmatpush1.bf16.xpose.msra.mxu0 %v1509
        %2188 = vmatprep.subr.bf16.mxu0 0
        %2189 = vmatpush1.bf16.xpose.msra.mxu0 0
        %2190 = vmatprep.subr.bf16.mxu0 0
        %2191 = vmatpush1.bf16.xpose.msra.mxu0 0
        %2192 = vmatprep.subr.bf16.mxu0 0
        %2193 = vmatpush1.bf16.xpose.msra.mxu0 0
        %2194 = vmatprep.subr.bf16.mxu0 0
        %2195 = vmatpush1.bf16.xpose.msra.mxu0 0
        %2196 = vmatprep.subr.bf16.mxu0 0
        %2197 = vmatpush1.bf16.xpose.msra.mxu0 0
        %2198 = vmatprep.subr.bf16.mxu0 0
        %2199 = vmatpush1.bf16.xpose.msra.mxu0 0
        %2200 = vmatprep.subr.bf16.mxu0 0
        %2201 = vmatpush1.bf16.xpose.msra.mxu0 0
        %2202 = vmatprep.subr.bf16.mxu0 0
        %2203 = vmatpush1.bf16.xpose.msra.mxu0 0
        %2204 = vmatprep.subr.bf16.mxu0 0
        %2205 = vmatpush1.bf16.xpose.msra.mxu0 0
        %2206 = vmatprep.subr.bf16.mxu0 0
        %2207 = vmatpush1.bf16.xpose.msra.mxu0 0
        %2208 = vmatprep.subr.bf16.mxu0 0
        %2209 = vmatpush1.bf16.xpose.msra.mxu0 0
        %2210 = vmatprep.subr.bf16.mxu0 0
        %2211 = vmatpush1.bf16.xpose.msra.mxu0 0
        %2212 = vmatprep.subr.bf16.mxu0 0
        %2213 = vmatpush1.bf16.xpose.msra.mxu0 0
        %2214 = vmatprep.subr.bf16.mxu0 0
        %2215 = vmatpush1.bf16.xpose.msra.mxu0 0
        %2216 = vmatprep.subr.bf16.mxu0 0
        %2217 = vmatpush1.bf16.xpose.msra.mxu0 0
        %2218 = vmatprep.mubr.bf16.mxu0 0
        %2219 = vmatmul.mubr.bf16.gmra.mrb[0].mxu0 %v2184
        %v2220 = vpop.f32.mrb[0].mxu0
        %v2221 = vadd.f32 %v2175, %v2220
        %v2222 = vpop.f32.mrb[0].mxu0
        %v2223 = vpop.f32.mrb[0].mxu0
        %v2224 = vpop.f32.mrb[0].mxu0
        %2225 = vdwg.mxu0
        %v2226 = vmul.f32 %v2221, 0.14433756
        %v2227 = vadd.f32 %v2226, %v1455
        %v2228 = vsel %vm1553, %v2227, -inf
        %2229 = vmax.xlane.f32.xlu0 %v2228
        %v2230 = vpop.xlane.xlu0 %2229
        %v2231 = vsub.f32 %v2227, %v2230
        %v2232 = vmul.f32 %v2231, 1.442695
        %v2233 = vpow.pop %v2232
        %v2234 = vsel %vm1553, %v2233, 0.0
        %2235 = vadd.xlane.f32.xlu0 %v2234
        %v2236 = vpop.xlane.xlu0 %2235
        %v2237 = vrcp.pop %v2236
        %v2238 = vmul.f32 %v2233, %v2237
        %v2239 = vpack.c.bf16 %v2238, %v2238
        %v2241 = vsel %vm1553, %v2239, 0
        %2243 = vmatprep.subr.bf16.mxu0 0
        %2244 = vmatpush1.bf16.msra.mxu0 %v1570
        %2245 = vmatprep.subr.bf16.mxu0 0
        %2246 = vmatpush1.bf16.msra.mxu0 0
        %2247 = vmatprep.subr.bf16.mxu0 0
        %2248 = vmatpush1.bf16.msra.mxu0 0
        %2249 = vmatprep.subr.bf16.mxu0 0
        %2250 = vmatpush1.bf16.msra.mxu0 0
        %2251 = vmatprep.subr.bf16.mxu0 0
        %2252 = vmatpush1.bf16.msra.mxu0 0
        %2253 = vmatprep.subr.bf16.mxu0 0
        %2254 = vmatpush1.bf16.msra.mxu0 0
        %2255 = vmatprep.subr.bf16.mxu0 0
        %2256 = vmatpush1.bf16.msra.mxu0 0
        %2257 = vmatprep.subr.bf16.mxu0 0
        %2258 = vmatpush1.bf16.msra.mxu0 0
        %2259 = vmatprep.subr.bf16.mxu0 0
        %2260 = vmatpush1.bf16.msra.mxu0 0
        %2261 = vmatprep.subr.bf16.mxu0 0
        %2262 = vmatpush1.bf16.msra.mxu0 0
        %2263 = vmatprep.subr.bf16.mxu0 0
        %2264 = vmatpush1.bf16.msra.mxu0 0
        %2265 = vmatprep.subr.bf16.mxu0 0
        %2266 = vmatpush1.bf16.msra.mxu0 0
        %2267 = vmatprep.subr.bf16.mxu0 0
        %2268 = vmatpush1.bf16.msra.mxu0 0
        %2269 = vmatprep.subr.bf16.mxu0 0
        %2270 = vmatpush1.bf16.msra.mxu0 0
        %2271 = vmatprep.subr.bf16.mxu0 0
        %2272 = vmatpush1.bf16.msra.mxu0 0
        %2273 = vmatprep.subr.bf16.mxu0 0
        %2274 = vmatpush1.bf16.msra.mxu0 0
        %2275 = vmatprep.mubr.bf16.mxu0 0
        %2276 = vmatmul.mubr.bf16.gmra.mrb[0].mxu0 %v2241
        %v2277 = vpop.f32.mrb[0].mxu0
        %v2278 = vadd.f32 0.0, %v2277
        %v2279 = vpop.f32.mrb[0].mxu0
        %v2280 = vpop.f32.mrb[0].mxu0
        %v2281 = vpop.f32.mrb[0].mxu0
        %2282 = vdwg.mxu0
        %v2283 = vpack.c.bf16 %v2278, %v2278
        %v2284 = vld [vmem:[#allocation5 + $0x60] sm:$0xf]
        %v2285 = vld [vmem:[#allocation5 + $0x64] sm:$0xf]
        %v2286 = vld [vmem:[#allocation5 + $0x68] sm:$0xf]
        %v2287 = vld [vmem:[#allocation5 + $0x6c] sm:$0xf]
        %v2288 = vld [vmem:[#allocation5 + $0x70] sm:$0xf]
        %v2289 = vld [vmem:[#allocation5 + $0x74] sm:$0xf]
        %v2290 = vld [vmem:[#allocation5 + $0x78] sm:$0xf]
        %v2291 = vld [vmem:[#allocation5 + $0x7c] sm:$0xf]
        %v2300 = vunpack.c.l.b16 %v2284
        %v2301 = vunpack.c.l.b16 %v2285
        %v2302 = vunpack.c.l.b16 %v2286
        %v2303 = vunpack.c.l.b16 %v2287
        %v2304 = vunpack.c.l.b16 %v2288
        %v2305 = vunpack.c.l.b16 %v2289
        %v2306 = vunpack.c.l.b16 %v2290
        %v2307 = vunpack.c.l.b16 %v2291
        %v2308 = vpack.c.b16 %v2301, %v2300
        %v2309 = vpack.c.b16 %v2303, %v2302
        %v2310 = vpack.c.b16 %v2305, %v2304
        %v2311 = vpack.c.b16 %v2307, %v2306
        %v2317 = vsel %vm1010, %v2283, 0
        %2319 = vmatprep.subr.bf16.mxu0 0
        %2320 = vmatpush1.bf16.msra.mxu0 %v2308
        %2321 = vmatprep.subr.bf16.mxu0 0
        %2322 = vmatpush1.bf16.msra.mxu0 %v2309
        %2323 = vmatprep.subr.bf16.mxu0 0
        %2324 = vmatpush1.bf16.msra.mxu0 %v2310
        %2325 = vmatprep.subr.bf16.mxu0 0
        %2326 = vmatpush1.bf16.msra.mxu0 %v2311
        %2327 = vmatprep.subr.bf16.mxu0 0
        %2328 = vmatpush1.bf16.msra.mxu0 0
        %2329 = vmatprep.subr.bf16.mxu0 0
        %2330 = vmatpush1.bf16.msra.mxu0 0
        %2331 = vmatprep.subr.bf16.mxu0 0
        %2332 = vmatpush1.bf16.msra.mxu0 0
        %2333 = vmatprep.subr.bf16.mxu0 0
        %2334 = vmatpush1.bf16.msra.mxu0 0
        %2335 = vmatprep.subr.bf16.mxu0 0
        %2336 = vmatpush1.bf16.msra.mxu0 0
        %2337 = vmatprep.subr.bf16.mxu0 0
        %2338 = vmatpush1.bf16.msra.mxu0 0
        %2339 = vmatprep.subr.bf16.mxu0 0
        %2340 = vmatpush1.bf16.msra.mxu0 0
        %2341 = vmatprep.subr.bf16.mxu0 0
        %2342 = vmatpush1.bf16.msra.mxu0 0
        %2343 = vmatprep.subr.bf16.mxu0 0
        %2344 = vmatpush1.bf16.msra.mxu0 0
        %2345 = vmatprep.subr.bf16.mxu0 0
        %2346 = vmatpush1.bf16.msra.mxu0 0
        %2347 = vmatprep.subr.bf16.mxu0 0
        %2348 = vmatpush1.bf16.msra.mxu0 0
        %2349 = vmatprep.subr.bf16.mxu0 0
        %2350 = vmatpush1.bf16.msra.mxu0 0
        %2351 = vmatprep.mubr.bf16.mxu0 0
        %2352 = vmatmul.mubr.bf16.gmra.mrb[0].mxu0 %v2317
        %v2353 = vpop.f32.mrb[0].mxu0
        %v2354 = vadd.f32 0.0, %v2353
        %v2355 = vpop.f32.mrb[0].mxu0
        %v2356 = vpop.f32.mrb[0].mxu0
        %v2357 = vpop.f32.mrb[0].mxu0
        %2358 = vdwg.mxu0
        %v2359 = vadd.f32 %v2134, %v2354
        %v2360 = vpack.c.bf16 %v2359, %v2359
        %v2361 = vld [vmem:[#allocation7] sm:$0xff]
        %v2362 = vld [vmem:[#allocation7 + $0x8] sm:$0xff]
        %v2363 = vld [vmem:[#allocation7 + $0x10] sm:$0xff]
        %v2364 = vld [vmem:[#allocation7 + $0x18] sm:$0xff]
        %v2365 = vld [vmem:[#allocation7 + $0x20] sm:$0xff]
        %v2366 = vld [vmem:[#allocation7 + $0x28] sm:$0xff]
        %v2367 = vld [vmem:[#allocation7 + $0x30] sm:$0xff]
        %v2368 = vld [vmem:[#allocation7 + $0x38] sm:$0xff]
        %v2369 = vld [vmem:[#allocation7 + $0x40] sm:$0xff]
        %v2370 = vld [vmem:[#allocation7 + $0x48] sm:$0xff]
        %v2371 = vld [vmem:[#allocation7 + $0x50] sm:$0xff]
        %v2372 = vld [vmem:[#allocation7 + $0x58] sm:$0xff]
        %v2373 = vld [vmem:[#allocation7 + $0x60] sm:$0xff]
        %v2374 = vld [vmem:[#allocation7 + $0x68] sm:$0xff]
        %v2375 = vld [vmem:[#allocation7 + $0x70] sm:$0xff]
        %v2376 = vld [vmem:[#allocation7 + $0x78] sm:$0xff]
        %v2393 = vunpack.c.l.b16 %v2361
        %v2394 = vunpack.c.h.b16 %v2361
        %v2395 = vunpack.c.l.b16 %v2362
        %v2396 = vunpack.c.h.b16 %v2362
        %v2397 = vunpack.c.l.b16 %v2363
        %v2398 = vunpack.c.h.b16 %v2363
        %v2399 = vunpack.c.l.b16 %v2364
        %v2400 = vunpack.c.h.b16 %v2364
        %v2401 = vunpack.c.l.b16 %v2365
        %v2402 = vunpack.c.h.b16 %v2365
        %v2403 = vunpack.c.l.b16 %v2366
        %v2404 = vunpack.c.h.b16 %v2366
        %v2405 = vunpack.c.l.b16 %v2367
        %v2406 = vunpack.c.h.b16 %v2367
        %v2407 = vunpack.c.l.b16 %v2368
        %v2408 = vunpack.c.h.b16 %v2368
        %v2409 = vunpack.c.l.b16 %v2369
        %v2410 = vunpack.c.h.b16 %v2369
        %v2411 = vunpack.c.l.b16 %v2370
        %v2412 = vunpack.c.h.b16 %v2370
        %v2413 = vunpack.c.l.b16 %v2371
        %v2414 = vunpack.c.h.b16 %v2371
        %v2415 = vunpack.c.l.b16 %v2372
        %v2416 = vunpack.c.h.b16 %v2372
        %v2417 = vunpack.c.l.b16 %v2373
        %v2418 = vunpack.c.h.b16 %v2373
        %v2419 = vunpack.c.l.b16 %v2374
        %v2420 = vunpack.c.h.b16 %v2374
        %v2421 = vunpack.c.l.b16 %v2375
        %v2422 = vunpack.c.h.b16 %v2375
        %v2423 = vunpack.c.l.b16 %v2376
        %v2424 = vunpack.c.h.b16 %v2376
        %v2425 = vpack.c.b16 %v2395, %v2393
        %v2426 = vpack.c.b16 %v2396, %v2394
        %v2427 = vpack.c.b16 %v2399, %v2397
        %v2428 = vpack.c.b16 %v2400, %v2398
        %v2429 = vpack.c.b16 %v2403, %v2401
        %v2430 = vpack.c.b16 %v2404, %v2402
        %v2431 = vpack.c.b16 %v2407, %v2405
        %v2432 = vpack.c.b16 %v2408, %v2406
        %v2433 = vpack.c.b16 %v2411, %v2409
        %v2434 = vpack.c.b16 %v2412, %v2410
        %v2435 = vpack.c.b16 %v2415, %v2413
        %v2436 = vpack.c.b16 %v2416, %v2414
        %v2437 = vpack.c.b16 %v2419, %v2417
        %v2438 = vpack.c.b16 %v2420, %v2418
        %v2439 = vpack.c.b16 %v2423, %v2421
        %v2440 = vpack.c.b16 %v2424, %v2422
        %2457 = vmatprep.subr.bf16.mxu0 %v2426
        %2458 = vmatpush1.bf16.msra.mxu0 %v2425
        %2459 = vmatprep.subr.bf16.mxu0 %v2428
        %2460 = vmatpush1.bf16.msra.mxu0 %v2427
        %2461 = vmatprep.subr.bf16.mxu0 %v2430
        %2462 = vmatpush1.bf16.msra.mxu0 %v2429
        %2463 = vmatprep.subr.bf16.mxu0 %v2432
        %2464 = vmatpush1.bf16.msra.mxu0 %v2431
        %2465 = vmatprep.subr.bf16.mxu0 %v2434
        %2466 = vmatpush1.bf16.msra.mxu0 %v2433
        %2467 = vmatprep.subr.bf16.mxu0 %v2436
        %2468 = vmatpush1.bf16.msra.mxu0 %v2435
        %2469 = vmatprep.subr.bf16.mxu0 %v2438
        %2470 = vmatpush1.bf16.msra.mxu0 %v2437
        %2471 = vmatprep.subr.bf16.mxu0 %v2440
        %2472 = vmatpush1.bf16.msra.mxu0 %v2439
        %2473 = vmatprep.subr.bf16.mxu0 0
        %2474 = vmatpush1.bf16.msra.mxu0 0
        %2475 = vmatprep.subr.bf16.mxu0 0
        %2476 = vmatpush1.bf16.msra.mxu0 0
        %2477 = vmatprep.subr.bf16.mxu0 0
        %2478 = vmatpush1.bf16.msra.mxu0 0
        %2479 = vmatprep.subr.bf16.mxu0 0
        %2480 = vmatpush1.bf16.msra.mxu0 0
        %2481 = vmatprep.subr.bf16.mxu0 0
        %2482 = vmatpush1.bf16.msra.mxu0 0
        %2483 = vmatprep.subr.bf16.mxu0 0
        %2484 = vmatpush1.bf16.msra.mxu0 0
        %2485 = vmatprep.subr.bf16.mxu0 0
        %2486 = vmatpush1.bf16.msra.mxu0 0
        %2487 = vmatprep.subr.bf16.mxu0 0
        %2488 = vmatpush1.bf16.msra.mxu0 0
        %2489 = vmatprep.mubr.bf16.mxu0 0
        %2490 = vmatmul.mubr.bf16.gmra.mrb[0].mxu0 %v2360
        %v2491 = vpop.f32.mrb[0].mxu0
        %v2492 = vadd.f32 0.0, %v2491
        %v2493 = vpop.f32.mrb[0].mxu0
        %v2494 = vadd.f32 0.0, %v2493
        %v2495 = vpop.f32.mrb[0].mxu0
        %v2496 = vpop.f32.mrb[0].mxu0
        %2497 = vdwg.mxu0
        %v2498 = vpack.c.bf16 %v2492, %v2492
        %v2499 = vpack.c.bf16 %v2494, %v2494
        %v2502 = vunpack.c.l.b16 %v2498
        %v2503 = vunpack.c.l.b16 %v2499
        %v2504 = vpack.c.b16 %v2503, %v2502
        %v2506 = vadd.bf16 %v711, %v2504
        %v2507 = vld [vmem:[#allocation8] sm:$0x3]
        %v2508 = vunpack.c.l.bf16 %v2506
        %v2509 = vunpack.c.h.bf16 %v2506
        %v2510 = vmul.f32 %v2508, %v2508
        %v2511 = vmul.f32 %v2509, %v2509
        %v2512 = vadd.f32 %v2510, %v2511
        %2513 = vadd.xlane.f32.xlu0 %v2512
        %v2514 = vpop.xlane.xlu0 %2513
        %v2515 = vmul.f32 %v2514, %v720
        %v2516 = vadd.f32 %v2515, 1e-06
        %v2517 = vrsqrt.pop %v2516
        %v2518 = vmul.f32 %v2508, %v2517
        %v2519 = vmul.f32 %v2509, %v2517
        %v2521 = vlaneseq
        %v2522 = vshrl.u32 %v2521, 7
        %v2523 = vsub.s32 0, %v2522
        %v2524 = vrot.slane %v2507, %v2523
        %v2525 = vlaneseq
        %v2526 = vshrl.u32 %v2525, 7
        %v2527 = vsub.s32 1, %v2526
        %v2528 = vrot.slane %v2507, %v2527
        %v2531 = vmul.f32 %v2518, %v2524
        %v2532 = vmul.f32 %v2519, %v2528
        %v2533 = vpack.c.bf16 %v2531, %v2531
        %v2534 = vpack.c.bf16 %v2532, %v2532
        %v2535 = vld [vmem:[%s9] sm:$0xff]
        %v2536 = vld [vmem:[%s9 + $0x8] sm:$0xff]
        %v2537 = vld [vmem:[%s9 + $0x10] sm:$0xff]
        %v2538 = vld [vmem:[%s9 + $0x18] sm:$0xff]
        %v2539 = vld [vmem:[%s9 + $0x20] sm:$0xff]
        %v2540 = vld [vmem:[%s9 + $0x28] sm:$0xff]
        %v2541 = vld [vmem:[%s9 + $0x30] sm:$0xff]
        %v2542 = vld [vmem:[%s9 + $0x38] sm:$0xff]
        %v2543 = vld [vmem:[%s9 + $0x40] sm:$0xff]
        %v2544 = vld [vmem:[%s9 + $0x48] sm:$0xff]
        %v2545 = vld [vmem:[%s9 + $0x50] sm:$0xff]
        %v2546 = vld [vmem:[%s9 + $0x58] sm:$0xff]
        %v2547 = vld [vmem:[%s9 + $0x60] sm:$0xff]
        %v2548 = vld [vmem:[%s9 + $0x68] sm:$0xff]
        %v2549 = vld [vmem:[%s9 + $0x70] sm:$0xff]
        %v2550 = vld [vmem:[%s9 + $0x78] sm:$0xff]
        %v2551 = vld [vmem:[%s9 + $0x80] sm:$0xff]
        %v2552 = vld [vmem:[%s9 + $0x88] sm:$0xff]
        %v2553 = vld [vmem:[%s9 + $0x90] sm:$0xff]
        %v2554 = vld [vmem:[%s9 + $0x98] sm:$0xff]
        %v2555 = vld [vmem:[%s9 + $0xa0] sm:$0xff]
        %v2556 = vld [vmem:[%s9 + $0xa8] sm:$0xff]
        %v2557 = vld [vmem:[%s9 + $0xb0] sm:$0xff]
        %v2558 = vld [vmem:[%s9 + $0xb8] sm:$0xff]
        %v2559 = vld [vmem:[%s9 + $0xc0] sm:$0xff]
        %v2560 = vld [vmem:[%s9 + $0xc8] sm:$0xff]
        %v2561 = vld [vmem:[%s9 + $0xd0] sm:$0xff]
        %v2562 = vld [vmem:[%s9 + $0xd8] sm:$0xff]
        %v2563 = vld [vmem:[%s9 + $0xe0] sm:$0xff]
        %v2564 = vld [vmem:[%s9 + $0xe8] sm:$0xff]
        %v2565 = vld [vmem:[%s9 + $0xf0] sm:$0xff]
        %v2566 = vld [vmem:[%s9 + $0xf8] sm:$0xff]
        %v2567 = vld [vmem:[%s9 + $0x100] sm:$0xff]
        %v2568 = vld [vmem:[%s9 + $0x108] sm:$0xff]
        %v2569 = vld [vmem:[%s9 + $0x110] sm:$0xff]
        %v2570 = vld [vmem:[%s9 + $0x118] sm:$0xff]
        %v2571 = vld [vmem:[%s9 + $0x120] sm:$0xff]
        %v2572 = vld [vmem:[%s9 + $0x128] sm:$0xff]
        %v2573 = vld [vmem:[%s9 + $0x130] sm:$0xff]
        %v2574 = vld [vmem:[%s9 + $0x138] sm:$0xff]
        %v2575 = vld [vmem:[%s9 + $0x140] sm:$0xff]
        %v2576 = vld [vmem:[%s9 + $0x148] sm:$0xff]
        %v2577 = vld [vmem:[%s9 + $0x150] sm:$0xff]
        %v2578 = vld [vmem:[%s9 + $0x158] sm:$0xff]
        %v2579 = vld [vmem:[%s9 + $0x160] sm:$0xff]
        %v2580 = vld [vmem:[%s9 + $0x168] sm:$0xff]
        %v2581 = vld [vmem:[%s9 + $0x170] sm:$0xff]
        %v2582 = vld [vmem:[%s9 + $0x178] sm:$0xff]
        %v2583 = vld [vmem:[%s9 + $0x180] sm:$0xff]
        %v2584 = vld [vmem:[%s9 + $0x188] sm:$0xff]
        %v2585 = vld [vmem:[%s9 + $0x190] sm:$0xff]
        %v2586 = vld [vmem:[%s9 + $0x198] sm:$0xff]
        %v2587 = vld [vmem:[%s9 + $0x1a0] sm:$0xff]
        %v2588 = vld [vmem:[%s9 + $0x1a8] sm:$0xff]
        %v2589 = vld [vmem:[%s9 + $0x1b0] sm:$0xff]
        %v2590 = vld [vmem:[%s9 + $0x1b8] sm:$0xff]
        %v2591 = vld [vmem:[%s9 + $0x1c0] sm:$0xff]
        %v2592 = vld [vmem:[%s9 + $0x1c8] sm:$0xff]
        %v2593 = vld [vmem:[%s9 + $0x1d0] sm:$0xff]
        %v2594 = vld [vmem:[%s9 + $0x1d8] sm:$0xff]
        %v2595 = vld [vmem:[%s9 + $0x1e0] sm:$0xff]
        %v2596 = vld [vmem:[%s9 + $0x1e8] sm:$0xff]
        %v2597 = vld [vmem:[%s9 + $0x1f0] sm:$0xff]
        %v2598 = vld [vmem:[%s9 + $0x1f8] sm:$0xff]
        %v2663 = vunpack.c.l.b16 %v2535
        %v2664 = vunpack.c.h.b16 %v2535
        %v2665 = vunpack.c.l.b16 %v2536
        %v2666 = vunpack.c.h.b16 %v2536
        %v2667 = vunpack.c.l.b16 %v2537
        %v2668 = vunpack.c.h.b16 %v2537
        %v2669 = vunpack.c.l.b16 %v2538
        %v2670 = vunpack.c.h.b16 %v2538
        %v2671 = vunpack.c.l.b16 %v2539
        %v2672 = vunpack.c.h.b16 %v2539
        %v2673 = vunpack.c.l.b16 %v2540
        %v2674 = vunpack.c.h.b16 %v2540
        %v2675 = vunpack.c.l.b16 %v2541
        %v2676 = vunpack.c.h.b16 %v2541
        %v2677 = vunpack.c.l.b16 %v2542
        %v2678 = vunpack.c.h.b16 %v2542
        %v2679 = vunpack.c.l.b16 %v2543
        %v2680 = vunpack.c.h.b16 %v2543
        %v2681 = vunpack.c.l.b16 %v2544
        %v2682 = vunpack.c.h.b16 %v2544
        %v2683 = vunpack.c.l.b16 %v2545
        %v2684 = vunpack.c.h.b16 %v2545
        %v2685 = vunpack.c.l.b16 %v2546
        %v2686 = vunpack.c.h.b16 %v2546
        %v2687 = vunpack.c.l.b16 %v2547
        %v2688 = vunpack.c.h.b16 %v2547
        %v2689 = vunpack.c.l.b16 %v2548
        %v2690 = vunpack.c.h.b16 %v2548
        %v2691 = vunpack.c.l.b16 %v2549
        %v2692 = vunpack.c.h.b16 %v2549
        %v2693 = vunpack.c.l.b16 %v2550
        %v2694 = vunpack.c.h.b16 %v2550
        %v2695 = vunpack.c.l.b16 %v2551
        %v2696 = vunpack.c.h.b16 %v2551
        %v2697 = vunpack.c.l.b16 %v2552
        %v2698 = vunpack.c.h.b16 %v2552
        %v2699 = vunpack.c.l.b16 %v2553
        %v2700 = vunpack.c.h.b16 %v2553
        %v2701 = vunpack.c.l.b16 %v2554
        %v2702 = vunpack.c.h.b16 %v2554
        %v2703 = vunpack.c.l.b16 %v2555
        %v2704 = vunpack.c.h.b16 %v2555
        %v2705 = vunpack.c.l.b16 %v2556
        %v2706 = vunpack.c.h.b16 %v2556
        %v2707 = vunpack.c.l.b16 %v2557
        %v2708 = vunpack.c.h.b16 %v2557
        %v2709 = vunpack.c.l.b16 %v2558
        %v2710 = vunpack.c.h.b16 %v2558
        %v2711 = vunpack.c.l.b16 %v2559
        %v2712 = vunpack.c.h.b16 %v2559
        %v2713 = vunpack.c.l.b16 %v2560
        %v2714 = vunpack.c.h.b16 %v2560
        %v2715 = vunpack.c.l.b16 %v2561
        %v2716 = vunpack.c.h.b16 %v2561
        %v2717 = vunpack.c.l.b16 %v2562
        %v2718 = vunpack.c.h.b16 %v2562
        %v2719 = vunpack.c.l.b16 %v2563
        %v2720 = vunpack.c.h.b16 %v2563
        %v2721 = vunpack.c.l.b16 %v2564
        %v2722 = vunpack.c.h.b16 %v2564
        %v2723 = vunpack.c.l.b16 %v2565
        %v2724 = vunpack.c.h.b16 %v2565
        %v2725 = vunpack.c.l.b16 %v2566
        %v2726 = vunpack.c.h.b16 %v2566
        %v2727 = vunpack.c.l.b16 %v2567
        %v2728 = vunpack.c.h.b16 %v2567
        %v2729 = vunpack.c.l.b16 %v2568
        %v2730 = vunpack.c.h.b16 %v2568
        %v2731 = vunpack.c.l.b16 %v2569
        %v2732 = vunpack.c.h.b16 %v2569
        %v2733 = vunpack.c.l.b16 %v2570
        %v2734 = vunpack.c.h.b16 %v2570
        %v2735 = vunpack.c.l.b16 %v2571
        %v2736 = vunpack.c.h.b16 %v2571
        %v2737 = vunpack.c.l.b16 %v2572
        %v2738 = vunpack.c.h.b16 %v2572
        %v2739 = vunpack.c.l.b16 %v2573
        %v2740 = vunpack.c.h.b16 %v2573
        %v2741 = vunpack.c.l.b16 %v2574
        %v2742 = vunpack.c.h.b16 %v2574
        %v2743 = vunpack.c.l.b16 %v2575
        %v2744 = vunpack.c.h.b16 %v2575
        %v2745 = vunpack.c.l.b16 %v2576
        %v2746 = vunpack.c.h.b16 %v2576
        %v2747 = vunpack.c.l.b16 %v2577
        %v2748 = vunpack.c.h.b16 %v2577
        %v2749 = vunpack.c.l.b16 %v2578
        %v2750 = vunpack.c.h.b16 %v2578
        %v2751 = vunpack.c.l.b16 %v2579
        %v2752 = vunpack.c.h.b16 %v2579
        %v2753 = vunpack.c.l.b16 %v2580
        %v2754 = vunpack.c.h.b16 %v2580
        %v2755 = vunpack.c.l.b16 %v2581
        %v2756 = vunpack.c.h.b16 %v2581
        %v2757 = vunpack.c.l.b16 %v2582
        %v2758 = vunpack.c.h.b16 %v2582
        %v2759 = vunpack.c.l.b16 %v2583
        %v2760 = vunpack.c.h.b16 %v2583
        %v2761 = vunpack.c.l.b16 %v2584
        %v2762 = vunpack.c.h.b16 %v2584
        %v2763 = vunpack.c.l.b16 %v2585
        %v2764 = vunpack.c.h.b16 %v2585
        %v2765 = vunpack.c.l.b16 %v2586
        %v2766 = vunpack.c.h.b16 %v2586
        %v2767 = vunpack.c.l.b16 %v2587
        %v2768 = vunpack.c.h.b16 %v2587
        %v2769 = vunpack.c.l.b16 %v2588
        %v2770 = vunpack.c.h.b16 %v2588
        %v2771 = vunpack.c.l.b16 %v2589
        %v2772 = vunpack.c.h.b16 %v2589
        %v2773 = vunpack.c.l.b16 %v2590
        %v2774 = vunpack.c.h.b16 %v2590
        %v2775 = vunpack.c.l.b16 %v2591
        %v2776 = vunpack.c.h.b16 %v2591
        %v2777 = vunpack.c.l.b16 %v2592
        %v2778 = vunpack.c.h.b16 %v2592
        %v2779 = vunpack.c.l.b16 %v2593
        %v2780 = vunpack.c.h.b16 %v2593
        %v2781 = vunpack.c.l.b16 %v2594
        %v2782 = vunpack.c.h.b16 %v2594
        %v2783 = vunpack.c.l.b16 %v2595
        %v2784 = vunpack.c.h.b16 %v2595
        %v2785 = vunpack.c.l.b16 %v2596
        %v2786 = vunpack.c.h.b16 %v2596
        %v2787 = vunpack.c.l.b16 %v2597
        %v2788 = vunpack.c.h.b16 %v2597
        %v2789 = vunpack.c.l.b16 %v2598
        %v2790 = vunpack.c.h.b16 %v2598
        %v2791 = vpack.c.b16 %v2667, %v2663
        %v2792 = vpack.c.b16 %v2668, %v2664
        %v2793 = vpack.c.b16 %v2669, %v2665
        %v2794 = vpack.c.b16 %v2670, %v2666
        %v2795 = vpack.c.b16 %v2675, %v2671
        %v2796 = vpack.c.b16 %v2676, %v2672
        %v2797 = vpack.c.b16 %v2677, %v2673
        %v2798 = vpack.c.b16 %v2678, %v2674
        %v2799 = vpack.c.b16 %v2683, %v2679
        %v2800 = vpack.c.b16 %v2684, %v2680
        %v2801 = vpack.c.b16 %v2685, %v2681
        %v2802 = vpack.c.b16 %v2686, %v2682
        %v2803 = vpack.c.b16 %v2691, %v2687
        %v2804 = vpack.c.b16 %v2692, %v2688
        %v2805 = vpack.c.b16 %v2693, %v2689
        %v2806 = vpack.c.b16 %v2694, %v2690
        %v2807 = vpack.c.b16 %v2699, %v2695
        %v2808 = vpack.c.b16 %v2700, %v2696
        %v2809 = vpack.c.b16 %v2701, %v2697
        %v2810 = vpack.c.b16 %v2702, %v2698
        %v2811 = vpack.c.b16 %v2707, %v2703
        %v2812 = vpack.c.b16 %v2708, %v2704
        %v2813 = vpack.c.b16 %v2709, %v2705
        %v2814 = vpack.c.b16 %v2710, %v2706
        %v2815 = vpack.c.b16 %v2715, %v2711
        %v2816 = vpack.c.b16 %v2716, %v2712
        %v2817 = vpack.c.b16 %v2717, %v2713
        %v2818 = vpack.c.b16 %v2718, %v2714
        %v2819 = vpack.c.b16 %v2723, %v2719
        %v2820 = vpack.c.b16 %v2724, %v2720
        %v2821 = vpack.c.b16 %v2725, %v2721
        %v2822 = vpack.c.b16 %v2726, %v2722
        %v2823 = vpack.c.b16 %v2731, %v2727
        %v2824 = vpack.c.b16 %v2732, %v2728
        %v2825 = vpack.c.b16 %v2733, %v2729
        %v2826 = vpack.c.b16 %v2734, %v2730
        %v2827 = vpack.c.b16 %v2739, %v2735
        %v2828 = vpack.c.b16 %v2740, %v2736
        %v2829 = vpack.c.b16 %v2741, %v2737
        %v2830 = vpack.c.b16 %v2742, %v2738
        %v2831 = vpack.c.b16 %v2747, %v2743
        %v2832 = vpack.c.b16 %v2748, %v2744
        %v2833 = vpack.c.b16 %v2749, %v2745
        %v2834 = vpack.c.b16 %v2750, %v2746
        %v2835 = vpack.c.b16 %v2755, %v2751
        %v2836 = vpack.c.b16 %v2756, %v2752
        %v2837 = vpack.c.b16 %v2757, %v2753
        %v2838 = vpack.c.b16 %v2758, %v2754
        %v2839 = vpack.c.b16 %v2763, %v2759
        %v2840 = vpack.c.b16 %v2764, %v2760
        %v2841 = vpack.c.b16 %v2765, %v2761
        %v2842 = vpack.c.b16 %v2766, %v2762
        %v2843 = vpack.c.b16 %v2771, %v2767
        %v2844 = vpack.c.b16 %v2772, %v2768
        %v2845 = vpack.c.b16 %v2773, %v2769
        %v2846 = vpack.c.b16 %v2774, %v2770
        %v2847 = vpack.c.b16 %v2779, %v2775
        %v2848 = vpack.c.b16 %v2780, %v2776
        %v2849 = vpack.c.b16 %v2781, %v2777
        %v2850 = vpack.c.b16 %v2782, %v2778
        %v2851 = vpack.c.b16 %v2787, %v2783
        %v2852 = vpack.c.b16 %v2788, %v2784
        %v2853 = vpack.c.b16 %v2789, %v2785
        %v2854 = vpack.c.b16 %v2790, %v2786
        %2919 = vmatprep.subr.bf16.mxu0 %v2792
        %2920 = vmatpush1.bf16.msra.mxu0 %v2791
        %2921 = vmatprep.subr.bf16.mxu0 %v2796
        %2922 = vmatpush1.bf16.msra.mxu0 %v2795
        %2923 = vmatprep.subr.bf16.mxu0 %v2800
        %2924 = vmatpush1.bf16.msra.mxu0 %v2799
        %2925 = vmatprep.subr.bf16.mxu0 %v2804
        %2926 = vmatpush1.bf16.msra.mxu0 %v2803
        %2927 = vmatprep.subr.bf16.mxu0 %v2808
        %2928 = vmatpush1.bf16.msra.mxu0 %v2807
        %2929 = vmatprep.subr.bf16.mxu0 %v2812
        %2930 = vmatpush1.bf16.msra.mxu0 %v2811
        %2931 = vmatprep.subr.bf16.mxu0 %v2816
        %2932 = vmatpush1.bf16.msra.mxu0 %v2815
        %2933 = vmatprep.subr.bf16.mxu0 %v2820
        %2934 = vmatpush1.bf16.msra.mxu0 %v2819
        %2935 = vmatprep.subr.bf16.mxu0 %v2824
        %2936 = vmatpush1.bf16.msra.mxu0 %v2823
        %2937 = vmatprep.subr.bf16.mxu0 %v2828
        %2938 = vmatpush1.bf16.msra.mxu0 %v2827
        %2939 = vmatprep.subr.bf16.mxu0 %v2832
        %2940 = vmatpush1.bf16.msra.mxu0 %v2831
        %2941 = vmatprep.subr.bf16.mxu0 %v2836
        %2942 = vmatpush1.bf16.msra.mxu0 %v2835
        %2943 = vmatprep.subr.bf16.mxu0 %v2840
        %2944 = vmatpush1.bf16.msra.mxu0 %v2839
        %2945 = vmatprep.subr.bf16.mxu0 %v2844
        %2946 = vmatpush1.bf16.msra.mxu0 %v2843
        %2947 = vmatprep.subr.bf16.mxu0 %v2848
        %2948 = vmatpush1.bf16.msra.mxu0 %v2847
        %2949 = vmatprep.subr.bf16.mxu0 %v2852
        %2950 = vmatpush1.bf16.msra.mxu0 %v2851
        %2951 = vmatprep.mubr.bf16.mxu0 %v2534
        %2952 = vmatmul.mubr.bf16.gmra.mrb[0].mxu0 %v2533
        %v2953 = vpop.f32.mrb[0].mxu0
        %v2954 = vadd.f32 0.0, %v2953
        %v2955 = vpop.f32.mrb[0].mxu0
        %v2956 = vadd.f32 0.0, %v2955
        %v2957 = vpop.f32.mrb[0].mxu0
        %v2958 = vpop.f32.mrb[0].mxu0
        %2959 = vdwg.mxu0
        %2960 = vmatprep.subr.bf16.mxu0 %v2794
        %2961 = vmatpush1.bf16.msra.mxu0 %v2793
        %2962 = vmatprep.subr.bf16.mxu0 %v2798
        %2963 = vmatpush1.bf16.msra.mxu0 %v2797
        %2964 = vmatprep.subr.bf16.mxu0 %v2802
        %2965 = vmatpush1.bf16.msra.mxu0 %v2801
        %2966 = vmatprep.subr.bf16.mxu0 %v2806
        %2967 = vmatpush1.bf16.msra.mxu0 %v2805
        %2968 = vmatprep.subr.bf16.mxu0 %v2810
        %2969 = vmatpush1.bf16.msra.mxu0 %v2809
        %2970 = vmatprep.subr.bf16.mxu0 %v2814
        %2971 = vmatpush1.bf16.msra.mxu0 %v2813
        %2972 = vmatprep.subr.bf16.mxu0 %v2818
        %2973 = vmatpush1.bf16.msra.mxu0 %v2817
        %2974 = vmatprep.subr.bf16.mxu0 %v2822
        %2975 = vmatpush1.bf16.msra.mxu0 %v2821
        %2976 = vmatprep.subr.bf16.mxu0 %v2826
        %2977 = vmatpush1.bf16.msra.mxu0 %v2825
        %2978 = vmatprep.subr.bf16.mxu0 %v2830
        %2979 = vmatpush1.bf16.msra.mxu0 %v2829
        %2980 = vmatprep.subr.bf16.mxu0 %v2834
        %2981 = vmatpush1.bf16.msra.mxu0 %v2833
        %2982 = vmatprep.subr.bf16.mxu0 %v2838
        %2983 = vmatpush1.bf16.msra.mxu0 %v2837
        %2984 = vmatprep.subr.bf16.mxu0 %v2842
        %2985 = vmatpush1.bf16.msra.mxu0 %v2841
        %2986 = vmatprep.subr.bf16.mxu0 %v2846
        %2987 = vmatpush1.bf16.msra.mxu0 %v2845
        %2988 = vmatprep.subr.bf16.mxu0 %v2850
        %2989 = vmatpush1.bf16.msra.mxu0 %v2849
        %2990 = vmatprep.subr.bf16.mxu0 %v2854
        %2991 = vmatpush1.bf16.msra.mxu0 %v2853
        %2992 = vmatprep.mubr.bf16.mxu0 %v2534
        %2993 = vmatmul.mubr.bf16.gmra.mrb[0].mxu0 %v2533
        %v2994 = vpop.f32.mrb[0].mxu0
        %v2995 = vadd.f32 0.0, %v2994
        %v2996 = vpop.f32.mrb[0].mxu0
        %v2997 = vadd.f32 0.0, %v2996
        %v2998 = vpop.f32.mrb[0].mxu0
        %v2999 = vpop.f32.mrb[0].mxu0
        %3000 = vdwg.mxu0
        %v3001 = vpack.c.bf16 %v2954, %v2954
        %v3002 = vpack.c.bf16 %v2956, %v2956
        %v3003 = vpack.c.bf16 %v2995, %v2995
        %v3004 = vpack.c.bf16 %v2997, %v2997
        %v3005 = vld [vmem:[#allocation10] sm:$0xff]
        %v3006 = vld [vmem:[#allocation10 + $0x8] sm:$0xff]
        %v3007 = vld [vmem:[#allocation10 + $0x10] sm:$0xff]
        %v3008 = vld [vmem:[#allocation10 + $0x18] sm:$0xff]
        %v3009 = vld [vmem:[#allocation10 + $0x20] sm:$0xff]
        %v3010 = vld [vmem:[#allocation10 + $0x28] sm:$0xff]
        %v3011 = vld [vmem:[#allocation10 + $0x30] sm:$0xff]
        %v3012 = vld [vmem:[#allocation10 + $0x38] sm:$0xff]
        %v3013 = vld [vmem:[#allocation10 + $0x40] sm:$0xff]
        %v3014 = vld [vmem:[#allocation10 + $0x48] sm:$0xff]
        %v3015 = vld [vmem:[#allocation10 + $0x50] sm:$0xff]
        %v3016 = vld [vmem:[#allocation10 + $0x58] sm:$0xff]
        %v3017 = vld [vmem:[#allocation10 + $0x60] sm:$0xff]
        %v3018 = vld [vmem:[#allocation10 + $0x68] sm:$0xff]
        %v3019 = vld [vmem:[#allocation10 + $0x70] sm:$0xff]
        %v3020 = vld [vmem:[#allocation10 + $0x78] sm:$0xff]
        %v3021 = vld [vmem:[#allocation10 + $0x80] sm:$0xff]
        %v3022 = vld [vmem:[#allocation10 + $0x88] sm:$0xff]
        %v3023 = vld [vmem:[#allocation10 + $0x90] sm:$0xff]
        %v3024 = vld [vmem:[#allocation10 + $0x98] sm:$0xff]
        %v3025 = vld [vmem:[#allocation10 + $0xa0] sm:$0xff]
        %v3026 = vld [vmem:[#allocation10 + $0xa8] sm:$0xff]
        %v3027 = vld [vmem:[#allocation10 + $0xb0] sm:$0xff]
        %v3028 = vld [vmem:[#allocation10 + $0xb8] sm:$0xff]
        %v3029 = vld [vmem:[#allocation10 + $0xc0] sm:$0xff]
        %v3030 = vld [vmem:[#allocation10 + $0xc8] sm:$0xff]
        %v3031 = vld [vmem:[#allocation10 + $0xd0] sm:$0xff]
        %v3032 = vld [vmem:[#allocation10 + $0xd8] sm:$0xff]
        %v3033 = vld [vmem:[#allocation10 + $0xe0] sm:$0xff]
        %v3034 = vld [vmem:[#allocation10 + $0xe8] sm:$0xff]
        %v3035 = vld [vmem:[#allocation10 + $0xf0] sm:$0xff]
        %v3036 = vld [vmem:[#allocation10 + $0xf8] sm:$0xff]
        %v3037 = vld [vmem:[#allocation10 + $0x100] sm:$0xff]
        %v3038 = vld [vmem:[#allocation10 + $0x108] sm:$0xff]
        %v3039 = vld [vmem:[#allocation10 + $0x110] sm:$0xff]
        %v3040 = vld [vmem:[#allocation10 + $0x118] sm:$0xff]
        %v3041 = vld [vmem:[#allocation10 + $0x120] sm:$0xff]
        %v3042 = vld [vmem:[#allocation10 + $0x128] sm:$0xff]
        %v3043 = vld [vmem:[#allocation10 + $0x130] sm:$0xff]
        %v3044 = vld [vmem:[#allocation10 + $0x138] sm:$0xff]
        %v3045 = vld [vmem:[#allocation10 + $0x140] sm:$0xff]
        %v3046 = vld [vmem:[#allocation10 + $0x148] sm:$0xff]
        %v3047 = vld [vmem:[#allocation10 + $0x150] sm:$0xff]
        %v3048 = vld [vmem:[#allocation10 + $0x158] sm:$0xff]
        %v3049 = vld [vmem:[#allocation10 + $0x160] sm:$0xff]
        %v3050 = vld [vmem:[#allocation10 + $0x168] sm:$0xff]
        %v3051 = vld [vmem:[#allocation10 + $0x170] sm:$0xff]
        %v3052 = vld [vmem:[#allocation10 + $0x178] sm:$0xff]
        %v3053 = vld [vmem:[#allocation10 + $0x180] sm:$0xff]
        %v3054 = vld [vmem:[#allocation10 + $0x188] sm:$0xff]
        %v3055 = vld [vmem:[#allocation10 + $0x190] sm:$0xff]
        %v3056 = vld [vmem:[#allocation10 + $0x198] sm:$0xff]
        %v3057 = vld [vmem:[#allocation10 + $0x1a0] sm:$0xff]
        %v3058 = vld [vmem:[#allocation10 + $0x1a8] sm:$0xff]
        %v3059 = vld [vmem:[#allocation10 + $0x1b0] sm:$0xff]
        %v3060 = vld [vmem:[#allocation10 + $0x1b8] sm:$0xff]
        %v3061 = vld [vmem:[#allocation10 + $0x1c0] sm:$0xff]
        %v3062 = vld [vmem:[#allocation10 + $0x1c8] sm:$0xff]
        %v3063 = vld [vmem:[#allocation10 + $0x1d0] sm:$0xff]
        %v3064 = vld [vmem:[#allocation10 + $0x1d8] sm:$0xff]
        %v3065 = vld [vmem:[#allocation10 + $0x1e0] sm:$0xff]
        %v3066 = vld [vmem:[#allocation10 + $0x1e8] sm:$0xff]
        %v3067 = vld [vmem:[#allocation10 + $0x1f0] sm:$0xff]
        %v3068 = vld [vmem:[#allocation10 + $0x1f8] sm:$0xff]
        %v3133 = vunpack.c.l.b16 %v3005
        %v3134 = vunpack.c.h.b16 %v3005
        %v3135 = vunpack.c.l.b16 %v3006
        %v3136 = vunpack.c.h.b16 %v3006
        %v3137 = vunpack.c.l.b16 %v3007
        %v3138 = vunpack.c.h.b16 %v3007
        %v3139 = vunpack.c.l.b16 %v3008
        %v3140 = vunpack.c.h.b16 %v3008
        %v3141 = vunpack.c.l.b16 %v3009
        %v3142 = vunpack.c.h.b16 %v3009
        %v3143 = vunpack.c.l.b16 %v3010
        %v3144 = vunpack.c.h.b16 %v3010
        %v3145 = vunpack.c.l.b16 %v3011
        %v3146 = vunpack.c.h.b16 %v3011
        %v3147 = vunpack.c.l.b16 %v3012
        %v3148 = vunpack.c.h.b16 %v3012
        %v3149 = vunpack.c.l.b16 %v3013
        %v3150 = vunpack.c.h.b16 %v3013
        %v3151 = vunpack.c.l.b16 %v3014
        %v3152 = vunpack.c.h.b16 %v3014
        %v3153 = vunpack.c.l.b16 %v3015
        %v3154 = vunpack.c.h.b16 %v3015
        %v3155 = vunpack.c.l.b16 %v3016
        %v3156 = vunpack.c.h.b16 %v3016
        %v3157 = vunpack.c.l.b16 %v3017
        %v3158 = vunpack.c.h.b16 %v3017
        %v3159 = vunpack.c.l.b16 %v3018
        %v3160 = vunpack.c.h.b16 %v3018
        %v3161 = vunpack.c.l.b16 %v3019
        %v3162 = vunpack.c.h.b16 %v3019
        %v3163 = vunpack.c.l.b16 %v3020
        %v3164 = vunpack.c.h.b16 %v3020
        %v3165 = vunpack.c.l.b16 %v3021
        %v3166 = vunpack.c.h.b16 %v3021
        %v3167 = vunpack.c.l.b16 %v3022
        %v3168 = vunpack.c.h.b16 %v3022
        %v3169 = vunpack.c.l.b16 %v3023
        %v3170 = vunpack.c.h.b16 %v3023
        %v3171 = vunpack.c.l.b16 %v3024
        %v3172 = vunpack.c.h.b16 %v3024
        %v3173 = vunpack.c.l.b16 %v3025
        %v3174 = vunpack.c.h.b16 %v3025
        %v3175 = vunpack.c.l.b16 %v3026
        %v3176 = vunpack.c.h.b16 %v3026
        %v3177 = vunpack.c.l.b16 %v3027
        %v3178 = vunpack.c.h.b16 %v3027
        %v3179 = vunpack.c.l.b16 %v3028
        %v3180 = vunpack.c.h.b16 %v3028
        %v3181 = vunpack.c.l.b16 %v3029
        %v3182 = vunpack.c.h.b16 %v3029
        %v3183 = vunpack.c.l.b16 %v3030
        %v3184 = vunpack.c.h.b16 %v3030
        %v3185 = vunpack.c.l.b16 %v3031
        %v3186 = vunpack.c.h.b16 %v3031
        %v3187 = vunpack.c.l.b16 %v3032
        %v3188 = vunpack.c.h.b16 %v3032
        %v3189 = vunpack.c.l.b16 %v3033
        %v3190 = vunpack.c.h.b16 %v3033
        %v3191 = vunpack.c.l.b16 %v3034
        %v3192 = vunpack.c.h.b16 %v3034
        %v3193 = vunpack.c.l.b16 %v3035
        %v3194 = vunpack.c.h.b16 %v3035
        %v3195 = vunpack.c.l.b16 %v3036
        %v3196 = vunpack.c.h.b16 %v3036
        %v3197 = vunpack.c.l.b16 %v3037
        %v3198 = vunpack.c.h.b16 %v3037
        %v3199 = vunpack.c.l.b16 %v3038
        %v3200 = vunpack.c.h.b16 %v3038
        %v3201 = vunpack.c.l.b16 %v3039
        %v3202 = vunpack.c.h.b16 %v3039
        %v3203 = vunpack.c.l.b16 %v3040
        %v3204 = vunpack.c.h.b16 %v3040
        %v3205 = vunpack.c.l.b16 %v3041
        %v3206 = vunpack.c.h.b16 %v3041
        %v3207 = vunpack.c.l.b16 %v3042
        %v3208 = vunpack.c.h.b16 %v3042
        %v3209 = vunpack.c.l.b16 %v3043
        %v3210 = vunpack.c.h.b16 %v3043
        %v3211 = vunpack.c.l.b16 %v3044
        %v3212 = vunpack.c.h.b16 %v3044
        %v3213 = vunpack.c.l.b16 %v3045
        %v3214 = vunpack.c.h.b16 %v3045
        %v3215 = vunpack.c.l.b16 %v3046
        %v3216 = vunpack.c.h.b16 %v3046
        %v3217 = vunpack.c.l.b16 %v3047
        %v3218 = vunpack.c.h.b16 %v3047
        %v3219 = vunpack.c.l.b16 %v3048
        %v3220 = vunpack.c.h.b16 %v3048
        %v3221 = vunpack.c.l.b16 %v3049
        %v3222 = vunpack.c.h.b16 %v3049
        %v3223 = vunpack.c.l.b16 %v3050
        %v3224 = vunpack.c.h.b16 %v3050
        %v3225 = vunpack.c.l.b16 %v3051
        %v3226 = vunpack.c.h.b16 %v3051
        %v3227 = vunpack.c.l.b16 %v3052
        %v3228 = vunpack.c.h.b16 %v3052
        %v3229 = vunpack.c.l.b16 %v3053
        %v3230 = vunpack.c.h.b16 %v3053
        %v3231 = vunpack.c.l.b16 %v3054
        %v3232 = vunpack.c.h.b16 %v3054
        %v3233 = vunpack.c.l.b16 %v3055
        %v3234 = vunpack.c.h.b16 %v3055
        %v3235 = vunpack.c.l.b16 %v3056
        %v3236 = vunpack.c.h.b16 %v3056
        %v3237 = vunpack.c.l.b16 %v3057
        %v3238 = vunpack.c.h.b16 %v3057
        %v3239 = vunpack.c.l.b16 %v3058
        %v3240 = vunpack.c.h.b16 %v3058
        %v3241 = vunpack.c.l.b16 %v3059
        %v3242 = vunpack.c.h.b16 %v3059
        %v3243 = vunpack.c.l.b16 %v3060
        %v3244 = vunpack.c.h.b16 %v3060
        %v3245 = vunpack.c.l.b16 %v3061
        %v3246 = vunpack.c.h.b16 %v3061
        %v3247 = vunpack.c.l.b16 %v3062
        %v3248 = vunpack.c.h.b16 %v3062
        %v3249 = vunpack.c.l.b16 %v3063
        %v3250 = vunpack.c.h.b16 %v3063
        %v3251 = vunpack.c.l.b16 %v3064
        %v3252 = vunpack.c.h.b16 %v3064
        %v3253 = vunpack.c.l.b16 %v3065
        %v3254 = vunpack.c.h.b16 %v3065
        %v3255 = vunpack.c.l.b16 %v3066
        %v3256 = vunpack.c.h.b16 %v3066
        %v3257 = vunpack.c.l.b16 %v3067
        %v3258 = vunpack.c.h.b16 %v3067
        %v3259 = vunpack.c.l.b16 %v3068
        %v3260 = vunpack.c.h.b16 %v3068
        %v3261 = vpack.c.b16 %v3137, %v3133
        %v3262 = vpack.c.b16 %v3138, %v3134
        %v3263 = vpack.c.b16 %v3139, %v3135
        %v3264 = vpack.c.b16 %v3140, %v3136
        %v3265 = vpack.c.b16 %v3145, %v3141
        %v3266 = vpack.c.b16 %v3146, %v3142
        %v3267 = vpack.c.b16 %v3147, %v3143
        %v3268 = vpack.c.b16 %v3148, %v3144
        %v3269 = vpack.c.b16 %v3153, %v3149
        %v3270 = vpack.c.b16 %v3154, %v3150
        %v3271 = vpack.c.b16 %v3155, %v3151
        %v3272 = vpack.c.b16 %v3156, %v3152
        %v3273 = vpack.c.b16 %v3161, %v3157
        %v3274 = vpack.c.b16 %v3162, %v3158
        %v3275 = vpack.c.b16 %v3163, %v3159
        %v3276 = vpack.c.b16 %v3164, %v3160
        %v3277 = vpack.c.b16 %v3169, %v3165
        %v3278 = vpack.c.b16 %v3170, %v3166
        %v3279 = vpack.c.b16 %v3171, %v3167
        %v3280 = vpack.c.b16 %v3172, %v3168
        %v3281 = vpack.c.b16 %v3177, %v3173
        %v3282 = vpack.c.b16 %v3178, %v3174
        %v3283 = vpack.c.b16 %v3179, %v3175
        %v3284 = vpack.c.b16 %v3180, %v3176
        %v3285 = vpack.c.b16 %v3185, %v3181
        %v3286 = vpack.c.b16 %v3186, %v3182
        %v3287 = vpack.c.b16 %v3187, %v3183
        %v3288 = vpack.c.b16 %v3188, %v3184
        %v3289 = vpack.c.b16 %v3193, %v3189
        %v3290 = vpack.c.b16 %v3194, %v3190
        %v3291 = vpack.c.b16 %v3195, %v3191
        %v3292 = vpack.c.b16 %v3196, %v3192
        %v3293 = vpack.c.b16 %v3201, %v3197
        %v3294 = vpack.c.b16 %v3202, %v3198
        %v3295 = vpack.c.b16 %v3203, %v3199
        %v3296 = vpack.c.b16 %v3204, %v3200
        %v3297 = vpack.c.b16 %v3209, %v3205
        %v3298 = vpack.c.b16 %v3210, %v3206
        %v3299 = vpack.c.b16 %v3211, %v3207
        %v3300 = vpack.c.b16 %v3212, %v3208
        %v3301 = vpack.c.b16 %v3217, %v3213
        %v3302 = vpack.c.b16 %v3218, %v3214
        %v3303 = vpack.c.b16 %v3219, %v3215
        %v3304 = vpack.c.b16 %v3220, %v3216
        %v3305 = vpack.c.b16 %v3225, %v3221
        %v3306 = vpack.c.b16 %v3226, %v3222
        %v3307 = vpack.c.b16 %v3227, %v3223
        %v3308 = vpack.c.b16 %v3228, %v3224
        %v3309 = vpack.c.b16 %v3233, %v3229
        %v3310 = vpack.c.b16 %v3234, %v3230
        %v3311 = vpack.c.b16 %v3235, %v3231
        %v3312 = vpack.c.b16 %v3236, %v3232
        %v3313 = vpack.c.b16 %v3241, %v3237
        %v3314 = vpack.c.b16 %v3242, %v3238
        %v3315 = vpack.c.b16 %v3243, %v3239
        %v3316 = vpack.c.b16 %v3244, %v3240
        %v3317 = vpack.c.b16 %v3249, %v3245
        %v3318 = vpack.c.b16 %v3250, %v3246
        %v3319 = vpack.c.b16 %v3251, %v3247
        %v3320 = vpack.c.b16 %v3252, %v3248
        %v3321 = vpack.c.b16 %v3257, %v3253
        %v3322 = vpack.c.b16 %v3258, %v3254
        %v3323 = vpack.c.b16 %v3259, %v3255
        %v3324 = vpack.c.b16 %v3260, %v3256
        %3389 = vmatprep.subr.bf16.mxu0 %v3262
        %3390 = vmatpush1.bf16.msra.mxu0 %v3261
        %3391 = vmatprep.subr.bf16.mxu0 %v3266
        %3392 = vmatpush1.bf16.msra.mxu0 %v3265
        %3393 = vmatprep.subr.bf16.mxu0 %v3270
        %3394 = vmatpush1.bf16.msra.mxu0 %v3269
        %3395 = vmatprep.subr.bf16.mxu0 %v3274
        %3396 = vmatpush1.bf16.msra.mxu0 %v3273
        %3397 = vmatprep.subr.bf16.mxu0 %v3278
        %3398 = vmatpush1.bf16.msra.mxu0 %v3277
        %3399 = vmatprep.subr.bf16.mxu0 %v3282
        %3400 = vmatpush1.bf16.msra.mxu0 %v3281
        %3401 = vmatprep.subr.bf16.mxu0 %v3286
        %3402 = vmatpush1.bf16.msra.mxu0 %v3285
        %3403 = vmatprep.subr.bf16.mxu0 %v3290
        %3404 = vmatpush1.bf16.msra.mxu0 %v3289
        %3405 = vmatprep.subr.bf16.mxu0 %v3294
        %3406 = vmatpush1.bf16.msra.mxu0 %v3293
        %3407 = vmatprep.subr.bf16.mxu0 %v3298
        %3408 = vmatpush1.bf16.msra.mxu0 %v3297
        %3409 = vmatprep.subr.bf16.mxu0 %v3302
        %3410 = vmatpush1.bf16.msra.mxu0 %v3301
        %3411 = vmatprep.subr.bf16.mxu0 %v3306
        %3412 = vmatpush1.bf16.msra.mxu0 %v3305
        %3413 = vmatprep.subr.bf16.mxu0 %v3310
        %3414 = vmatpush1.bf16.msra.mxu0 %v3309
        %3415 = vmatprep.subr.bf16.mxu0 %v3314
        %3416 = vmatpush1.bf16.msra.mxu0 %v3313
        %3417 = vmatprep.subr.bf16.mxu0 %v3318
        %3418 = vmatpush1.bf16.msra.mxu0 %v3317
        %3419 = vmatprep.subr.bf16.mxu0 %v3322
        %3420 = vmatpush1.bf16.msra.mxu0 %v3321
        %3421 = vmatprep.mubr.bf16.mxu0 %v2534
        %3422 = vmatmul.mubr.bf16.gmra.mrb[0].mxu0 %v2533
        %v3423 = vpop.f32.mrb[0].mxu0
        %v3424 = vadd.f32 0.0, %v3423
        %v3425 = vpop.f32.mrb[0].mxu0
        %v3426 = vadd.f32 0.0, %v3425
        %v3427 = vpop.f32.mrb[0].mxu0
        %v3428 = vpop.f32.mrb[0].mxu0
        %3429 = vdwg.mxu0
        %3430 = vmatprep.subr.bf16.mxu0 %v3264
        %3431 = vmatpush1.bf16.msra.mxu0 %v3263
        %3432 = vmatprep.subr.bf16.mxu0 %v3268
        %3433 = vmatpush1.bf16.msra.mxu0 %v3267
        %3434 = vmatprep.subr.bf16.mxu0 %v3272
        %3435 = vmatpush1.bf16.msra.mxu0 %v3271
        %3436 = vmatprep.subr.bf16.mxu0 %v3276
        %3437 = vmatpush1.bf16.msra.mxu0 %v3275
        %3438 = vmatprep.subr.bf16.mxu0 %v3280
        %3439 = vmatpush1.bf16.msra.mxu0 %v3279
        %3440 = vmatprep.subr.bf16.mxu0 %v3284
        %3441 = vmatpush1.bf16.msra.mxu0 %v3283
        %3442 = vmatprep.subr.bf16.mxu0 %v3288
        %3443 = vmatpush1.bf16.msra.mxu0 %v3287
        %3444 = vmatprep.subr.bf16.mxu0 %v3292
        %3445 = vmatpush1.bf16.msra.mxu0 %v3291
        %3446 = vmatprep.subr.bf16.mxu0 %v3296
        %3447 = vmatpush1.bf16.msra.mxu0 %v3295
        %3448 = vmatprep.subr.bf16.mxu0 %v3300
        %3449 = vmatpush1.bf16.msra.mxu0 %v3299
        %3450 = vmatprep.subr.bf16.mxu0 %v3304
        %3451 = vmatpush1.bf16.msra.mxu0 %v3303
        %3452 = vmatprep.subr.bf16.mxu0 %v3308
        %3453 = vmatpush1.bf16.msra.mxu0 %v3307
        %3454 = vmatprep.subr.bf16.mxu0 %v3312
        %3455 = vmatpush1.bf16.msra.mxu0 %v3311
        %3456 = vmatprep.subr.bf16.mxu0 %v3316
        %3457 = vmatpush1.bf16.msra.mxu0 %v3315
        %3458 = vmatprep.subr.bf16.mxu0 %v3320
        %3459 = vmatpush1.bf16.msra.mxu0 %v3319
        %3460 = vmatprep.subr.bf16.mxu0 %v3324
        %3461 = vmatpush1.bf16.msra.mxu0 %v3323
        %3462 = vmatprep.mubr.bf16.mxu0 %v2534
        %3463 = vmatmul.mubr.bf16.gmra.mrb[0].mxu0 %v2533
        %v3464 = vpop.f32.mrb[0].mxu0
        %v3465 = vadd.f32 0.0, %v3464
        %v3466 = vpop.f32.mrb[0].mxu0
        %v3467 = vadd.f32 0.0, %v3466
        %v3468 = vpop.f32.mrb[0].mxu0
        %v3469 = vpop.f32.mrb[0].mxu0
        %3470 = vdwg.mxu0
        %v3471 = vpack.c.bf16 %v3424, %v3424
        %v3472 = vpack.c.bf16 %v3426, %v3426
        %v3473 = vpack.c.bf16 %v3465, %v3465
        %v3474 = vpack.c.bf16 %v3467, %v3467
        %v3475 = vunpack.c.l.bf16 %v3001
        %v3476 = vunpack.c.l.bf16 %v3002
        %v3477 = vunpack.c.l.bf16 %v3003
        %v3478 = vunpack.c.l.bf16 %v3004
        %v3479 = vunpack.c.l.bf16 %v3471
        %v3480 = vunpack.c.l.bf16 %v3472
        %v3481 = vunpack.c.l.bf16 %v3473
        %v3482 = vunpack.c.l.bf16 %v3474
        %v3483 = vxor.u32 %v3475, 2147483648
        %v3484 = vxor.u32 %v3476, 2147483648
        %v3485 = vxor.u32 %v3477, 2147483648
        %v3486 = vxor.u32 %v3478, 2147483648
        %v3487 = vmul.f32 %v3483, 1.442695
        %v3488 = vpow.pop %v3487
        %v3489 = vmul.f32 %v3484, 1.442695
        %v3490 = vpow.pop %v3489
        %v3491 = vmul.f32 %v3485, 1.442695
        %v3492 = vpow.pop %v3491
        %v3493 = vmul.f32 %v3486, 1.442695
        %v3494 = vpow.pop %v3493
        %v3495 = vadd.f32 %v3488, 1.0
        %v3496 = vadd.f32 %v3490, 1.0
        %v3497 = vadd.f32 %v3492, 1.0
        %v3498 = vadd.f32 %v3494, 1.0
        %v3499 = vrcp.pop %v3495
        %v3500 = vmul.f32 1.0, %v3499
        %v3501 = vrcp.pop %v3496
        %v3502 = vmul.f32 1.0, %v3501
        %v3503 = vrcp.pop %v3497
        %v3504 = vmul.f32 1.0, %v3503
        %v3505 = vrcp.pop %v3498
        %v3506 = vmul.f32 1.0, %v3505
        %v3507 = vmul.f32 %v3475, %v3500
        %v3508 = vmul.f32 %v3476, %v3502
        %v3509 = vmul.f32 %v3477, %v3504
        %v3510 = vmul.f32 %v3478, %v3506
        %v3511 = vmul.f32 %v3507, %v3479
        %v3512 = vmul.f32 %v3508, %v3480
        %v3513 = vmul.f32 %v3509, %v3481
        %v3514 = vmul.f32 %v3510, %v3482
        %v3515 = vpack.c.bf16 %v3511, %v3511
        %v3516 = vpack.c.bf16 %v3512, %v3512
        %v3517 = vpack.c.bf16 %v3513, %v3513
        %v3518 = vpack.c.bf16 %v3514, %v3514
        %v3519 = vld [vmem:[#allocation11] sm:$0xff]
        %v3520 = vld [vmem:[#allocation11 + $0x8] sm:$0xff]
        %v3521 = vld [vmem:[#allocation11 + $0x10] sm:$0xff]
        %v3522 = vld [vmem:[#allocation11 + $0x18] sm:$0xff]
        %v3523 = vld [vmem:[#allocation11 + $0x20] sm:$0xff]
        %v3524 = vld [vmem:[#allocation11 + $0x28] sm:$0xff]
        %v3525 = vld [vmem:[#allocation11 + $0x30] sm:$0xff]
        %v3526 = vld [vmem:[#allocation11 + $0x38] sm:$0xff]
        %v3527 = vld [vmem:[#allocation11 + $0x40] sm:$0xff]
        %v3528 = vld [vmem:[#allocation11 + $0x48] sm:$0xff]
        %v3529 = vld [vmem:[#allocation11 + $0x50] sm:$0xff]
        %v3530 = vld [vmem:[#allocation11 + $0x58] sm:$0xff]
        %v3531 = vld [vmem:[#allocation11 + $0x60] sm:$0xff]
        %v3532 = vld [vmem:[#allocation11 + $0x68] sm:$0xff]
        %v3533 = vld [vmem:[#allocation11 + $0x70] sm:$0xff]
        %v3534 = vld [vmem:[#allocation11 + $0x78] sm:$0xff]
        %v3535 = vld [vmem:[#allocation11 + $0x80] sm:$0xff]
        %v3536 = vld [vmem:[#allocation11 + $0x88] sm:$0xff]
        %v3537 = vld [vmem:[#allocation11 + $0x90] sm:$0xff]
        %v3538 = vld [vmem:[#allocation11 + $0x98] sm:$0xff]
        %v3539 = vld [vmem:[#allocation11 + $0xa0] sm:$0xff]
        %v3540 = vld [vmem:[#allocation11 + $0xa8] sm:$0xff]
        %v3541 = vld [vmem:[#allocation11 + $0xb0] sm:$0xff]
        %v3542 = vld [vmem:[#allocation11 + $0xb8] sm:$0xff]
        %v3543 = vld [vmem:[#allocation11 + $0xc0] sm:$0xff]
        %v3544 = vld [vmem:[#allocation11 + $0xc8] sm:$0xff]
        %v3545 = vld [vmem:[#allocation11 + $0xd0] sm:$0xff]
        %v3546 = vld [vmem:[#allocation11 + $0xd8] sm:$0xff]
        %v3547 = vld [vmem:[#allocation11 + $0xe0] sm:$0xff]
        %v3548 = vld [vmem:[#allocation11 + $0xe8] sm:$0xff]
        %v3549 = vld [vmem:[#allocation11 + $0xf0] sm:$0xff]
        %v3550 = vld [vmem:[#allocation11 + $0xf8] sm:$0xff]
        %v3551 = vld [vmem:[#allocation11 + $0x100] sm:$0xff]
        %v3552 = vld [vmem:[#allocation11 + $0x108] sm:$0xff]
        %v3553 = vld [vmem:[#allocation11 + $0x110] sm:$0xff]
        %v3554 = vld [vmem:[#allocation11 + $0x118] sm:$0xff]
        %v3555 = vld [vmem:[#allocation11 + $0x120] sm:$0xff]
        %v3556 = vld [vmem:[#allocation11 + $0x128] sm:$0xff]
        %v3557 = vld [vmem:[#allocation11 + $0x130] sm:$0xff]
        %v3558 = vld [vmem:[#allocation11 + $0x138] sm:$0xff]
        %v3559 = vld [vmem:[#allocation11 + $0x140] sm:$0xff]
        %v3560 = vld [vmem:[#allocation11 + $0x148] sm:$0xff]
        %v3561 = vld [vmem:[#allocation11 + $0x150] sm:$0xff]
        %v3562 = vld [vmem:[#allocation11 + $0x158] sm:$0xff]
        %v3563 = vld [vmem:[#allocation11 + $0x160] sm:$0xff]
        %v3564 = vld [vmem:[#allocation11 + $0x168] sm:$0xff]
        %v3565 = vld [vmem:[#allocation11 + $0x170] sm:$0xff]
        %v3566 = vld [vmem:[#allocation11 + $0x178] sm:$0xff]
        %v3567 = vld [vmem:[#allocation11 + $0x180] sm:$0xff]
        %v3568 = vld [vmem:[#allocation11 + $0x188] sm:$0xff]
        %v3569 = vld [vmem:[#allocation11 + $0x190] sm:$0xff]
        %v3570 = vld [vmem:[#allocation11 + $0x198] sm:$0xff]
        %v3571 = vld [vmem:[#allocation11 + $0x1a0] sm:$0xff]
        %v3572 = vld [vmem:[#allocation11 + $0x1a8] sm:$0xff]
        %v3573 = vld [vmem:[#allocation11 + $0x1b0] sm:$0xff]
        %v3574 = vld [vmem:[#allocation11 + $0x1b8] sm:$0xff]
        %v3575 = vld [vmem:[#allocation11 + $0x1c0] sm:$0xff]
        %v3576 = vld [vmem:[#allocation11 + $0x1c8] sm:$0xff]
        %v3577 = vld [vmem:[#allocation11 + $0x1d0] sm:$0xff]
        %v3578 = vld [vmem:[#allocation11 + $0x1d8] sm:$0xff]
        %v3579 = vld [vmem:[#allocation11 + $0x1e0] sm:$0xff]
        %v3580 = vld [vmem:[#allocation11 + $0x1e8] sm:$0xff]
        %v3581 = vld [vmem:[#allocation11 + $0x1f0] sm:$0xff]
        %v3582 = vld [vmem:[#allocation11 + $0x1f8] sm:$0xff]
        %v3647 = vunpack.c.l.b16 %v3519
        %v3648 = vunpack.c.h.b16 %v3519
        %v3649 = vunpack.c.l.b16 %v3520
        %v3650 = vunpack.c.h.b16 %v3520
        %v3651 = vunpack.c.l.b16 %v3521
        %v3652 = vunpack.c.h.b16 %v3521
        %v3653 = vunpack.c.l.b16 %v3522
        %v3654 = vunpack.c.h.b16 %v3522
        %v3655 = vunpack.c.l.b16 %v3523
        %v3656 = vunpack.c.h.b16 %v3523
        %v3657 = vunpack.c.l.b16 %v3524
        %v3658 = vunpack.c.h.b16 %v3524
        %v3659 = vunpack.c.l.b16 %v3525
        %v3660 = vunpack.c.h.b16 %v3525
        %v3661 = vunpack.c.l.b16 %v3526
        %v3662 = vunpack.c.h.b16 %v3526
        %v3663 = vunpack.c.l.b16 %v3527
        %v3664 = vunpack.c.h.b16 %v3527
        %v3665 = vunpack.c.l.b16 %v3528
        %v3666 = vunpack.c.h.b16 %v3528
        %v3667 = vunpack.c.l.b16 %v3529
        %v3668 = vunpack.c.h.b16 %v3529
        %v3669 = vunpack.c.l.b16 %v3530
        %v3670 = vunpack.c.h.b16 %v3530
        %v3671 = vunpack.c.l.b16 %v3531
        %v3672 = vunpack.c.h.b16 %v3531
        %v3673 = vunpack.c.l.b16 %v3532
        %v3674 = vunpack.c.h.b16 %v3532
        %v3675 = vunpack.c.l.b16 %v3533
        %v3676 = vunpack.c.h.b16 %v3533
        %v3677 = vunpack.c.l.b16 %v3534
        %v3678 = vunpack.c.h.b16 %v3534
        %v3679 = vunpack.c.l.b16 %v3535
        %v3680 = vunpack.c.h.b16 %v3535
        %v3681 = vunpack.c.l.b16 %v3536
        %v3682 = vunpack.c.h.b16 %v3536
        %v3683 = vunpack.c.l.b16 %v3537
        %v3684 = vunpack.c.h.b16 %v3537
        %v3685 = vunpack.c.l.b16 %v3538
        %v3686 = vunpack.c.h.b16 %v3538
        %v3687 = vunpack.c.l.b16 %v3539
        %v3688 = vunpack.c.h.b16 %v3539
        %v3689 = vunpack.c.l.b16 %v3540
        %v3690 = vunpack.c.h.b16 %v3540
        %v3691 = vunpack.c.l.b16 %v3541
        %v3692 = vunpack.c.h.b16 %v3541
        %v3693 = vunpack.c.l.b16 %v3542
        %v3694 = vunpack.c.h.b16 %v3542
        %v3695 = vunpack.c.l.b16 %v3543
        %v3696 = vunpack.c.h.b16 %v3543
        %v3697 = vunpack.c.l.b16 %v3544
        %v3698 = vunpack.c.h.b16 %v3544
        %v3699 = vunpack.c.l.b16 %v3545
        %v3700 = vunpack.c.h.b16 %v3545
        %v3701 = vunpack.c.l.b16 %v3546
        %v3702 = vunpack.c.h.b16 %v3546
        %v3703 = vunpack.c.l.b16 %v3547
        %v3704 = vunpack.c.h.b16 %v3547
        %v3705 = vunpack.c.l.b16 %v3548
        %v3706 = vunpack.c.h.b16 %v3548
        %v3707 = vunpack.c.l.b16 %v3549
        %v3708 = vunpack.c.h.b16 %v3549
        %v3709 = vunpack.c.l.b16 %v3550
        %v3710 = vunpack.c.h.b16 %v3550
        %v3711 = vunpack.c.l.b16 %v3551
        %v3712 = vunpack.c.h.b16 %v3551
        %v3713 = vunpack.c.l.b16 %v3552
        %v3714 = vunpack.c.h.b16 %v3552
        %v3715 = vunpack.c.l.b16 %v3553
        %v3716 = vunpack.c.h.b16 %v3553
        %v3717 = vunpack.c.l.b16 %v3554
        %v3718 = vunpack.c.h.b16 %v3554
        %v3719 = vunpack.c.l.b16 %v3555
        %v3720 = vunpack.c.h.b16 %v3555
        %v3721 = vunpack.c.l.b16 %v3556
        %v3722 = vunpack.c.h.b16 %v3556
        %v3723 = vunpack.c.l.b16 %v3557
        %v3724 = vunpack.c.h.b16 %v3557
        %v3725 = vunpack.c.l.b16 %v3558
        %v3726 = vunpack.c.h.b16 %v3558
        %v3727 = vunpack.c.l.b16 %v3559
        %v3728 = vunpack.c.h.b16 %v3559
        %v3729 = vunpack.c.l.b16 %v3560
        %v3730 = vunpack.c.h.b16 %v3560
        %v3731 = vunpack.c.l.b16 %v3561
        %v3732 = vunpack.c.h.b16 %v3561
        %v3733 = vunpack.c.l.b16 %v3562
        %v3734 = vunpack.c.h.b16 %v3562
        %v3735 = vunpack.c.l.b16 %v3563
        %v3736 = vunpack.c.h.b16 %v3563
        %v3737 = vunpack.c.l.b16 %v3564
        %v3738 = vunpack.c.h.b16 %v3564
        %v3739 = vunpack.c.l.b16 %v3565
        %v3740 = vunpack.c.h.b16 %v3565
        %v3741 = vunpack.c.l.b16 %v3566
        %v3742 = vunpack.c.h.b16 %v3566
        %v3743 = vunpack.c.l.b16 %v3567
        %v3744 = vunpack.c.h.b16 %v3567
        %v3745 = vunpack.c.l.b16 %v3568
        %v3746 = vunpack.c.h.b16 %v3568
        %v3747 = vunpack.c.l.b16 %v3569
        %v3748 = vunpack.c.h.b16 %v3569
        %v3749 = vunpack.c.l.b16 %v3570
        %v3750 = vunpack.c.h.b16 %v3570
        %v3751 = vunpack.c.l.b16 %v3571
        %v3752 = vunpack.c.h.b16 %v3571
        %v3753 = vunpack.c.l.b16 %v3572
        %v3754 = vunpack.c.h.b16 %v3572
        %v3755 = vunpack.c.l.b16 %v3573
        %v3756 = vunpack.c.h.b16 %v3573
        %v3757 = vunpack.c.l.b16 %v3574
        %v3758 = vunpack.c.h.b16 %v3574
        %v3759 = vunpack.c.l.b16 %v3575
        %v3760 = vunpack.c.h.b16 %v3575
        %v3761 = vunpack.c.l.b16 %v3576
        %v3762 = vunpack.c.h.b16 %v3576
        %v3763 = vunpack.c.l.b16 %v3577
        %v3764 = vunpack.c.h.b16 %v3577
        %v3765 = vunpack.c.l.b16 %v3578
        %v3766 = vunpack.c.h.b16 %v3578
        %v3767 = vunpack.c.l.b16 %v3579
        %v3768 = vunpack.c.h.b16 %v3579
        %v3769 = vunpack.c.l.b16 %v3580
        %v3770 = vunpack.c.h.b16 %v3580
        %v3771 = vunpack.c.l.b16 %v3581
        %v3772 = vunpack.c.h.b16 %v3581
        %v3773 = vunpack.c.l.b16 %v3582
        %v3774 = vunpack.c.h.b16 %v3582
        %v3775 = vpack.c.b16 %v3649, %v3647
        %v3776 = vpack.c.b16 %v3650, %v3648
        %v3777 = vpack.c.b16 %v3653, %v3651
        %v3778 = vpack.c.b16 %v3654, %v3652
        %v3779 = vpack.c.b16 %v3657, %v3655
        %v3780 = vpack.c.b16 %v3658, %v3656
        %v3781 = vpack.c.b16 %v3661, %v3659
        %v3782 = vpack.c.b16 %v3662, %v3660
        %v3783 = vpack.c.b16 %v3665, %v3663
        %v3784 = vpack.c.b16 %v3666, %v3664
        %v3785 = vpack.c.b16 %v3669, %v3667
        %v3786 = vpack.c.b16 %v3670, %v3668
        %v3787 = vpack.c.b16 %v3673, %v3671
        %v3788 = vpack.c.b16 %v3674, %v3672
        %v3789 = vpack.c.b16 %v3677, %v3675
        %v3790 = vpack.c.b16 %v3678, %v3676
        %v3791 = vpack.c.b16 %v3681, %v3679
        %v3792 = vpack.c.b16 %v3682, %v3680
        %v3793 = vpack.c.b16 %v3685, %v3683
        %v3794 = vpack.c.b16 %v3686, %v3684
        %v3795 = vpack.c.b16 %v3689, %v3687
        %v3796 = vpack.c.b16 %v3690, %v3688
        %v3797 = vpack.c.b16 %v3693, %v3691
        %v3798 = vpack.c.b16 %v3694, %v3692
        %v3799 = vpack.c.b16 %v3697, %v3695
        %v3800 = vpack.c.b16 %v3698, %v3696
        %v3801 = vpack.c.b16 %v3701, %v3699
        %v3802 = vpack.c.b16 %v3702, %v3700
        %v3803 = vpack.c.b16 %v3705, %v3703
        %v3804 = vpack.c.b16 %v3706, %v3704
        %v3805 = vpack.c.b16 %v3709, %v3707
        %v3806 = vpack.c.b16 %v3710, %v3708
        %v3807 = vpack.c.b16 %v3713, %v3711
        %v3808 = vpack.c.b16 %v3714, %v3712
        %v3809 = vpack.c.b16 %v3717, %v3715
        %v3810 = vpack.c.b16 %v3718, %v3716
        %v3811 = vpack.c.b16 %v3721, %v3719
        %v3812 = vpack.c.b16 %v3722, %v3720
        %v3813 = vpack.c.b16 %v3725, %v3723
        %v3814 = vpack.c.b16 %v3726, %v3724
        %v3815 = vpack.c.b16 %v3729, %v3727
        %v3816 = vpack.c.b16 %v3730, %v3728
        %v3817 = vpack.c.b16 %v3733, %v3731
        %v3818 = vpack.c.b16 %v3734, %v3732
        %v3819 = vpack.c.b16 %v3737, %v3735
        %v3820 = vpack.c.b16 %v3738, %v3736
        %v3821 = vpack.c.b16 %v3741, %v3739
        %v3822 = vpack.c.b16 %v3742, %v3740
        %v3823 = vpack.c.b16 %v3745, %v3743
        %v3824 = vpack.c.b16 %v3746, %v3744
        %v3825 = vpack.c.b16 %v3749, %v3747
        %v3826 = vpack.c.b16 %v3750, %v3748
        %v3827 = vpack.c.b16 %v3753, %v3751
        %v3828 = vpack.c.b16 %v3754, %v3752
        %v3829 = vpack.c.b16 %v3757, %v3755
        %v3830 = vpack.c.b16 %v3758, %v3756
        %v3831 = vpack.c.b16 %v3761, %v3759
        %v3832 = vpack.c.b16 %v3762, %v3760
        %v3833 = vpack.c.b16 %v3765, %v3763
        %v3834 = vpack.c.b16 %v3766, %v3764
        %v3835 = vpack.c.b16 %v3769, %v3767
        %v3836 = vpack.c.b16 %v3770, %v3768
        %v3837 = vpack.c.b16 %v3773, %v3771
        %v3838 = vpack.c.b16 %v3774, %v3772
        %3903 = vmatprep.subr.bf16.mxu0 %v3776
        %3904 = vmatpush1.bf16.msra.mxu0 %v3775
        %3905 = vmatprep.subr.bf16.mxu0 %v3778
        %3906 = vmatpush1.bf16.msra.mxu0 %v3777
        %3907 = vmatprep.subr.bf16.mxu0 %v3780
        %3908 = vmatpush1.bf16.msra.mxu0 %v3779
        %3909 = vmatprep.subr.bf16.mxu0 %v3782
        %3910 = vmatpush1.bf16.msra.mxu0 %v3781
        %3911 = vmatprep.subr.bf16.mxu0 %v3784
        %3912 = vmatpush1.bf16.msra.mxu0 %v3783
        %3913 = vmatprep.subr.bf16.mxu0 %v3786
        %3914 = vmatpush1.bf16.msra.mxu0 %v3785
        %3915 = vmatprep.subr.bf16.mxu0 %v3788
        %3916 = vmatpush1.bf16.msra.mxu0 %v3787
        %3917 = vmatprep.subr.bf16.mxu0 %v3790
        %3918 = vmatpush1.bf16.msra.mxu0 %v3789
        %3919 = vmatprep.subr.bf16.mxu0 %v3792
        %3920 = vmatpush1.bf16.msra.mxu0 %v3791
        %3921 = vmatprep.subr.bf16.mxu0 %v3794
        %3922 = vmatpush1.bf16.msra.mxu0 %v3793
        %3923 = vmatprep.subr.bf16.mxu0 %v3796
        %3924 = vmatpush1.bf16.msra.mxu0 %v3795
        %3925 = vmatprep.subr.bf16.mxu0 %v3798
        %3926 = vmatpush1.bf16.msra.mxu0 %v3797
        %3927 = vmatprep.subr.bf16.mxu0 %v3800
        %3928 = vmatpush1.bf16.msra.mxu0 %v3799
        %3929 = vmatprep.subr.bf16.mxu0 %v3802
        %3930 = vmatpush1.bf16.msra.mxu0 %v3801
        %3931 = vmatprep.subr.bf16.mxu0 %v3804
        %3932 = vmatpush1.bf16.msra.mxu0 %v3803
        %3933 = vmatprep.subr.bf16.mxu0 %v3806
        %3934 = vmatpush1.bf16.msra.mxu0 %v3805
        %3935 = vmatprep.mubr.bf16.mxu0 %v3516
        %3936 = vmatmul.mubr.bf16.gmra.mrb[0].mxu0 %v3515
        %v3937 = vpop.f32.mrb[0].mxu0
        %v3938 = vadd.f32 0.0, %v3937
        %v3939 = vpop.f32.mrb[0].mxu0
        %v3940 = vadd.f32 0.0, %v3939
        %v3941 = vpop.f32.mrb[0].mxu0
        %v3942 = vpop.f32.mrb[0].mxu0
        %3943 = vdwg.mxu0
        %3944 = vmatprep.subr.bf16.mxu0 %v3808
        %3945 = vmatpush1.bf16.msra.mxu0 %v3807
        %3946 = vmatprep.subr.bf16.mxu0 %v3810
        %3947 = vmatpush1.bf16.msra.mxu0 %v3809
        %3948 = vmatprep.subr.bf16.mxu0 %v3812
        %3949 = vmatpush1.bf16.msra.mxu0 %v3811
        %3950 = vmatprep.subr.bf16.mxu0 %v3814
        %3951 = vmatpush1.bf16.msra.mxu0 %v3813
        %3952 = vmatprep.subr.bf16.mxu0 %v3816
        %3953 = vmatpush1.bf16.msra.mxu0 %v3815
        %3954 = vmatprep.subr.bf16.mxu0 %v3818
        %3955 = vmatpush1.bf16.msra.mxu0 %v3817
        %3956 = vmatprep.subr.bf16.mxu0 %v3820
        %3957 = vmatpush1.bf16.msra.mxu0 %v3819
        %3958 = vmatprep.subr.bf16.mxu0 %v3822
        %3959 = vmatpush1.bf16.msra.mxu0 %v3821
        %3960 = vmatprep.subr.bf16.mxu0 %v3824
        %3961 = vmatpush1.bf16.msra.mxu0 %v3823
        %3962 = vmatprep.subr.bf16.mxu0 %v3826
        %3963 = vmatpush1.bf16.msra.mxu0 %v3825
        %3964 = vmatprep.subr.bf16.mxu0 %v3828
        %3965 = vmatpush1.bf16.msra.mxu0 %v3827
        %3966 = vmatprep.subr.bf16.mxu0 %v3830
        %3967 = vmatpush1.bf16.msra.mxu0 %v3829
        %3968 = vmatprep.subr.bf16.mxu0 %v3832
        %3969 = vmatpush1.bf16.msra.mxu0 %v3831
        %3970 = vmatprep.subr.bf16.mxu0 %v3834
        %3971 = vmatpush1.bf16.msra.mxu0 %v3833
        %3972 = vmatprep.subr.bf16.mxu0 %v3836
        %3973 = vmatpush1.bf16.msra.mxu0 %v3835
        %3974 = vmatprep.subr.bf16.mxu0 %v3838
        %3975 = vmatpush1.bf16.msra.mxu0 %v3837
        %3976 = vmatprep.mubr.bf16.mxu0 %v3518
        %3977 = vmatmul.mubr.bf16.gmra.mrb[0].mxu0 %v3517
        %v3978 = vpop.f32.mrb[0].mxu0
        %v3979 = vadd.f32 %v3938, %v3978
        %v3980 = vpop.f32.mrb[0].mxu0
        %v3981 = vadd.f32 %v3940, %v3980
        %v3982 = vpop.f32.mrb[0].mxu0
        %v3983 = vpop.f32.mrb[0].mxu0
        %3984 = vdwg.mxu0
        %v3985 = vpack.c.bf16 %v3979, %v3979
        %v3986 = vpack.c.bf16 %v3981, %v3981
        %v3989 = vunpack.c.l.b16 %v3985
        %v3990 = vunpack.c.l.b16 %v3986
        %v3991 = vpack.c.b16 %v3990, %v3989
        %v3993 = vadd.bf16 %v2506, %v3991
        %3994 = vst [vmem:[%s704] sm:$0xff] %v3993
        %s3995 = sand.u32 %s450, 1
        %s3996 = scalar_lea.sflag [#allocation4], %s3995
        %s3997 = sand.u32 %s450, 1
        %s3998 = smul.addr %s3997, 8
        %s3999 = scalar_lea.vmem [#allocation16], %s3998
        // Predicated region
        $region129: #{tpu_custom_call.1} parent=95 // pred_check
          %p4000 = pneg %p460
        $region130: #{tpu_custom_call.1} parent=95 // pred_check_branch
          %4002 = sbr.rel (%p4000) target = $region132
        $region131: #{tpu_custom_call.1} parent=95 // pred_region
          %s4004 = ssub.s32 128, 128
          %4005 = vsyncadd %s3996, %s4004
          %s4006 = smul.addr %s38, 2
          %s4007 = smul.addr %s4006, 64
          %s4008 = scalar_lea.hbm %s19, %s4007
          %s4010 = sshll.u32 %s3999, 4
          %s4011 = int_to_ptr.vmem [resolvable:$true] %s4010
          %4013 = dma.vmem_to_hbm [thread:$0]  %s4011, 128, %s4008, %s3996
        $region132: #{tpu_custom_call.1} parent=95 // pred_fallthru
          _
      $region96: #{tpu_custom_call.1} parent=5 // pred_fallthru
        _
      %p4014 = scmp.le.s32.totalorder 2, %s33
      // Predicated region
      $region133: #{tpu_custom_call.1} parent=5 // pred_check
        %p4015 = pneg %p4014
      $region134: #{tpu_custom_call.1} parent=5 // pred_check_branch
        %4017 = sbr.rel (%p4015) target = $region136
      $region135: #{tpu_custom_call.1} parent=5 // pred_region
        %s4018 = ssub.s32 %s33, 2
        // Predicated region
        $region137: #{tpu_custom_call.1} parent=135 // pred_check
          %p4019 = pneg %p466
        $region138: #{tpu_custom_call.1} parent=135 // pred_check_branch
          %4021 = sbr.rel (%p4019) target = $region140
        $region139: #{tpu_custom_call.1} parent=135 // pred_region
          %s4022 = sand.u32 %s451, 1
          %s4023 = scalar_lea.sflag [#allocation4], %s4022
          %s4024 = sand.u32 %s451, 1
          %s4025 = smul.addr %s4024, 8
          %s4026 = scalar_lea.vmem [#allocation16], %s4025
          %4027 = dma.done %s4023, 128
        $region140: #{tpu_custom_call.1} parent=135 // pred_fallthru
          _
      $region136: #{tpu_custom_call.1} parent=5 // pred_fallthru
        _
    $region6: #{tpu_custom_call.1} parent=1 // loop_footer
      %s37 = sadd.s32 1, %s33
    $region7: #{tpu_custom_call.1} parent=1 // loop_footer_branch
      %32 = sbr.rel target = $region3
    $region8: #{tpu_custom_call.1} parent=1 // loop_exit
      _
    %4028 = vsyncpa [#allocation3], 1
    %s4029 = scalar_lea.sflag [#allocation3], 1
    %4030 = vsyncpa %s4029, 1
    %4031 = vsyncpa [#allocation6], 1
    %4032 = vsyncpa [#allocation9], 1
    %4033 = vsyncpa [#allocation12], 1
    %4034 = vsyncpa [#allocation15], 1
    %4035 = vsyncpa [#allocation4], 1
    %s4036 = scalar_lea.sflag [#allocation4], 1
    %4037 = vsyncpa %s4036, 1

</llo_original>
